<compile_context>
chip_gen: v6e
topology: v6e:2x2x1
jax: 0.10.0
libtpu: 0.0.40
codegen_flags: <defaults>
</compile_context>

<pallas_src>
import functools

import jax
import jax.numpy as jnp
from jax.experimental import pallas as pl
from jax.experimental.pallas import tpu as pltpu

NEG_SLOPE = 0.2
BN_EPS = 1e-5
MASK_VAL = -1e30


# ----------------------------------------------------------------------------
# In-kernel helpers
# ----------------------------------------------------------------------------
def _init_state(m_scr, acc_scr):
    m_scr[...] = jnp.full(m_scr.shape, MASK_VAL, jnp.float32)
    acc_scr[...] = jnp.zeros(acc_scr.shape, jnp.float32)


def _attend_tile(h, el_ref, er_ref, adj_bias, z_ref, m_scr, acc_scr, slope):
    """One head, one (src-tile, dst-tile) step of the online edge-softmax.

    e is laid out (src, dst): the dst (output-node) dim sits on the 128-wide
    lane axis, so the MXU result, the running accumulator and the final store
    are all lane-dense.
    """
    e = el_ref[h] + er_ref[h]                        # (TS,1)+(1,TD) -> (TS,TD)
    e = jnp.maximum(e, slope * e) + adj_bias         # leaky_relu (0<slope<1) + mask
    m_prev = m_scr[h]                                # (1, TD)
    m_new = jnp.maximum(m_prev, jnp.max(e, axis=0, keepdims=True))
    corr = jnp.exp(m_prev - m_new)                   # (1, TD)
    p = jnp.exp(e - m_new).astype(jnp.bfloat16)      # masked entries -> exactly 0
    # z_ref[h] is (F+1, TS) bf16 with a trailing all-ones row: one bf16 MXU
    # matmul produces the numerator rows [0:F] AND the softmax denominator
    # (row F) -- no separate cross-lane sum of p.
    acc_scr[h] = corr * acc_scr[h] + jnp.dot(
        z_ref[h], p, preferred_element_type=jnp.float32)
    m_scr[h] = m_new


def _elu(y):
    # exp only on the clamped (non-positive) branch -> no overflow in the
    # unselected branch.
    return jnp.where(y > 0, y, jnp.exp(jnp.minimum(y, 0.0)) - 1.0)


def _mask_bias(adj_ref):
    # int8 {0,1} adjacency tile -> additive f32 mask, built ONCE per tile and
    # shared across all heads (keeps the conversion off the per-head VALU path).
    return jnp.where(adj_ref[...].astype(jnp.float32) > 0.0, 0.0, MASK_VAL)


# ----------------------------------------------------------------------------
# Kernels
# ----------------------------------------------------------------------------
def gat_hidden_kernel(adj_ref, el_ref, er_ref, z_ref, scale_ref, shift_ref,
                      out_ref, m_scr, acc_scr, *, num_heads, feat, slope):
    """Multi-head GATConv + folded BatchNorm(eval) + ELU, online over src tiles."""
    s = pl.program_id(1)

    @pl.when(s == 0)
    def _init():
        _init_state(m_scr, acc_scr)

    adj_bias = _mask_bias(adj_ref)                   # (TS, TD) f32
    for h in range(num_heads):
        _attend_tile(h, el_ref, er_ref, adj_bias, z_ref, m_scr, acc_scr, slope)

    @pl.when(s == pl.num_programs(1) - 1)
    def _finalize():
        for h in range(num_heads):
            acc = acc_scr[h]                                     # (F+1, TD)
            inv = pl.reciprocal(jnp.maximum(acc[feat:feat + 1], 1e-20),
                                approx=True)                     # (1, TD), EUP
            # GATConv bias + eval-mode BatchNorm folded into scale/shift.
            y = acc[:feat] * inv * scale_ref[h] + shift_ref[h]   # (F, TD)
            out_ref[h] = _elu(y)


def gat_output_kernel(adj_ref, el_ref, er_ref, z_ref, bias_ref,
                      out_ref, m_scr, acc_scr, *, num_heads, feat, slope):
    """Multi-head GATConv + mean over heads + log_softmax, online over src tiles."""
    s = pl.program_id(1)

    @pl.when(s == 0)
    def _init():
        _init_state(m_scr, acc_scr)

    adj_bias = _mask_bias(adj_ref)
    for h in range(num_heads):
        _attend_tile(h, el_ref, er_ref, adj_bias, z_ref, m_scr, acc_scr, slope)

    @pl.when(s == pl.num_programs(1) - 1)
    def _finalize():
        total = None
        for h in range(num_heads):
            acc = acc_scr[h]                                     # (C+1, TD)
            denom = jnp.maximum(acc[feat:feat + 1], 1e-20)
            term = acc[:feat] / denom + bias_ref[h]              # exact divide
            total = term if total is None else total + term
        logits = total * (1.0 / num_heads)                       # (C, TD)
        mx = jnp.max(logits, axis=0, keepdims=True)
        lse = mx + jnp.log(jnp.sum(jnp.exp(logits - mx), axis=0, keepdims=True))
        out_ref[...] = logits - lse


# ----------------------------------------------------------------------------
# pallas_call wrappers
# ----------------------------------------------------------------------------
def _round_up(x, m):
    return (x + m - 1) // m * m


def _padded_block_bytes(shape, dtype):
    """VMEM footprint of one block after (sublane, 128)-lane tiling/padding."""
    itemsize = jnp.dtype(dtype).itemsize
    if len(shape) < 2:
        return _round_up(int(shape[0]) * itemsize, 512) if shape else itemsize
    sub = {4: 8, 2: 16, 1: 32}[itemsize]
    lead = 1
    for d in shape[:-2]:
        lead *= int(d)
    return lead * _round_up(int(shape[-2]), sub) * _round_up(int(shape[-1]), 128) * itemsize


def _compiler_params(in_blocks, out_blocks, scratch_blocks):
    # Derived VMEM budget: double-buffered inputs/outputs + scratch + headroom
    # (stays well inside v7x's 64 MiB; no-op on v5e/v6e's 128 MiB).
    need = (2 * sum(_padded_block_bytes(s, d) for s, d in in_blocks)
            + 2 * sum(_padded_block_bytes(s, d) for s, d in out_blocks)
            + sum(_padded_block_bytes(s, d) for s, d in scratch_blocks))
    limit = min(max(2 * need + (8 << 20), 32 << 20), 56 << 20)
    return pltpu.CompilerParams(
        dimension_semantics=("parallel", "arbitrary"),   # dst tiles || ; src reduce
        vmem_limit_bytes=limit,
    )


def gat_hidden_layer(adj_mask, z_aug, el, er, scale, shift, *, tile_dst, tile_src):
    H, fp1, n_pad = z_aug.shape
    fo = fp1 - 1
    grid = (n_pad // tile_dst, n_pad // tile_src)
    kernel = functools.partial(gat_hidden_kernel, num_heads=H, feat=fo,
                               slope=NEG_SLOPE)
    in_blocks = [((tile_src, tile_dst), jnp.int8),
                 ((H, tile_src, 1), jnp.float32),
                 ((H, 1, tile_dst), jnp.float32),
                 ((H, fp1, tile_src), jnp.bfloat16),
                 ((H, fo, 1), jnp.float32),
                 ((H, fo, 1), jnp.float32)]
    out_blocks = [((H, fo, tile_dst), jnp.float32)]
    scratch_blocks = [((H, 1, tile_dst), jnp.float32),
                      ((H, fp1, tile_dst), jnp.float32)]
    return pl.pallas_call(
        kernel,
        out_shape=jax.ShapeDtypeStruct((H, fo, n_pad), jnp.float32),
        grid_spec=pltpu.PrefetchScalarGridSpec(
            num_scalar_prefetch=0,
            grid=grid,
            in_specs=[
                pl.BlockSpec((tile_src, tile_dst), lambda d, s: (s, d)),   # adj int8
                pl.BlockSpec((H, tile_src, 1), lambda d, s: (0, s, 0)),    # el (src)
                pl.BlockSpec((H, 1, tile_dst), lambda d, s: (0, 0, d)),    # er (dst)
                pl.BlockSpec((H, fp1, tile_src), lambda d, s: (0, 0, s)),  # z_aug
                pl.BlockSpec((H, fo, 1), lambda d, s: (0, 0, 0)),          # scale
                pl.BlockSpec((H, fo, 1), lambda d, s: (0, 0, 0)),          # shift
            ],
            out_specs=pl.BlockSpec((H, fo, tile_dst), lambda d, s: (0, 0, d)),
            scratch_shapes=[pltpu.VMEM(shp, dt) for shp, dt in scratch_blocks],
        ),
        compiler_params=_compiler_params(in_blocks, out_blocks, scratch_blocks),
    )(adj_mask, el, er, z_aug, scale, shift)


def gat_output_layer(adj_mask, z_aug, el, er, bias, *, tile_dst, tile_src):
    H, cp1, n_pad = z_aug.shape
    c = cp1 - 1
    grid = (n_pad // tile_dst, n_pad // tile_src)
    kernel = functools.partial(gat_output_kernel, num_heads=H, feat=c,
                               slope=NEG_SLOPE)
    in_blocks = [((tile_src, tile_dst), jnp.int8),
                 ((H, tile_src, 1), jnp.float32),
                 ((H, 1, tile_dst), jnp.float32),
                 ((H, cp1, tile_src), jnp.bfloat16),
                 ((H, c, 1), jnp.float32)]
    out_blocks = [((c, tile_dst), jnp.float32)]
    scratch_blocks = [((H, 1, tile_dst), jnp.float32),
                      ((H, cp1, tile_dst), jnp.float32)]
    return pl.pallas_call(
        kernel,
        out_shape=jax.ShapeDtypeStruct((c, n_pad), jnp.float32),
        grid_spec=pltpu.PrefetchScalarGridSpec(
            num_scalar_prefetch=0,
            grid=grid,
            in_specs=[
                pl.BlockSpec((tile_src, tile_dst), lambda d, s: (s, d)),   # adj int8
                pl.BlockSpec((H, tile_src, 1), lambda d, s: (0, s, 0)),    # el (src)
                pl.BlockSpec((H, 1, tile_dst), lambda d, s: (0, 0, d)),    # er (dst)
                pl.BlockSpec((H, cp1, tile_src), lambda d, s: (0, 0, s)),  # z_aug
                pl.BlockSpec((H, c, 1), lambda d, s: (0, 0, 0)),           # bias
            ],
            out_specs=pl.BlockSpec((c, tile_dst), lambda d, s: (0, d)),
            scratch_shapes=[pltpu.VMEM(shp, dt) for shp, dt in scratch_blocks],
        ),
        compiler_params=_compiler_params(in_blocks, out_blocks, scratch_blocks),
    )(adj_mask, el, er, z_aug, bias)


# ----------------------------------------------------------------------------
# Host-side wrapper (projection / padding / parameter folding done in XLA)
# ----------------------------------------------------------------------------
def _pick_tiles(n_pad):
    """tile_dst: >=2 (preferably even) dst tiles for v7x megacore balance;
    tile_src: bounds the per-head f32 e/p tile at <=128x256 elems (no spills)."""
    dst_cands = [t for t in (256, 128) if n_pad % t == 0]
    tile_dst = None
    for t in dst_cands:
        if n_pad // t >= 2 and (n_pad // t) % 2 == 0:
            tile_dst = t
            break
    if tile_dst is None:
        for t in dst_cands:
            if n_pad // t >= 2:
                tile_dst = t
                break
    if tile_dst is None:
        tile_dst = dst_cands[-1] if dst_cands else n_pad
    max_src = max(128, (128 * 256) // tile_dst)
    tile_src = None
    for t in (256, 128):
        if t <= max_src and n_pad % t == 0:
            tile_src = t
            break
    if tile_src is None:
        tile_src = n_pad
    return tile_dst, tile_src


def _project(h, p, valid_row):
    """Projection + attention scalars (plain XLA, overlaps with previous layer).

    Returns:
      z_aug: (H, F+1, n_pad) bf16, nodes on lanes; row F is all ones so the
             in-kernel matmul also produces the softmax denominator.
      el:    (H, n_pad, 1) f32 per-src attention scalar (attn_l).
      er:    (H, 1, n_pad) f32 per-dst attention scalar (attn_r).
    """
    H, fo = p["attn_l"].shape
    n_pad = h.shape[0]
    z = (h @ p["w"]).reshape(n_pad, H, fo) * valid_row[:, None, None]
    el = jnp.einsum("nhf,hf->hn", z, p["attn_l"])[:, :, None]     # (H, N, 1)
    er = jnp.einsum("nhf,hf->hn", z, p["attn_r"])[:, None, :]     # (H, 1, N)
    z_hm = jnp.transpose(z, (1, 2, 0))                            # (H, F, N)
    ones = jnp.ones((H, 1, n_pad), z.dtype)
    z_aug = jnp.concatenate([z_hm, ones], axis=1).astype(jnp.bfloat16)
    return z_aug, el, er


def gat_forward(x, adj, params, *, tile_dst=None, tile_src=None):
    N = x.shape[0]
    n_pad = _round_up(N, 128)
    td_auto, ts_auto = _pick_tiles(n_pad)
    td = tile_dst if tile_dst is not None else td_auto
    ts = tile_src if tile_src is not None else ts_auto
    assert n_pad % td == 0 and n_pad % ts == 0

    # int8 {0,1} edge mask laid out [src, dst]; padded nodes are all-zero
    # (fully masked).  Built once, streamed by every layer; the additive
    # -1e30 bias is regenerated in f32 inside the kernel.
    adj_mask = jnp.pad((adj > 0.0).astype(jnp.int8).T,
                       ((0, n_pad - N), (0, n_pad - N)))

    valid_row = (jnp.arange(n_pad) < N).astype(jnp.float32)       # (n_pad,)
    h = jnp.pad(x, ((0, n_pad - N), (0, 0)))

    for p in params["hidden"]:
        H, fo = p["attn_l"].shape
        z_aug, el, er = _project(h, p, valid_row)
        # Fold GATConv bias + eval-mode BatchNorm into a single scale/shift.
        scale_flat = p["bn_gamma"] * jax.lax.rsqrt(p["bn_var"] + BN_EPS)
        shift_flat = (p["bias"] - p["bn_mean"]) * scale_flat + p["bn_beta"]
        scale = scale_flat.reshape(H, fo, 1)
        shift = shift_flat.reshape(H, fo, 1)
        out_hm = gat_hidden_layer(adj_mask, z_aug, el, er, scale, shift,
                                  tile_dst=td, tile_src=ts)       # (H, F, n_pad)
        h = jnp.transpose(out_hm, (2, 0, 1)).reshape(n_pad, H * fo)   # flatten(1)

    p = params["out"]
    H, c = p["attn_l"].shape
    z_aug, el, er = _project(h, p, valid_row)
    bias_hm = p["bias"].reshape(H, c, 1)
    logp = gat_output_layer(adj_mask, z_aug, el, er, bias_hm,
                            tile_dst=td, tile_src=ts)             # (C, n_pad)
    return logp.T[:N]


# ----------------------------------------------------------------------------
# Pure-JAX reference (for validation) and synthetic parameters
# ----------------------------------------------------------------------------
def gat_reference(x, adj, params):
    def conv(h, p):
        H, fo = p["attn_l"].shape
        z = (h @ p["w"]).reshape(h.shape[0], H, fo)
        el = jnp.einsum("nhf,hf->nh", z, p["attn_l"])
        er = jnp.einsum("nhf,hf->nh", z, p["attn_r"])
        e = el[None, :, :] + er[:, None, :]                        # (dst, src, H)
        e = jnp.where(e >= 0, e, NEG_SLOPE * e)
        mask = (adj > 0)[:, :, None]
        e = jnp.where(mask, e, -jnp.inf)
        alpha = jax.nn.softmax(e, axis=1)
        rst = jnp.einsum("dsh,shf->dhf", alpha, z)
        return rst + p["bias"].reshape(1, H, fo)

    h = x
    for p in params["hidden"]:
        H, fo = p["attn_l"].shape
        r = conv(h, p).reshape(h.shape[0], H * fo)
        scale = p["bn_gamma"] * jax.lax.rsqrt(p["bn_var"] + BN_EPS)
        y = (r - p["bn_mean"]) * scale + p["bn_beta"]
        h = jnp.where(y > 0, y, jnp.exp(jnp.minimum(y, 0.0)) - 1.0)
    logits = conv(h, params["out"]).mean(axis=1)
    return jax.nn.log_softmax(logits, axis=-1)


def init_params(key, n_layer, in_dim, num_hidden, num_classes, heads):
    """Deterministic synthetic parameter init (shapes follow GAT.__init__)."""
    params = {"hidden": [], "out": {}}
    for l in range(n_layer):
        fin = in_dim if l == 0 else num_hidden * heads[l - 1]
        H = heads[l]
        key, k1, k2, k3, k4, k5, k6, k7, k8 = jax.random.split(key, 9)
        params["hidden"].append({
            "w": jax.random.normal(k1, (fin, H * num_hidden), jnp.float32) * 0.2,
            "attn_l": jax.random.normal(k2, (H, num_hidden), jnp.float32) * 0.2,
            "attn_r": jax.random.normal(k3, (H, num_hidden), jnp.float32) * 0.2,
            "bias": jax.random.normal(k4, (1, H * num_hidden), jnp.float32) * 0.1,
            "bn_gamma": 1.0 + 0.1 * jax.random.normal(k5, (1, H * num_hidden), jnp.float32),
            "bn_beta": 0.1 * jax.random.normal(k6, (1, H * num_hidden), jnp.float32),
            "bn_mean": 0.1 * jax.random.normal(k7, (1, H * num_hidden), jnp.float32),
            "bn_var": 0.5 + jnp.abs(jax.random.normal(k8, (1, H * num_hidden), jnp.float32)) * 0.1,
        })
    fin = num_hidden * heads[-2]
    H = heads[-1]
    key, k1, k2, k3, k4 = jax.random.split(key, 5)
    params["out"] = {
        "w": jax.random.normal(k1, (fin, H * num_classes), jnp.float32) * 0.2,
        "attn_l": jax.random.normal(k2, (H, num_classes), jnp.float32) * 0.2,
        "attn_r": jax.random.normal(k3, (H, num_classes), jnp.float32) * 0.2,
        "bias": jax.random.normal(k4, (1, H * num_classes), jnp.float32) * 0.1,
    }
    return params


if __name__ == "__main__":
    # Small synthetic config (n_layer=1 avoids the `self.bns(...)` bug in the
    # original __init__ that only triggers for n_layer > 1).  N=256 with
    # 128x128 tiles gives a real 2x2 (dst x src) grid so the online softmax
    # accumulation path is exercised.
    N, in_dim, num_hidden, num_classes = 256, 16, 8, 8
    n_layer = 1
    heads = [4, 1]

    key = jax.random.PRNGKey(0)
    k_x, k_adj, k_p = jax.random.split(key, 3)

    x = jax.random.normal(k_x, (N, in_dim), jnp.float32)
    adj = (jax.random.uniform(k_adj, (N, N)) < 0.1).astype(jnp.float32)
    adj = jnp.maximum(adj, jnp.eye(N, dtype=jnp.float32))   # self-loops; adj[dst, src]

    params = init_params(k_p, n_layer, in_dim, num_hidden, num_classes, heads)

    out = gat_forward(x, adj, params, tile_dst=128, tile_src=128)
    out = jax.block_until_ready(out)

    assert out.shape == (N, num_classes)
    assert bool(jnp.all(jnp.isfinite(out)))
    # log_softmax rows should (approximately) exp-sum to 1
    assert bool(jnp.allclose(jnp.sum(jnp.exp(out), axis=-1), 1.0, atol=1e-4))
    # compare against a pure-JAX reference (bf16 aggregation + approx recip -> loose tol)
    ref = gat_reference(x, adj, params)
    err = float(jnp.max(jnp.abs(out - ref)))
    assert err < 5e-2, f"max abs err vs reference: {err}"
    print("KERNEL_OK")
</pallas_src>

<mosaic_0001>
module attributes {stable_mosaic.version = 11 : i64} {
  func.func @gat_hidden_kernel(%arg0: i32, %arg1: i32, %arg2: memref<128x128xi8, #tpu.memory_space<vmem>>, %arg3: memref<4x128x1xf32, #tpu.memory_space<vmem>>, %arg4: memref<4x1x128xf32, #tpu.memory_space<vmem>>, %arg5: memref<4x9x128xbf16, #tpu.memory_space<vmem>>, %arg6: memref<4x8x1xf32, #tpu.memory_space<vmem>>, %arg7: memref<4x8x1xf32, #tpu.memory_space<vmem>>, %arg8: memref<4x8x128xf32, #tpu.memory_space<vmem>>, %arg9: memref<4x1x128xf32, #tpu.memory_space<vmem>>, %arg10: memref<4x9x128xf32, #tpu.memory_space<vmem>>) attributes {dimension_semantics = [#tpu.dimension_semantics<parallel>, #tpu.dimension_semantics<arbitrary>], iteration_bounds = array<i64: 2, 2>, scalar_prefetch = 0 : i64, scratch_operands = 2 : i64, tpu.core_type = #tpu.core_type<tc>, window_params = [{transform_indices = @transform_0, window_bounds = array<i64: 128, 128>}, {transform_indices = @transform_1, window_bounds = array<i64: 4, 128, 1>}, {transform_indices = @transform_2, window_bounds = array<i64: 4, 1, 128>}, {transform_indices = @transform_3, window_bounds = array<i64: 4, 9, 128>}, {pipeline_mode = #tpu.pipeline_mode<synchronous>, transform_indices = @transform_4, window_bounds = array<i64: 4, 8, 1>}, {pipeline_mode = #tpu.pipeline_mode<synchronous>, transform_indices = @transform_5, window_bounds = array<i64: 4, 8, 1>}, {transform_indices = @transform_6, window_bounds = array<i64: 4, 8, 128>}]} {
    %c0_i32 = arith.constant 0 : i32
    %0 = arith.cmpi eq, %arg1, %c0_i32 : i32
    %1 = arith.extui %0 : i1 to i32
    %c0_i32_0 = arith.constant 0 : i32
    %2 = arith.cmpi ne, %1, %c0_i32_0 : i32
    scf.if %2 {
      %cst_98 = arith.constant -1.000000e+30 : f32
      %157 = vector.broadcast %cst_98 : f32 to vector<4x1x128xf32>
      %c0_99 = arith.constant 0 : index
      %c0_100 = arith.constant 0 : index
      %c0_101 = arith.constant 0 : index
      %158 = vector.load %arg9[%c0_99, %c0_100, %c0_101] : memref<4x1x128xf32, #tpu.memory_space<vmem>>, vector<4x1x128xf32>
      tpu.vector_store %arg9[%c0_99, %c0_100, %c0_101], %157 {strides = array<i32>} : memref<4x1x128xf32, #tpu.memory_space<vmem>>, vector<4x1x128xf32>,
      %cst_102 = arith.constant 0.000000e+00 : f32
      %159 = vector.broadcast %cst_102 : f32 to vector<4x9x128xf32>
      %c0_103 = arith.constant 0 : index
      %c0_104 = arith.constant 0 : index
      %c0_105 = arith.constant 0 : index
      %160 = vector.load %arg10[%c0_103, %c0_104, %c0_105] : memref<4x9x128xf32, #tpu.memory_space<vmem>>, vector<4x9x128xf32>
      tpu.vector_store %arg10[%c0_103, %c0_104, %c0_105], %159 {strides = array<i32>} : memref<4x9x128xf32, #tpu.memory_space<vmem>>, vector<4x9x128xf32>,
    } else {
    }
    %c0 = arith.constant 0 : index
    %c0_1 = arith.constant 0 : index
    %3 = vector.load %arg2[%c0, %c0_1] : memref<128x128xi8, #tpu.memory_space<vmem>>, vector<128x128xi8>
    %4 = arith.sitofp %3 : vector<128x128xi8> to vector<128x128xf32>
    %cst = arith.constant 0.000000e+00 : f32
    %5 = vector.broadcast %cst : f32 to vector<128x128xf32>
    %6 = arith.cmpf ogt, %4, %5 : vector<128x128xf32>
    %cst_2 = arith.constant 0.000000e+00 : f32
    %cst_3 = arith.constant -1.000000e+30 : f32
    %7 = vector.broadcast %cst_2 : f32 to vector<128x128xf32>
    %8 = vector.broadcast %cst_3 : f32 to vector<128x128xf32>
    %9 = arith.select %6, %7, %8 : vector<128x128xi1>, vector<128x128xf32>
    %c0_4 = arith.constant 0 : index
    %c0_5 = arith.constant 0 : index
    %c0_6 = arith.constant 0 : index
    %10 = vector.load %arg3[%c0_4, %c0_5, %c0_6] : memref<4x128x1xf32, #tpu.memory_space<vmem>>, vector<1x128x1xf32>
    %11 = vector.shape_cast %10 : vector<1x128x1xf32> to vector<128x1xf32>
    %c0_7 = arith.constant 0 : index
    %c0_8 = arith.constant 0 : index
    %c0_9 = arith.constant 0 : index
    %12 = vector.load %arg4[%c0_7, %c0_8, %c0_9] : memref<4x1x128xf32, #tpu.memory_space<vmem>>, vector<1x1x128xf32>
    %13 = vector.shape_cast %12 : vector<1x1x128xf32> to vector<1x128xf32>
    %14 = vector.broadcast %11 : vector<128x1xf32> to vector<128x128xf32>
    %15 = vector.broadcast %13 : vector<1x128xf32> to vector<128x128xf32>
    %16 = arith.addf %14, %15 : vector<128x128xf32>
    %cst_10 = arith.constant 2.000000e-01 : f32
    %17 = vector.broadcast %cst_10 : f32 to vector<128x128xf32>
    %18 = arith.mulf %17, %16 : vector<128x128xf32>
    %19 = arith.maximumf %16, %18 : vector<128x128xf32>
    %20 = arith.addf %19, %9 : vector<128x128xf32>
    %c0_11 = arith.constant 0 : index
    %c0_12 = arith.constant 0 : index
    %c0_13 = arith.constant 0 : index
    %21 = vector.load %arg9[%c0_11, %c0_12, %c0_13] : memref<4x1x128xf32, #tpu.memory_space<vmem>>, vector<1x1x128xf32>
    %22 = vector.shape_cast %21 : vector<1x1x128xf32> to vector<1x128xf32>
    %cst_14 = arith.constant dense<0xFF800000> : vector<128xf32>
    %23 = vector.multi_reduction <maximumf>, %20, %cst_14 [0] : vector<128x128xf32> to vector<128xf32>
    %24 = vector.shape_cast %23 : vector<128xf32> to vector<1x128xf32>
    %25 = arith.maximumf %22, %24 : vector<1x128xf32>
    %26 = arith.subf %22, %25 : vector<1x128xf32>
    %27 = math.exp %26 : vector<1x128xf32>
    %28 = vector.broadcast %25 : vector<1x128xf32> to vector<128x128xf32>
    %29 = arith.subf %20, %28 : vector<128x128xf32>
    %30 = math.exp %29 : vector<128x128xf32>
    %31 = arith.truncf %30 : vector<128x128xf32> to vector<128x128xbf16>
    %c0_15 = arith.constant 0 : index
    %c0_16 = arith.constant 0 : index
    %c0_17 = arith.constant 0 : index
    %32 = vector.load %arg10[%c0_15, %c0_16, %c0_17] : memref<4x9x128xf32, #tpu.memory_space<vmem>>, vector<1x9x128xf32>
    %33 = vector.shape_cast %32 : vector<1x9x128xf32> to vector<9x128xf32>
    %34 = vector.broadcast %27 : vector<1x128xf32> to vector<9x128xf32>
    %35 = arith.mulf %34, %33 : vector<9x128xf32>
    %c0_18 = arith.constant 0 : index
    %c0_19 = arith.constant 0 : index
    %c0_20 = arith.constant 0 : index
    %36 = vector.load %arg5[%c0_18, %c0_19, %c0_20] : memref<4x9x128xbf16, #tpu.memory_space<vmem>>, vector<1x9x128xbf16>
    %37 = vector.shape_cast %36 : vector<1x9x128xbf16> to vector<9x128xbf16>
    %cst_21 = arith.constant dense<0.000000e+00> : vector<9x128xf32>
    %38 = tpu.matmul %37, %31, %cst_21 {dimension_numbers = #tpu.dot_dimension_numbers<[1], [0], [0], [1], [0, 0, 1, 1], [], []>} : vector<9x128xbf16>, vector<128x128xbf16>, vector<9x128xf32> -> vector<9x128xf32>
    %39 = arith.addf %35, %38 : vector<9x128xf32>
    %c0_22 = arith.constant 0 : index
    %c0_23 = arith.constant 0 : index
    %c0_24 = arith.constant 0 : index
    %40 = vector.load %arg10[%c0_22, %c0_23, %c0_24] : memref<4x9x128xf32, #tpu.memory_space<vmem>>, vector<1x9x128xf32>
    %41 = vector.shape_cast %40 : vector<1x9x128xf32> to vector<9x128xf32>
    %42 = vector.shape_cast %39 : vector<9x128xf32> to vector<1x9x128xf32>
    tpu.vector_store %arg10[%c0_22, %c0_23, %c0_24], %42 {strides = array<i32>} : memref<4x9x128xf32, #tpu.memory_space<vmem>>, vector<1x9x128xf32>,
    %c0_25 = arith.constant 0 : index
    %c0_26 = arith.constant 0 : index
    %c0_27 = arith.constant 0 : index
    %43 = vector.load %arg9[%c0_25, %c0_26, %c0_27] : memref<4x1x128xf32, #tpu.memory_space<vmem>>, vector<1x1x128xf32>
    %44 = vector.shape_cast %43 : vector<1x1x128xf32> to vector<1x128xf32>
    %45 = vector.shape_cast %25 : vector<1x128xf32> to vector<1x1x128xf32>
    tpu.vector_store %arg9[%c0_25, %c0_26, %c0_27], %45 {strides = array<i32>} : memref<4x1x128xf32, #tpu.memory_space<vmem>>, vector<1x1x128xf32>,
    %c1 = arith.constant 1 : index
    %c0_28 = arith.constant 0 : index
    %c0_29 = arith.constant 0 : index
    %46 = vector.load %arg3[%c1, %c0_28, %c0_29] : memref<4x128x1xf32, #tpu.memory_space<vmem>>, vector<1x128x1xf32>
    %47 = vector.shape_cast %46 : vector<1x128x1xf32> to vector<128x1xf32>
    %c1_30 = arith.constant 1 : index
    %c0_31 = arith.constant 0 : index
    %c0_32 = arith.constant 0 : index
    %48 = vector.load %arg4[%c1_30, %c0_31, %c0_32] : memref<4x1x128xf32, #tpu.memory_space<vmem>>, vector<1x1x128xf32>
    %49 = vector.shape_cast %48 : vector<1x1x128xf32> to vector<1x128xf32>
    %50 = vector.broadcast %47 : vector<128x1xf32> to vector<128x128xf32>
    %51 = vector.broadcast %49 : vector<1x128xf32> to vector<128x128xf32>
    %52 = arith.addf %50, %51 : vector<128x128xf32>
    %cst_33 = arith.constant 2.000000e-01 : f32
    %53 = vector.broadcast %cst_33 : f32 to vector<128x128xf32>
    %54 = arith.mulf %53, %52 : vector<128x128xf32>
    %55 = arith.maximumf %52, %54 : vector<128x128xf32>
    %56 = arith.addf %55, %9 : vector<128x128xf32>
    %c1_34 = arith.constant 1 : index
    %c0_35 = arith.constant 0 : index
    %c0_36 = arith.constant 0 : index
    %57 = vector.load %arg9[%c1_34, %c0_35, %c0_36] : memref<4x1x128xf32, #tpu.memory_space<vmem>>, vector<1x1x128xf32>
    %58 = vector.shape_cast %57 : vector<1x1x128xf32> to vector<1x128xf32>
    %cst_37 = arith.constant dense<0xFF800000> : vector<128xf32>
    %59 = vector.multi_reduction <maximumf>, %56, %cst_37 [0] : vector<128x128xf32> to vector<128xf32>
    %60 = vector.shape_cast %59 : vector<128xf32> to vector<1x128xf32>
    %61 = arith.maximumf %58, %60 : vector<1x128xf32>
    %62 = arith.subf %58, %61 : vector<1x128xf32>
    %63 = math.exp %62 : vector<1x128xf32>
    %64 = vector.broadcast %61 : vector<1x128xf32> to vector<128x128xf32>
    %65 = arith.subf %56, %64 : vector<128x128xf32>
    %66 = math.exp %65 : vector<128x128xf32>
    %67 = arith.truncf %66 : vector<128x128xf32> to vector<128x128xbf16>
    %c1_38 = arith.constant 1 : index
    %c0_39 = arith.constant 0 : index
    %c0_40 = arith.constant 0 : index
    %68 = vector.load %arg10[%c1_38, %c0_39, %c0_40] : memref<4x9x128xf32, #tpu.memory_space<vmem>>, vector<1x9x128xf32>
    %69 = vector.shape_cast %68 : vector<1x9x128xf32> to vector<9x128xf32>
    %70 = vector.broadcast %63 : vector<1x128xf32> to vector<9x128xf32>
    %71 = arith.mulf %70, %69 : vector<9x128xf32>
    %c1_41 = arith.constant 1 : index
    %c0_42 = arith.constant 0 : index
    %c0_43 = arith.constant 0 : index
    %72 = vector.load %arg5[%c1_41, %c0_42, %c0_43] : memref<4x9x128xbf16, #tpu.memory_space<vmem>>, vector<1x9x128xbf16>
    %73 = vector.shape_cast %72 : vector<1x9x128xbf16> to vector<9x128xbf16>
    %cst_44 = arith.constant dense<0.000000e+00> : vector<9x128xf32>
    %74 = tpu.matmul %73, %67, %cst_44 {dimension_numbers = #tpu.dot_dimension_numbers<[1], [0], [0], [1], [0, 0, 1, 1], [], []>} : vector<9x128xbf16>, vector<128x128xbf16>, vector<9x128xf32> -> vector<9x128xf32>
    %75 = arith.addf %71, %74 : vector<9x128xf32>
    %c1_45 = arith.constant 1 : index
    %c0_46 = arith.constant 0 : index
    %c0_47 = arith.constant 0 : index
    %76 = vector.load %arg10[%c1_45, %c0_46, %c0_47] : memref<4x9x128xf32, #tpu.memory_space<vmem>>, vector<1x9x128xf32>
    %77 = vector.shape_cast %76 : vector<1x9x128xf32> to vector<9x128xf32>
    %78 = vector.shape_cast %75 : vector<9x128xf32> to vector<1x9x128xf32>
    tpu.vector_store %arg10[%c1_45, %c0_46, %c0_47], %78 {strides = array<i32>} : memref<4x9x128xf32, #tpu.memory_space<vmem>>, vector<1x9x128xf32>,
    %c1_48 = arith.constant 1 : index
    %c0_49 = arith.constant 0 : index
    %c0_50 = arith.constant 0 : index
    %79 = vector.load %arg9[%c1_48, %c0_49, %c0_50] : memref<4x1x128xf32, #tpu.memory_space<vmem>>, vector<1x1x128xf32>
    %80 = vector.shape_cast %79 : vector<1x1x128xf32> to vector<1x128xf32>
    %81 = vector.shape_cast %61 : vector<1x128xf32> to vector<1x1x128xf32>
    tpu.vector_store %arg9[%c1_48, %c0_49, %c0_50], %81 {strides = array<i32>} : memref<4x1x128xf32, #tpu.memory_space<vmem>>, vector<1x1x128xf32>,
    %c2 = arith.constant 2 : index
    %c0_51 = arith.constant 0 : index
    %c0_52 = arith.constant 0 : index
    %82 = vector.load %arg3[%c2, %c0_51, %c0_52] : memref<4x128x1xf32, #tpu.memory_space<vmem>>, vector<1x128x1xf32>
    %83 = vector.shape_cast %82 : vector<1x128x1xf32> to vector<128x1xf32>
    %c2_53 = arith.constant 2 : index
    %c0_54 = arith.constant 0 : index
    %c0_55 = arith.constant 0 : index
    %84 = vector.load %arg4[%c2_53, %c0_54, %c0_55] : memref<4x1x128xf32, #tpu.memory_space<vmem>>, vector<1x1x128xf32>
    %85 = vector.shape_cast %84 : vector<1x1x128xf32> to vector<1x128xf32>
    %86 = vector.broadcast %83 : vector<128x1xf32> to vector<128x128xf32>
    %87 = vector.broadcast %85 : vector<1x128xf32> to vector<128x128xf32>
    %88 = arith.addf %86, %87 : vector<128x128xf32>
    %cst_56 = arith.constant 2.000000e-01 : f32
    %89 = vector.broadcast %cst_56 : f32 to vector<128x128xf32>
    %90 = arith.mulf %89, %88 : vector<128x128xf32>
    %91 = arith.maximumf %88, %90 : vector<128x128xf32>
    %92 = arith.addf %91, %9 : vector<128x128xf32>
    %c2_57 = arith.constant 2 : index
    %c0_58 = arith.constant 0 : index
    %c0_59 = arith.constant 0 : index
    %93 = vector.load %arg9[%c2_57, %c0_58, %c0_59] : memref<4x1x128xf32, #tpu.memory_space<vmem>>, vector<1x1x128xf32>
    %94 = vector.shape_cast %93 : vector<1x1x128xf32> to vector<1x128xf32>
    %cst_60 = arith.constant dense<0xFF800000> : vector<128xf32>
    %95 = vector.multi_reduction <maximumf>, %92, %cst_60 [0] : vector<128x128xf32> to vector<128xf32>
    %96 = vector.shape_cast %95 : vector<128xf32> to vector<1x128xf32>
    %97 = arith.maximumf %94, %96 : vector<1x128xf32>
    %98 = arith.subf %94, %97 : vector<1x128xf32>
    %99 = math.exp %98 : vector<1x128xf32>
    %100 = vector.broadcast %97 : vector<1x128xf32> to vector<128x128xf32>
    %101 = arith.subf %92, %100 : vector<128x128xf32>
    %102 = math.exp %101 : vector<128x128xf32>
    %103 = arith.truncf %102 : vector<128x128xf32> to vector<128x128xbf16>
    %c2_61 = arith.constant 2 : index
    %c0_62 = arith.constant 0 : index
    %c0_63 = arith.constant 0 : index
    %104 = vector.load %arg10[%c2_61, %c0_62, %c0_63] : memref<4x9x128xf32, #tpu.memory_space<vmem>>, vector<1x9x128xf32>
    %105 = vector.shape_cast %104 : vector<1x9x128xf32> to vector<9x128xf32>
    %106 = vector.broadcast %99 : vector<1x128xf32> to vector<9x128xf32>
    %107 = arith.mulf %106, %105 : vector<9x128xf32>
    %c2_64 = arith.constant 2 : index
    %c0_65 = arith.constant 0 : index
    %c0_66 = arith.constant 0 : index
    %108 = vector.load %arg5[%c2_64, %c0_65, %c0_66] : memref<4x9x128xbf16, #tpu.memory_space<vmem>>, vector<1x9x128xbf16>
    %109 = vector.shape_cast %108 : vector<1x9x128xbf16> to vector<9x128xbf16>
    %cst_67 = arith.constant dense<0.000000e+00> : vector<9x128xf32>
    %110 = tpu.matmul %109, %103, %cst_67 {dimension_numbers = #tpu.dot_dimension_numbers<[1], [0], [0], [1], [0, 0, 1, 1], [], []>} : vector<9x128xbf16>, vector<128x128xbf16>, vector<9x128xf32> -> vector<9x128xf32>
    %111 = arith.addf %107, %110 : vector<9x128xf32>
    %c2_68 = arith.constant 2 : index
    %c0_69 = arith.constant 0 : index
    %c0_70 = arith.constant 0 : index
    %112 = vector.load %arg10[%c2_68, %c0_69, %c0_70] : memref<4x9x128xf32, #tpu.memory_space<vmem>>, vector<1x9x128xf32>
    %113 = vector.shape_cast %112 : vector<1x9x128xf32> to vector<9x128xf32>
    %114 = vector.shape_cast %111 : vector<9x128xf32> to vector<1x9x128xf32>
    tpu.vector_store %arg10[%c2_68, %c0_69, %c0_70], %114 {strides = array<i32>} : memref<4x9x128xf32, #tpu.memory_space<vmem>>, vector<1x9x128xf32>,
    %c2_71 = arith.constant 2 : index
    %c0_72 = arith.constant 0 : index
    %c0_73 = arith.constant 0 : index
    %115 = vector.load %arg9[%c2_71, %c0_72, %c0_73] : memref<4x1x128xf32, #tpu.memory_space<vmem>>, vector<1x1x128xf32>
    %116 = vector.shape_cast %115 : vector<1x1x128xf32> to vector<1x128xf32>
    %117 = vector.shape_cast %97 : vector<1x128xf32> to vector<1x1x128xf32>
    tpu.vector_store %arg9[%c2_71, %c0_72, %c0_73], %117 {strides = array<i32>} : memref<4x1x128xf32, #tpu.memory_space<vmem>>, vector<1x1x128xf32>,
    %c3 = arith.constant 3 : index
    %c0_74 = arith.constant 0 : index
    %c0_75 = arith.constant 0 : index
    %118 = vector.load %arg3[%c3, %c0_74, %c0_75] : memref<4x128x1xf32, #tpu.memory_space<vmem>>, vector<1x128x1xf32>
    %119 = vector.shape_cast %118 : vector<1x128x1xf32> to vector<128x1xf32>
    %c3_76 = arith.constant 3 : index
    %c0_77 = arith.constant 0 : index
    %c0_78 = arith.constant 0 : index
    %120 = vector.load %arg4[%c3_76, %c0_77, %c0_78] : memref<4x1x128xf32, #tpu.memory_space<vmem>>, vector<1x1x128xf32>
    %121 = vector.shape_cast %120 : vector<1x1x128xf32> to vector<1x128xf32>
    %122 = vector.broadcast %119 : vector<128x1xf32> to vector<128x128xf32>
    %123 = vector.broadcast %121 : vector<1x128xf32> to vector<128x128xf32>
    %124 = arith.addf %122, %123 : vector<128x128xf32>
    %cst_79 = arith.constant 2.000000e-01 : f32
    %125 = vector.broadcast %cst_79 : f32 to vector<128x128xf32>
    %126 = arith.mulf %125, %124 : vector<128x128xf32>
    %127 = arith.maximumf %124, %126 : vector<128x128xf32>
    %128 = arith.addf %127, %9 : vector<128x128xf32>
    %c3_80 = arith.constant 3 : index
    %c0_81 = arith.constant 0 : index
    %c0_82 = arith.constant 0 : index
    %129 = vector.load %arg9[%c3_80, %c0_81, %c0_82] : memref<4x1x128xf32, #tpu.memory_space<vmem>>, vector<1x1x128xf32>
    %130 = vector.shape_cast %129 : vector<1x1x128xf32> to vector<1x128xf32>
    %cst_83 = arith.constant dense<0xFF800000> : vector<128xf32>
    %131 = vector.multi_reduction <maximumf>, %128, %cst_83 [0] : vector<128x128xf32> to vector<128xf32>
    %132 = vector.shape_cast %131 : vector<128xf32> to vector<1x128xf32>
    %133 = arith.maximumf %130, %132 : vector<1x128xf32>
    %134 = arith.subf %130, %133 : vector<1x128xf32>
    %135 = math.exp %134 : vector<1x128xf32>
    %136 = vector.broadcast %133 : vector<1x128xf32> to vector<128x128xf32>
    %137 = arith.subf %128, %136 : vector<128x128xf32>
    %138 = math.exp %137 : vector<128x128xf32>
    %139 = arith.truncf %138 : vector<128x128xf32> to vector<128x128xbf16>
    %c3_84 = arith.constant 3 : index
    %c0_85 = arith.constant 0 : index
    %c0_86 = arith.constant 0 : index
    %140 = vector.load %arg10[%c3_84, %c0_85, %c0_86] : memref<4x9x128xf32, #tpu.memory_space<vmem>>, vector<1x9x128xf32>
    %141 = vector.shape_cast %140 : vector<1x9x128xf32> to vector<9x128xf32>
    %142 = vector.broadcast %135 : vector<1x128xf32> to vector<9x128xf32>
    %143 = arith.mulf %142, %141 : vector<9x128xf32>
    %c3_87 = arith.constant 3 : index
    %c0_88 = arith.constant 0 : index
    %c0_89 = arith.constant 0 : index
    %144 = vector.load %arg5[%c3_87, %c0_88, %c0_89] : memref<4x9x128xbf16, #tpu.memory_space<vmem>>, vector<1x9x128xbf16>
    %145 = vector.shape_cast %144 : vector<1x9x128xbf16> to vector<9x128xbf16>
    %cst_90 = arith.constant dense<0.000000e+00> : vector<9x128xf32>
    %146 = tpu.matmul %145, %139, %cst_90 {dimension_numbers = #tpu.dot_dimension_numbers<[1], [0], [0], [1], [0, 0, 1, 1], [], []>} : vector<9x128xbf16>, vector<128x128xbf16>, vector<9x128xf32> -> vector<9x128xf32>
    %147 = arith.addf %143, %146 : vector<9x128xf32>
    %c3_91 = arith.constant 3 : index
    %c0_92 = arith.constant 0 : index
    %c0_93 = arith.constant 0 : index
    %148 = vector.load %arg10[%c3_91, %c0_92, %c0_93] : memref<4x9x128xf32, #tpu.memory_space<vmem>>, vector<1x9x128xf32>
    %149 = vector.shape_cast %148 : vector<1x9x128xf32> to vector<9x128xf32>
    %150 = vector.shape_cast %147 : vector<9x128xf32> to vector<1x9x128xf32>
    tpu.vector_store %arg10[%c3_91, %c0_92, %c0_93], %150 {strides = array<i32>} : memref<4x9x128xf32, #tpu.memory_space<vmem>>, vector<1x9x128xf32>,
    %c3_94 = arith.constant 3 : index
    %c0_95 = arith.constant 0 : index
    %c0_96 = arith.constant 0 : index
    %151 = vector.load %arg9[%c3_94, %c0_95, %c0_96] : memref<4x1x128xf32, #tpu.memory_space<vmem>>, vector<1x1x128xf32>
    %152 = vector.shape_cast %151 : vector<1x1x128xf32> to vector<1x128xf32>
    %153 = vector.shape_cast %133 : vector<1x128xf32> to vector<1x1x128xf32>
    tpu.vector_store %arg9[%c3_94, %c0_95, %c0_96], %153 {strides = array<i32>} : memref<4x1x128xf32, #tpu.memory_space<vmem>>, vector<1x1x128xf32>,
    %c1_i32 = arith.constant 1 : i32
    %154 = arith.cmpi eq, %arg1, %c1_i32 : i32
    %155 = arith.extui %154 : i1 to i32
    %c0_i32_97 = arith.constant 0 : i32
    %156 = arith.cmpi ne, %155, %c0_i32_97 : i32
    scf.if %156 {
      %c0_98 = arith.constant 0 : index
      %c0_99 = arith.constant 0 : index
      %c0_100 = arith.constant 0 : index
      %157 = vector.load %arg10[%c0_98, %c0_99, %c0_100] : memref<4x9x128xf32, #tpu.memory_space<vmem>>, vector<1x9x128xf32>
      %158 = vector.shape_cast %157 : vector<1x9x128xf32> to vector<9x128xf32>
      %159 = vector.extract_strided_slice %158 {offsets = [8, 0], sizes = [1, 128], strides = [1, 1]} : vector<9x128xf32> to vector<1x128xf32>
      %cst_101 = arith.constant 9.99999968E-21 : f32
      %160 = vector.broadcast %cst_101 : f32 to vector<1x128xf32>
      %161 = arith.maximumf %159, %160 : vector<1x128xf32>
      %162 = tpu.reciprocal %161 {approx = true} : vector<1x128xf32> -> vector<1x128xf32>
      %163 = vector.extract_strided_slice %158 {offsets = [0, 0], sizes = [8, 128], strides = [1, 1]} : vector<9x128xf32> to vector<8x128xf32>
      %164 = vector.broadcast %162 : vector<1x128xf32> to vector<8x128xf32>
      %165 = arith.mulf %163, %164 : vector<8x128xf32>
      %c0_102 = arith.constant 0 : index
      %c0_103 = arith.constant 0 : index
      %c0_104 = arith.constant 0 : index
      %166 = vector.load %arg6[%c0_102, %c0_103, %c0_104] : memref<4x8x1xf32, #tpu.memory_space<vmem>>, vector<1x8x1xf32>
      %167 = vector.shape_cast %166 : vector<1x8x1xf32> to vector<8x1xf32>
      %168 = vector.broadcast %167 : vector<8x1xf32> to vector<8x128xf32>
      %169 = arith.mulf %165, %168 : vector<8x128xf32>
      %c0_105 = arith.constant 0 : index
      %c0_106 = arith.constant 0 : index
      %c0_107 = arith.constant 0 : index
      %170 = vector.load %arg7[%c0_105, %c0_106, %c0_107] : memref<4x8x1xf32, #tpu.memory_space<vmem>>, vector<1x8x1xf32>
      %171 = vector.shape_cast %170 : vector<1x8x1xf32> to vector<8x1xf32>
      %172 = vector.broadcast %171 : vector<8x1xf32> to vector<8x128xf32>
      %173 = arith.addf %169, %172 : vector<8x128xf32>
      %cst_108 = arith.constant 0.000000e+00 : f32
      %174 = vector.broadcast %cst_108 : f32 to vector<8x128xf32>
      %175 = arith.cmpf ogt, %173, %174 : vector<8x128xf32>
      %cst_109 = arith.constant 0.000000e+00 : f32
      %176 = vector.broadcast %cst_109 : f32 to vector<8x128xf32>
      %177 = arith.minimumf %173, %176 : vector<8x128xf32>
      %178 = math.exp %177 : vector<8x128xf32>
      %cst_110 = arith.constant 1.000000e+00 : f32
      %179 = vector.broadcast %cst_110 : f32 to vector<8x128xf32>
      %180 = arith.subf %178, %179 : vector<8x128xf32>
      %181 = arith.select %175, %173, %180 : vector<8x128xi1>, vector<8x128xf32>
      %c0_111 = arith.constant 0 : index
      %c0_112 = arith.constant 0 : index
      %c0_113 = arith.constant 0 : index
      %182 = vector.load %arg8[%c0_111, %c0_112, %c0_113] : memref<4x8x128xf32, #tpu.memory_space<vmem>>, vector<1x8x128xf32>
      %183 = vector.shape_cast %182 : vector<1x8x128xf32> to vector<8x128xf32>
      %184 = vector.shape_cast %181 : vector<8x128xf32> to vector<1x8x128xf32>
      tpu.vector_store %arg8[%c0_111, %c0_112, %c0_113], %184 {strides = array<i32>} : memref<4x8x128xf32, #tpu.memory_space<vmem>>, vector<1x8x128xf32>,
      %c1_114 = arith.constant 1 : index
      %c0_115 = arith.constant 0 : index
      %c0_116 = arith.constant 0 : index
      %185 = vector.load %arg10[%c1_114, %c0_115, %c0_116] : memref<4x9x128xf32, #tpu.memory_space<vmem>>, vector<1x9x128xf32>
      %186 = vector.shape_cast %185 : vector<1x9x128xf32> to vector<9x128xf32>
      %187 = vector.extract_strided_slice %186 {offsets = [8, 0], sizes = [1, 128], strides = [1, 1]} : vector<9x128xf32> to vector<1x128xf32>
      %cst_117 = arith.constant 9.99999968E-21 : f32
      %188 = vector.broadcast %cst_117 : f32 to vector<1x128xf32>
      %189 = arith.maximumf %187, %188 : vector<1x128xf32>
      %190 = tpu.reciprocal %189 {approx = true} : vector<1x128xf32> -> vector<1x128xf32>
      %191 = vector.extract_strided_slice %186 {offsets = [0, 0], sizes = [8, 128], strides = [1, 1]} : vector<9x128xf32> to vector<8x128xf32>
      %192 = vector.broadcast %190 : vector<1x128xf32> to vector<8x128xf32>
      %193 = arith.mulf %191, %192 : vector<8x128xf32>
      %c1_118 = arith.constant 1 : index
      %c0_119 = arith.constant 0 : index
      %c0_120 = arith.constant 0 : index
      %194 = vector.load %arg6[%c1_118, %c0_119, %c0_120] : memref<4x8x1xf32, #tpu.memory_space<vmem>>, vector<1x8x1xf32>
      %195 = vector.shape_cast %194 : vector<1x8x1xf32> to vector<8x1xf32>
      %196 = vector.broadcast %195 : vector<8x1xf32> to vector<8x128xf32>
      %197 = arith.mulf %193, %196 : vector<8x128xf32>
      %c1_121 = arith.constant 1 : index
      %c0_122 = arith.constant 0 : index
      %c0_123 = arith.constant 0 : index
      %198 = vector.load %arg7[%c1_121, %c0_122, %c0_123] : memref<4x8x1xf32, #tpu.memory_space<vmem>>, vector<1x8x1xf32>
      %199 = vector.shape_cast %198 : vector<1x8x1xf32> to vector<8x1xf32>
      %200 = vector.broadcast %199 : vector<8x1xf32> to vector<8x128xf32>
      %201 = arith.addf %197, %200 : vector<8x128xf32>
      %cst_124 = arith.constant 0.000000e+00 : f32
      %202 = vector.broadcast %cst_124 : f32 to vector<8x128xf32>
      %203 = arith.cmpf ogt, %201, %202 : vector<8x128xf32>
      %cst_125 = arith.constant 0.000000e+00 : f32
      %204 = vector.broadcast %cst_125 : f32 to vector<8x128xf32>
      %205 = arith.minimumf %201, %204 : vector<8x128xf32>
      %206 = math.exp %205 : vector<8x128xf32>
      %cst_126 = arith.constant 1.000000e+00 : f32
      %207 = vector.broadcast %cst_126 : f32 to vector<8x128xf32>
      %208 = arith.subf %206, %207 : vector<8x128xf32>
      %209 = arith.select %203, %201, %208 : vector<8x128xi1>, vector<8x128xf32>
      %c1_127 = arith.constant 1 : index
      %c0_128 = arith.constant 0 : index
      %c0_129 = arith.constant 0 : index
      %210 = vector.load %arg8[%c1_127, %c0_128, %c0_129] : memref<4x8x128xf32, #tpu.memory_space<vmem>>, vector<1x8x128xf32>
      %211 = vector.shape_cast %210 : vector<1x8x128xf32> to vector<8x128xf32>
      %212 = vector.shape_cast %209 : vector<8x128xf32> to vector<1x8x128xf32>
      tpu.vector_store %arg8[%c1_127, %c0_128, %c0_129], %212 {strides = array<i32>} : memref<4x8x128xf32, #tpu.memory_space<vmem>>, vector<1x8x128xf32>,
      %c2_130 = arith.constant 2 : index
      %c0_131 = arith.constant 0 : index
      %c0_132 = arith.constant 0 : index
      %213 = vector.load %arg10[%c2_130, %c0_131, %c0_132] : memref<4x9x128xf32, #tpu.memory_space<vmem>>, vector<1x9x128xf32>
      %214 = vector.shape_cast %213 : vector<1x9x128xf32> to vector<9x128xf32>
      %215 = vector.extract_strided_slice %214 {offsets = [8, 0], sizes = [1, 128], strides = [1, 1]} : vector<9x128xf32> to vector<1x128xf32>
      %cst_133 = arith.constant 9.99999968E-21 : f32
      %216 = vector.broadcast %cst_133 : f32 to vector<1x128xf32>
      %217 = arith.maximumf %215, %216 : vector<1x128xf32>
      %218 = tpu.reciprocal %217 {approx = true} : vector<1x128xf32> -> vector<1x128xf32>
      %219 = vector.extract_strided_slice %214 {offsets = [0, 0], sizes = [8, 128], strides = [1, 1]} : vector<9x128xf32> to vector<8x128xf32>
      %220 = vector.broadcast %218 : vector<1x128xf32> to vector<8x128xf32>
      %221 = arith.mulf %219, %220 : vector<8x128xf32>
      %c2_134 = arith.constant 2 : index
      %c0_135 = arith.constant 0 : index
      %c0_136 = arith.constant 0 : index
      %222 = vector.load %arg6[%c2_134, %c0_135, %c0_136] : memref<4x8x1xf32, #tpu.memory_space<vmem>>, vector<1x8x1xf32>
      %223 = vector.shape_cast %222 : vector<1x8x1xf32> to vector<8x1xf32>
      %224 = vector.broadcast %223 : vector<8x1xf32> to vector<8x128xf32>
      %225 = arith.mulf %221, %224 : vector<8x128xf32>
      %c2_137 = arith.constant 2 : index
      %c0_138 = arith.constant 0 : index
      %c0_139 = arith.constant 0 : index
      %226 = vector.load %arg7[%c2_137, %c0_138, %c0_139] : memref<4x8x1xf32, #tpu.memory_space<vmem>>, vector<1x8x1xf32>
      %227 = vector.shape_cast %226 : vector<1x8x1xf32> to vector<8x1xf32>
      %228 = vector.broadcast %227 : vector<8x1xf32> to vector<8x128xf32>
      %229 = arith.addf %225, %228 : vector<8x128xf32>
      %cst_140 = arith.constant 0.000000e+00 : f32
      %230 = vector.broadcast %cst_140 : f32 to vector<8x128xf32>
      %231 = arith.cmpf ogt, %229, %230 : vector<8x128xf32>
      %cst_141 = arith.constant 0.000000e+00 : f32
      %232 = vector.broadcast %cst_141 : f32 to vector<8x128xf32>
      %233 = arith.minimumf %229, %232 : vector<8x128xf32>
      %234 = math.exp %233 : vector<8x128xf32>
      %cst_142 = arith.constant 1.000000e+00 : f32
      %235 = vector.broadcast %cst_142 : f32 to vector<8x128xf32>
      %236 = arith.subf %234, %235 : vector<8x128xf32>
      %237 = arith.select %231, %229, %236 : vector<8x128xi1>, vector<8x128xf32>
      %c2_143 = arith.constant 2 : index
      %c0_144 = arith.constant 0 : index
      %c0_145 = arith.constant 0 : index
      %238 = vector.load %arg8[%c2_143, %c0_144, %c0_145] : memref<4x8x128xf32, #tpu.memory_space<vmem>>, vector<1x8x128xf32>
      %239 = vector.shape_cast %238 : vector<1x8x128xf32> to vector<8x128xf32>
      %240 = vector.shape_cast %237 : vector<8x128xf32> to vector<1x8x128xf32>
      tpu.vector_store %arg8[%c2_143, %c0_144, %c0_145], %240 {strides = array<i32>} : memref<4x8x128xf32, #tpu.memory_space<vmem>>, vector<1x8x128xf32>,
      %c3_146 = arith.constant 3 : index
      %c0_147 = arith.constant 0 : index
      %c0_148 = arith.constant 0 : index
      %241 = vector.load %arg10[%c3_146, %c0_147, %c0_148] : memref<4x9x128xf32, #tpu.memory_space<vmem>>, vector<1x9x128xf32>
      %242 = vector.shape_cast %241 : vector<1x9x128xf32> to vector<9x128xf32>
      %243 = vector.extract_strided_slice %242 {offsets = [8, 0], sizes = [1, 128], strides = [1, 1]} : vector<9x128xf32> to vector<1x128xf32>
      %cst_149 = arith.constant 9.99999968E-21 : f32
      %244 = vector.broadcast %cst_149 : f32 to vector<1x128xf32>
      %245 = arith.maximumf %243, %244 : vector<1x128xf32>
      %246 = tpu.reciprocal %245 {approx = true} : vector<1x128xf32> -> vector<1x128xf32>
      %247 = vector.extract_strided_slice %242 {offsets = [0, 0], sizes = [8, 128], strides = [1, 1]} : vector<9x128xf32> to vector<8x128xf32>
      %248 = vector.broadcast %246 : vector<1x128xf32> to vector<8x128xf32>
      %249 = arith.mulf %247, %248 : vector<8x128xf32>
      %c3_150 = arith.constant 3 : index
      %c0_151 = arith.constant 0 : index
      %c0_152 = arith.constant 0 : index
      %250 = vector.load %arg6[%c3_150, %c0_151, %c0_152] : memref<4x8x1xf32, #tpu.memory_space<vmem>>, vector<1x8x1xf32>
      %251 = vector.shape_cast %250 : vector<1x8x1xf32> to vector<8x1xf32>
      %252 = vector.broadcast %251 : vector<8x1xf32> to vector<8x128xf32>
      %253 = arith.mulf %249, %252 : vector<8x128xf32>
      %c3_153 = arith.constant 3 : index
      %c0_154 = arith.constant 0 : index
      %c0_155 = arith.constant 0 : index
      %254 = vector.load %arg7[%c3_153, %c0_154, %c0_155] : memref<4x8x1xf32, #tpu.memory_space<vmem>>, vector<1x8x1xf32>
      %255 = vector.shape_cast %254 : vector<1x8x1xf32> to vector<8x1xf32>
      %256 = vector.broadcast %255 : vector<8x1xf32> to vector<8x128xf32>
      %257 = arith.addf %253, %256 : vector<8x128xf32>
      %cst_156 = arith.constant 0.000000e+00 : f32
      %258 = vector.broadcast %cst_156 : f32 to vector<8x128xf32>
      %259 = arith.cmpf ogt, %257, %258 : vector<8x128xf32>
      %cst_157 = arith.constant 0.000000e+00 : f32
      %260 = vector.broadcast %cst_157 : f32 to vector<8x128xf32>
      %261 = arith.minimumf %257, %260 : vector<8x128xf32>
      %262 = math.exp %261 : vector<8x128xf32>
      %cst_158 = arith.constant 1.000000e+00 : f32
      %263 = vector.broadcast %cst_158 : f32 to vector<8x128xf32>
      %264 = arith.subf %262, %263 : vector<8x128xf32>
      %265 = arith.select %259, %257, %264 : vector<8x128xi1>, vector<8x128xf32>
      %c3_159 = arith.constant 3 : index
      %c0_160 = arith.constant 0 : index
      %c0_161 = arith.constant 0 : index
      %266 = vector.load %arg8[%c3_159, %c0_160, %c0_161] : memref<4x8x128xf32, #tpu.memory_space<vmem>>, vector<1x8x128xf32>
      %267 = vector.shape_cast %266 : vector<1x8x128xf32> to vector<8x128xf32>
      %268 = vector.shape_cast %265 : vector<8x128xf32> to vector<1x8x128xf32>
      tpu.vector_store %arg8[%c3_159, %c0_160, %c0_161], %268 {strides = array<i32>} : memref<4x8x128xf32, #tpu.memory_space<vmem>>, vector<1x8x128xf32>,
    } else {
    }
    return
  }
  func.func @transform_0(%arg0: i32, %arg1: i32) -> (i32, i32) {
    %c0_i32 = arith.constant 0 : i32
    return %arg1, %arg0 : i32, i32
  }
  func.func @transform_1(%arg0: i32, %arg1: i32) -> (i32, i32, i32) {
    %c0_i32 = arith.constant 0 : i32
    %c0_i32_0 = arith.constant 0 : i32
    %c0_i32_1 = arith.constant 0 : i32
    return %c0_i32, %arg1, %c0_i32_0 : i32, i32, i32
  }
  func.func @transform_2(%arg0: i32, %arg1: i32) -> (i32, i32, i32) {
    %c0_i32 = arith.constant 0 : i32
    %c0_i32_0 = arith.constant 0 : i32
    %c0_i32_1 = arith.constant 0 : i32
    return %c0_i32, %c0_i32_0, %arg0 : i32, i32, i32
  }
  func.func @transform_3(%arg0: i32, %arg1: i32) -> (i32, i32, i32) {
    %c0_i32 = arith.constant 0 : i32
    %c0_i32_0 = arith.constant 0 : i32
    %c0_i32_1 = arith.constant 0 : i32
    return %c0_i32, %c0_i32_0, %arg1 : i32, i32, i32
  }
  func.func @transform_4(%arg0: i32, %arg1: i32) -> (i32, i32, i32) {
    %c0_i32 = arith.constant 0 : i32
    %c0_i32_0 = arith.constant 0 : i32
    %c0_i32_1 = arith.constant 0 : i32
    %c0_i32_2 = arith.constant 0 : i32
    return %c0_i32, %c0_i32_0, %c0_i32_1 : i32, i32, i32
  }
  func.func @transform_5(%arg0: i32, %arg1: i32) -> (i32, i32, i32) {
    %c0_i32 = arith.constant 0 : i32
    %c0_i32_0 = arith.constant 0 : i32
    %c0_i32_1 = arith.constant 0 : i32
    %c0_i32_2 = arith.constant 0 : i32
    return %c0_i32, %c0_i32_0, %c0_i32_1 : i32, i32, i32
  }
  func.func @transform_6(%arg0: i32, %arg1: i32) -> (i32, i32, i32) {
    %c0_i32 = arith.constant 0 : i32
    %c0_i32_0 = arith.constant 0 : i32
    %c0_i32_1 = arith.constant 0 : i32
    return %c0_i32, %c0_i32_0, %arg0 : i32, i32, i32
  }
}

</mosaic_0001>

<llo_original>
// kernel: tpu_custom_call.1
$region0: #{tpu_custom_call.1}
  #allocation0 [shape = 'u32[]', space=smem, size = 0x4, offset = 0x4, fixed_abs, tag = 'smem constant byte address 0x4 - core index']
  #allocation1 [shape = 'u32[144,128]{1,0:T(1,128)}', space=vmem, size = 0x12000, scoped, tag = 'internal scratch']
  #allocation2 [shape = 'f32[4,1,128]{2,1,0:T(1,128)}', space=vmem, size = 0x800, scoped, tag = 'scratch operand']
  #allocation3 [shape = 'f32[4,9,128]{2,1,0:T(8,128)}', space=vmem, size = 0x8000, scoped, tag = 'scratch operand']
  %s0 = inlined_call_operand.vmem [shape: s8[256,256], index: 0, kind: input, shape index: {}]
  %s1 = inlined_call_operand.vmem [shape: f32[4,256,1], index: 1, kind: input, shape index: {}]
  %s2 = inlined_call_operand.vmem [shape: f32[4,1,256], index: 2, kind: input, shape index: {}]
  %s3 = inlined_call_operand.vmem [shape: bf16[4,9,256], index: 3, kind: input, shape index: {}]
  %s4 = inlined_call_operand.vmem [shape: f32[4,8,1], index: 4, kind: input, shape index: {}]
  %s5 = inlined_call_operand.vmem [shape: f32[4,8,1], index: 5, kind: input, shape index: {}]
  %s6 = inlined_call_operand.hbm [shape: f32[4,8,256], index: 6, kind: output, shape index: {}]
  %s7 = sld [smem:[#allocation0]]
  $region216: #{tpu_custom_call.1} parent=0
    _
  %s9 = ssub.s32 1, %s7
  %s10 = scalar_select 0, %s9, %s7
  $region1: #{tpu_custom_call.1} parent=0
    #allocation4 [shape = 'u8[32768]{0}', space=vmem, size = 0x8000, scoped, tag = 'input window, operand 0']
    #allocation5 [shape = 'u8[524288]{0}', space=vmem, size = 0x80000, scoped, tag = 'input window, operand 1']
    #allocation6 [shape = 'u8[4096]{0}', space=vmem, size = 0x1000, scoped, tag = 'input window, operand 2']
    #allocation7 [shape = 'u8[32768]{0}', space=vmem, size = 0x8000, scoped, tag = 'input window, operand 3']
    #allocation8 [shape = 'u8[32768]{0}', space=vmem, size = 0x8000, scoped, tag = 'output window, operand 0']
    #allocation9 [shape = 's32[2]{0}', space=sflag, size = 0x8, scoped, tag = 'scoped memory for tpu_custom_call.1']
    %11 = vsyncpa [#allocation9], 0
    %s12 = scalar_lea.sflag [#allocation9], 1
    %13 = vsyncpa %s12, 0
    loop: start=0, step=1, limit=6
    $region2: #{tpu_custom_call.1} parent=1 // loop_pre_header
      _
    $region3: #{tpu_custom_call.1} parent=1 // loop_header
      %s15 = sphi 0, %s19
      %p16 = scmp.ge.s32.totalorder %s15, 6
      %s22 = sphi 0, %s34
      %s23 = sphi 0, %s30
      %s24 = sphi 0, %s22
      %s25 = sphi 0, %s23
      %s26 = sphi 0, %s24
      %s27 = sphi 0, %s25
      %s39 = sphi 0, %s41
      %s42 = sphi 0, %s39
      %s43 = sphi 0, %s42
      %s59 = sphi 0, %s43
      %s65 = sphi 0, %s67
      %s68 = sphi 0, %s65
      %s69 = sphi 0, %s68
      %s85 = sphi 0, %s69
      %s91 = sphi 0, %s93
      %s94 = sphi 0, %s91
      %s95 = sphi 0, %s94
      %s111 = sphi 0, %s95
      %s117 = sphi 0, %s119
      %s120 = sphi 0, %s117
      %s121 = sphi 0, %s120
      %s137 = sphi 0, %s121
      %s141 = sphi 0, %s141
      %s143 = sphi 0, %s141
      %s144 = sphi 0, %s143
      %s158 = sphi 0, %s144
      %s162 = sphi 0, %s162
      %s164 = sphi 0, %s162
      %s165 = sphi 0, %s164
      %s179 = sphi 0, %s165
      %s185 = sphi 0, %s187
      %s188 = sphi 0, %s185
      %s189 = sphi 0, %s188
      %s205 = sphi 0, %s189
    $region4: #{tpu_custom_call.1} parent=1 // loop_header_branch
      %18 = sbr.rel (%p16) target = $region8
    $region5: #{tpu_custom_call.1} parent=1 // loop_body
      %s20 = ssub.s32 %s15, 1
      %s21 = ssub.s32 %s15, 2
      %s28 = sadd.s32 1, %s23
      %p29 = scmp.ge.s32.totalorder %s28, 2
      %s30 = scalar_select %p29, 0, %s28
      %s31 = sadd.s32 1, %s22
      %s32 = scalar_select %p29, %s31, %s22
      %p33 = scmp.ge.s32.totalorder %s32, 2
      %s34 = scalar_select %p33, 0, %s32
      %s35 = ssub.s32 %s23, %s30
      %s36 = ssub.s32 %s22, %s34
      %s37 = sor.u32 %s35, %s36
      %p38 = scmp.eq.s32.totalorder %s37, 0
      %s40 = sadd.s32 %s39, 1
      %s41 = scalar_select %p38, %s39, %s40
      %p44 = pneg %p38
      %p45 = scmp.eq.s32.totalorder %s15, 3
      %p46 = por %p44, %p45
      %p47 = scmp.ne.s32.totalorder %s39, %s42
      %p48 = scmp.eq.s32.totalorder %s15, 0
      %p49 = por %p47, %p48
      %p50 = scmp.ne.s32.totalorder %s39, %s42
      %p51 = scmp.eq.s32.totalorder %s20, 3
      %p52 = por %p50, %p51
      %p53 = scmp.ne.s32.totalorder %s42, %s43
      %p54 = scmp.eq.s32.totalorder %s20, 0
      %p55 = por %p53, %p54
      %p56 = scmp.ne.s32.totalorder %s42, %s43
      %p57 = scmp.eq.s32.totalorder %s21, 3
      %p58 = por %p56, %p57
      %p60 = scmp.ne.s32.totalorder %s43, %s59
      %p61 = scmp.eq.s32.totalorder %s21, 0
      %p62 = por %p60, %p61
      %s63 = ssub.s32 %s23, %s30
      %p64 = scmp.eq.s32.totalorder %s63, 0
      %s66 = sadd.s32 %s65, 1
      %s67 = scalar_select %p64, %s65, %s66
      %p70 = pneg %p64
      %p71 = scmp.eq.s32.totalorder %s15, 3
      %p72 = por %p70, %p71
      %p73 = scmp.ne.s32.totalorder %s65, %s68
      %p74 = scmp.eq.s32.totalorder %s15, 0
      %p75 = por %p73, %p74
      %p76 = scmp.ne.s32.totalorder %s65, %s68
      %p77 = scmp.eq.s32.totalorder %s20, 3
      %p78 = por %p76, %p77
      %p79 = scmp.ne.s32.totalorder %s68, %s69
      %p80 = scmp.eq.s32.totalorder %s20, 0
      %p81 = por %p79, %p80
      %p82 = scmp.ne.s32.totalorder %s68, %s69
      %p83 = scmp.eq.s32.totalorder %s21, 3
      %p84 = por %p82, %p83
      %p86 = scmp.ne.s32.totalorder %s69, %s85
      %p87 = scmp.eq.s32.totalorder %s21, 0
      %p88 = por %p86, %p87
      %s89 = ssub.s32 %s22, %s34
      %p90 = scmp.eq.s32.totalorder %s89, 0
      %s92 = sadd.s32 %s91, 1
      %s93 = scalar_select %p90, %s91, %s92
      %p96 = pneg %p90
      %p97 = scmp.eq.s32.totalorder %s15, 3
      %p98 = por %p96, %p97
      %p99 = scmp.ne.s32.totalorder %s91, %s94
      %p100 = scmp.eq.s32.totalorder %s15, 0
      %p101 = por %p99, %p100
      %p102 = scmp.ne.s32.totalorder %s91, %s94
      %p103 = scmp.eq.s32.totalorder %s20, 3
      %p104 = por %p102, %p103
      %p105 = scmp.ne.s32.totalorder %s94, %s95
      %p106 = scmp.eq.s32.totalorder %s20, 0
      %p107 = por %p105, %p106
      %p108 = scmp.ne.s32.totalorder %s94, %s95
      %p109 = scmp.eq.s32.totalorder %s21, 3
      %p110 = por %p108, %p109
      %p112 = scmp.ne.s32.totalorder %s95, %s111
      %p113 = scmp.eq.s32.totalorder %s21, 0
      %p114 = por %p112, %p113
      %s115 = ssub.s32 %s23, %s30
      %p116 = scmp.eq.s32.totalorder %s115, 0
      %s118 = sadd.s32 %s117, 1
      %s119 = scalar_select %p116, %s117, %s118
      %p122 = pneg %p116
      %p123 = scmp.eq.s32.totalorder %s15, 3
      %p124 = por %p122, %p123
      %p125 = scmp.ne.s32.totalorder %s117, %s120
      %p126 = scmp.eq.s32.totalorder %s15, 0
      %p127 = por %p125, %p126
      %p128 = scmp.ne.s32.totalorder %s117, %s120
      %p129 = scmp.eq.s32.totalorder %s20, 3
      %p130 = por %p128, %p129
      %p131 = scmp.ne.s32.totalorder %s120, %s121
      %p132 = scmp.eq.s32.totalorder %s20, 0
      %p133 = por %p131, %p132
      %p134 = scmp.ne.s32.totalorder %s120, %s121
      %p135 = scmp.eq.s32.totalorder %s21, 3
      %p136 = por %p134, %p135
      %p138 = scmp.ne.s32.totalorder %s121, %s137
      %p139 = scmp.eq.s32.totalorder %s21, 0
      %p140 = por %p138, %p139
      %s142 = sadd.s32 %s141, 1
      %p145 = scmp.eq.s32.totalorder %s15, 3
      %p146 = scmp.ne.s32.totalorder %s141, %s143
      %p147 = scmp.eq.s32.totalorder %s15, 0
      %p148 = por %p146, %p147
      %p149 = scmp.ne.s32.totalorder %s141, %s143
      %p150 = scmp.eq.s32.totalorder %s20, 3
      %p151 = por %p149, %p150
      %p152 = scmp.ne.s32.totalorder %s143, %s144
      %p153 = scmp.eq.s32.totalorder %s20, 0
      %p154 = por %p152, %p153
      %p155 = scmp.ne.s32.totalorder %s143, %s144
      %p156 = scmp.eq.s32.totalorder %s21, 3
      %p157 = por %p155, %p156
      %p159 = scmp.ne.s32.totalorder %s144, %s158
      %p160 = scmp.eq.s32.totalorder %s21, 0
      %p161 = por %p159, %p160
      %s163 = sadd.s32 %s162, 1
      %p166 = scmp.eq.s32.totalorder %s15, 3
      %p167 = scmp.ne.s32.totalorder %s162, %s164
      %p168 = scmp.eq.s32.totalorder %s15, 0
      %p169 = por %p167, %p168
      %p170 = scmp.ne.s32.totalorder %s162, %s164
      %p171 = scmp.eq.s32.totalorder %s20, 3
      %p172 = por %p170, %p171
      %p173 = scmp.ne.s32.totalorder %s164, %s165
      %p174 = scmp.eq.s32.totalorder %s20, 0
      %p175 = por %p173, %p174
      %p176 = scmp.ne.s32.totalorder %s164, %s165
      %p177 = scmp.eq.s32.totalorder %s21, 3
      %p178 = por %p176, %p177
      %p180 = scmp.ne.s32.totalorder %s165, %s179
      %p181 = scmp.eq.s32.totalorder %s21, 0
      %p182 = por %p180, %p181
      %s183 = ssub.s32 %s22, %s34
      %p184 = scmp.eq.s32.totalorder %s183, 0
      %s186 = sadd.s32 %s185, 1
      %s187 = scalar_select %p184, %s185, %s186
      %p190 = pneg %p184
      %p191 = scmp.eq.s32.totalorder %s15, 3
      %p192 = por %p190, %p191
      %p193 = scmp.ne.s32.totalorder %s185, %s188
      %p194 = scmp.eq.s32.totalorder %s15, 0
      %p195 = por %p193, %p194
      %p196 = scmp.ne.s32.totalorder %s185, %s188
      %p197 = scmp.eq.s32.totalorder %s20, 3
      %p198 = por %p196, %p197
      %p199 = scmp.ne.s32.totalorder %s188, %s189
      %p200 = scmp.eq.s32.totalorder %s20, 0
      %p201 = por %p199, %p200
      %p202 = scmp.ne.s32.totalorder %s188, %s189
      %p203 = scmp.eq.s32.totalorder %s21, 3
      %p204 = por %p202, %p203
      %p206 = scmp.ne.s32.totalorder %s189, %s205
      %p207 = scmp.eq.s32.totalorder %s21, 0
      %p208 = por %p206, %p207
      %p209 = scmp.le.s32.totalorder 1, %s15
      %p210 = scmp.lt.s32.totalorder %s15, 5
      %p211 = pnand %p209, %p210
      %p212 = pneg %p211
      // Predicated region
      $region9: #{tpu_custom_call.1} parent=5 // pred_check
        _
      $region10: #{tpu_custom_call.1} parent=5 // pred_check_branch
        %214 = sbr.rel (%p211) target = $region12
      $region11: #{tpu_custom_call.1} parent=5 // pred_region
        %s215 = ssub.s32 %s15, 1
        // Predicated region
        $region13: #{tpu_custom_call.1} parent=11 // pred_check
          %p216 = pneg %p154
        $region14: #{tpu_custom_call.1} parent=11 // pred_check_branch
          %218 = sbr.rel (%p216) target = $region16
        $region15: #{tpu_custom_call.1} parent=11 // pred_region
          _
        $region16: #{tpu_custom_call.1} parent=11 // pred_fallthru
          _
        // Predicated region
        $region17: #{tpu_custom_call.1} parent=11 // pred_check
          %p219 = pneg %p175
        $region18: #{tpu_custom_call.1} parent=11 // pred_check_branch
          %221 = sbr.rel (%p219) target = $region20
        $region19: #{tpu_custom_call.1} parent=11 // pred_region
          _
        $region20: #{tpu_custom_call.1} parent=11 // pred_fallthru
          _
      $region12: #{tpu_custom_call.1} parent=5 // pred_fallthru
        _
      %p222 = scmp.lt.s32.totalorder %s15, 4
      // Predicated region
      $region21: #{tpu_custom_call.1} parent=5 // pred_check
        %p223 = pneg %p222
      $region22: #{tpu_custom_call.1} parent=5 // pred_check_branch
        %225 = sbr.rel (%p223) target = $region24
      $region23: #{tpu_custom_call.1} parent=5 // pred_region
        // Predicated region
        $region25: #{tpu_custom_call.1} parent=23 // pred_check
          %p226 = pneg %p49
        $region26: #{tpu_custom_call.1} parent=23 // pred_check_branch
          %228 = sbr.rel (%p226) target = $region28
        $region27: #{tpu_custom_call.1} parent=23 // pred_region
          %s229 = sand.u32 %s39, 1
          %s230 = sand.u32 %s39, 1
          %s231 = smul.addr %s230, 32
          %s232 = scalar_lea.vmem [#allocation4], %s231
          %s233 = smul.u32 4, %s23
          %s234 = smul.addr %s233, 2
          %s235 = sadd.s32 %s22, %s234
          %s236 = smul.addr %s235, 8
          %s237 = scalar_lea.vmem %s0, %s236
          // Predicated region
          $region29: #{tpu_custom_call.1} parent=27 // pred_check
            _
          $region30: #{tpu_custom_call.1} parent=27 // pred_check_branch
            %239 = sbr.rel (0) target = $region32
          $region31: #{tpu_custom_call.1} parent=27 // pred_region
            // Predicated region
            $region33: #{tpu_custom_call.1} parent=31 // pred_check
              _
            $region34: #{tpu_custom_call.1} parent=31 // pred_check_branch
              %241 = sbr.rel (0) target = $region36
            $region35: #{tpu_custom_call.1} parent=31 // pred_region
              // Predicated region
              $region48: #{tpu_custom_call.1} parent=35 // pred_check
                _
              $region49: #{tpu_custom_call.1} parent=35 // pred_check_branch
                %263 = sbr.rel (0) target = $region51
              $region50: #{tpu_custom_call.1} parent=35 // pred_region
                loop: start=0, step=1, limit=1
                $region52: #{tpu_custom_call.1} parent=50 // loop_pre_header
                  _
                $region53: #{tpu_custom_call.1} parent=50 // loop_header
                  %s265 = sphi 0, %s269
                  %p266 = scmp.ge.s32.totalorder %s265, 1
                  %s270 = sphi %s237, %s237
                  %s271 = sphi %s232, %s232
                $region54: #{tpu_custom_call.1} parent=50 // loop_header_branch
                  %268 = sbr.rel (%p266) target = $region58
                $region55: #{tpu_custom_call.1} parent=50 // loop_body
                  %v272 = vld [vmem:[%s270] sm:$0xff]
                  %273 = vst [vmem:[%s271] sm:$0xff] %v272
                  %v274 = vld [vmem:[%s270 + $0x10] sm:$0xff]
                  %275 = vst [vmem:[%s271 + $0x8] sm:$0xff] %v274
                  %v276 = vld [vmem:[%s270 + $0x20] sm:$0xff]
                  %277 = vst [vmem:[%s271 + $0x10] sm:$0xff] %v276
                  %v278 = vld [vmem:[%s270 + $0x30] sm:$0xff]
                  %279 = vst [vmem:[%s271 + $0x18] sm:$0xff] %v278
                $region56: #{tpu_custom_call.1} parent=50 // loop_footer
                  %s269 = sadd.s32 1, %s265
                $region57: #{tpu_custom_call.1} parent=50 // loop_footer_branch
                  %264 = sbr.rel target = $region53
                $region58: #{tpu_custom_call.1} parent=50 // loop_exit
                  _
              $region51: #{tpu_custom_call.1} parent=35 // pred_fallthru
                _
              // Predicated region
              $region59: #{tpu_custom_call.1} parent=35 // pred_check
                _
              $region60: #{tpu_custom_call.1} parent=35 // pred_check_branch
                %281 = sbr.rel target = $region62
              $region61: #{tpu_custom_call.1} parent=35 // pred_region
                _
              $region62: #{tpu_custom_call.1} parent=35 // pred_fallthru
                _
            $region36: #{tpu_custom_call.1} parent=31 // pred_fallthru
              _
            // Predicated region
            $region37: #{tpu_custom_call.1} parent=31 // pred_check
              _
            $region38: #{tpu_custom_call.1} parent=31 // pred_check_branch
              %243 = sbr.rel target = $region40
            $region39: #{tpu_custom_call.1} parent=31 // pred_region
              %s245 = ssub.s32 256, 1
              loop: start=0, step=1, limit=1
              $region41: #{tpu_custom_call.1} parent=39 // loop_pre_header
                _
              $region42: #{tpu_custom_call.1} parent=39 // loop_header
                %s247 = sphi 0, %s251
                %p248 = scmp.ge.s32.totalorder %s247, 1
                %s252 = sphi %s237, %s237
                %s253 = sphi %s232, %s232
              $region43: #{tpu_custom_call.1} parent=39 // loop_header_branch
                %250 = sbr.rel (%p248) target = $region47
              $region44: #{tpu_custom_call.1} parent=39 // loop_body
                %v254 = vld [vmem:[%s252] sm:%s245]
                %255 = vst [vmem:[%s253] sm:%s245] %v254
                %v256 = vld [vmem:[%s252 + $0x10] sm:%s245]
                %257 = vst [vmem:[%s253 + $0x8] sm:%s245] %v256
                %v258 = vld [vmem:[%s252 + $0x20] sm:%s245]
                %259 = vst [vmem:[%s253 + $0x10] sm:%s245] %v258
                %v260 = vld [vmem:[%s252 + $0x30] sm:%s245]
                %261 = vst [vmem:[%s253 + $0x18] sm:%s245] %v260
              $region45: #{tpu_custom_call.1} parent=39 // loop_footer
                %s251 = sadd.s32 1, %s247
              $region46: #{tpu_custom_call.1} parent=39 // loop_footer_branch
                %246 = sbr.rel target = $region42
              $region47: #{tpu_custom_call.1} parent=39 // loop_exit
                _
            $region40: #{tpu_custom_call.1} parent=31 // pred_fallthru
              _
          $region32: #{tpu_custom_call.1} parent=27 // pred_fallthru
            _
          %282 = vnop
        $region28: #{tpu_custom_call.1} parent=23 // pred_fallthru
          _
        // Predicated region
        $region63: #{tpu_custom_call.1} parent=23 // pred_check
          %p283 = pneg %p75
        $region64: #{tpu_custom_call.1} parent=23 // pred_check_branch
          %285 = sbr.rel (%p283) target = $region66
        $region65: #{tpu_custom_call.1} parent=23 // pred_region
          %s286 = sand.u32 %s65, 1
          %s287 = sand.u32 %s65, 1
          %s288 = smul.addr %s287, 512
          %s289 = scalar_lea.vmem [#allocation5], %s288
          %s290 = smul.u32 16, %s23
          %s291 = smul.addr %s290, 8
          %s292 = scalar_lea.vmem %s1, %s291
          // Predicated region
          $region67: #{tpu_custom_call.1} parent=65 // pred_check
            _
          $region68: #{tpu_custom_call.1} parent=65 // pred_check_branch
            %294 = sbr.rel (0) target = $region70
          $region69: #{tpu_custom_call.1} parent=65 // pred_region
            // Predicated region
            $region71: #{tpu_custom_call.1} parent=69 // pred_check
              _
            $region72: #{tpu_custom_call.1} parent=69 // pred_check_branch
              %296 = sbr.rel (0) target = $region74
            $region73: #{tpu_custom_call.1} parent=69 // pred_region
              // Predicated region
              $region86: #{tpu_custom_call.1} parent=73 // pred_check
                _
              $region87: #{tpu_custom_call.1} parent=73 // pred_check_branch
                %438 = sbr.rel (0) target = $region89
              $region88: #{tpu_custom_call.1} parent=73 // pred_region
                loop: start=0, step=1, limit=1
                $region90: #{tpu_custom_call.1} parent=88 // loop_pre_header
                  _
                $region91: #{tpu_custom_call.1} parent=88 // loop_header
                  %s440 = sphi 0, %s444
                  %p441 = scmp.ge.s32.totalorder %s440, 1
                  %s445 = sphi %s292, %s292
                  %s446 = sphi %s289, %s289
                $region92: #{tpu_custom_call.1} parent=88 // loop_header_branch
                  %443 = sbr.rel (%p441) target = $region96
                $region93: #{tpu_custom_call.1} parent=88 // loop_body
                  %v447 = vld [vmem:[%s445] sm:$0xff]
                  %448 = vst [vmem:[%s446] sm:$0xff] %v447
                  %v449 = vld [vmem:[%s445 + $0x8] sm:$0xff]
                  %450 = vst [vmem:[%s446 + $0x8] sm:$0xff] %v449
                  %v451 = vld [vmem:[%s445 + $0x10] sm:$0xff]
                  %452 = vst [vmem:[%s446 + $0x10] sm:$0xff] %v451
                  %v453 = vld [vmem:[%s445 + $0x18] sm:$0xff]
                  %454 = vst [vmem:[%s446 + $0x18] sm:$0xff] %v453
                  %v455 = vld [vmem:[%s445 + $0x20] sm:$0xff]
                  %456 = vst [vmem:[%s446 + $0x20] sm:$0xff] %v455
                  %v457 = vld [vmem:[%s445 + $0x28] sm:$0xff]
                  %458 = vst [vmem:[%s446 + $0x28] sm:$0xff] %v457
                  %v459 = vld [vmem:[%s445 + $0x30] sm:$0xff]
                  %460 = vst [vmem:[%s446 + $0x30] sm:$0xff] %v459
                  %v461 = vld [vmem:[%s445 + $0x38] sm:$0xff]
                  %462 = vst [vmem:[%s446 + $0x38] sm:$0xff] %v461
                  %v463 = vld [vmem:[%s445 + $0x40] sm:$0xff]
                  %464 = vst [vmem:[%s446 + $0x40] sm:$0xff] %v463
                  %v465 = vld [vmem:[%s445 + $0x48] sm:$0xff]
                  %466 = vst [vmem:[%s446 + $0x48] sm:$0xff] %v465
                  %v467 = vld [vmem:[%s445 + $0x50] sm:$0xff]
                  %468 = vst [vmem:[%s446 + $0x50] sm:$0xff] %v467
                  %v469 = vld [vmem:[%s445 + $0x58] sm:$0xff]
                  %470 = vst [vmem:[%s446 + $0x58] sm:$0xff] %v469
                  %v471 = vld [vmem:[%s445 + $0x60] sm:$0xff]
                  %472 = vst [vmem:[%s446 + $0x60] sm:$0xff] %v471
                  %v473 = vld [vmem:[%s445 + $0x68] sm:$0xff]
                  %474 = vst [vmem:[%s446 + $0x68] sm:$0xff] %v473
                  %v475 = vld [vmem:[%s445 + $0x70] sm:$0xff]
                  %476 = vst [vmem:[%s446 + $0x70] sm:$0xff] %v475
                  %v477 = vld [vmem:[%s445 + $0x78] sm:$0xff]
                  %478 = vst [vmem:[%s446 + $0x78] sm:$0xff] %v477
                  %v479 = vld [vmem:[%s445 + $0x100] sm:$0xff]
                  %480 = vst [vmem:[%s446 + $0x80] sm:$0xff] %v479
                  %v481 = vld [vmem:[%s445 + $0x108] sm:$0xff]
                  %482 = vst [vmem:[%s446 + $0x88] sm:$0xff] %v481
                  %v483 = vld [vmem:[%s445 + $0x110] sm:$0xff]
                  %484 = vst [vmem:[%s446 + $0x90] sm:$0xff] %v483
                  %v485 = vld [vmem:[%s445 + $0x118] sm:$0xff]
                  %486 = vst [vmem:[%s446 + $0x98] sm:$0xff] %v485
                  %v487 = vld [vmem:[%s445 + $0x120] sm:$0xff]
                  %488 = vst [vmem:[%s446 + $0xa0] sm:$0xff] %v487
                  %v489 = vld [vmem:[%s445 + $0x128] sm:$0xff]
                  %490 = vst [vmem:[%s446 + $0xa8] sm:$0xff] %v489
                  %v491 = vld [vmem:[%s445 + $0x130] sm:$0xff]
                  %492 = vst [vmem:[%s446 + $0xb0] sm:$0xff] %v491
                  %v493 = vld [vmem:[%s445 + $0x138] sm:$0xff]
                  %494 = vst [vmem:[%s446 + $0xb8] sm:$0xff] %v493
                  %v495 = vld [vmem:[%s445 + $0x140] sm:$0xff]
                  %496 = vst [vmem:[%s446 + $0xc0] sm:$0xff] %v495
                  %v497 = vld [vmem:[%s445 + $0x148] sm:$0xff]
                  %498 = vst [vmem:[%s446 + $0xc8] sm:$0xff] %v497
                  %v499 = vld [vmem:[%s445 + $0x150] sm:$0xff]
                  %500 = vst [vmem:[%s446 + $0xd0] sm:$0xff] %v499
                  %v501 = vld [vmem:[%s445 + $0x158] sm:$0xff]
                  %502 = vst [vmem:[%s446 + $0xd8] sm:$0xff] %v501
                  %v503 = vld [vmem:[%s445 + $0x160] sm:$0xff]
                  %504 = vst [vmem:[%s446 + $0xe0] sm:$0xff] %v503
                  %v505 = vld [vmem:[%s445 + $0x168] sm:$0xff]
                  %506 = vst [vmem:[%s446 + $0xe8] sm:$0xff] %v505
                  %v507 = vld [vmem:[%s445 + $0x170] sm:$0xff]
                  %508 = vst [vmem:[%s446 + $0xf0] sm:$0xff] %v507
                  %v509 = vld [vmem:[%s445 + $0x178] sm:$0xff]
                  %510 = vst [vmem:[%s446 + $0xf8] sm:$0xff] %v509
                  %v511 = vld [vmem:[%s445 + $0x200] sm:$0xff]
                  %512 = vst [vmem:[%s446 + $0x100] sm:$0xff] %v511
                  %v513 = vld [vmem:[%s445 + $0x208] sm:$0xff]
                  %514 = vst [vmem:[%s446 + $0x108] sm:$0xff] %v513
                  %v515 = vld [vmem:[%s445 + $0x210] sm:$0xff]
                  %516 = vst [vmem:[%s446 + $0x110] sm:$0xff] %v515
                  %v517 = vld [vmem:[%s445 + $0x218] sm:$0xff]
                  %518 = vst [vmem:[%s446 + $0x118] sm:$0xff] %v517
                  %v519 = vld [vmem:[%s445 + $0x220] sm:$0xff]
                  %520 = vst [vmem:[%s446 + $0x120] sm:$0xff] %v519
                  %v521 = vld [vmem:[%s445 + $0x228] sm:$0xff]
                  %522 = vst [vmem:[%s446 + $0x128] sm:$0xff] %v521
                  %v523 = vld [vmem:[%s445 + $0x230] sm:$0xff]
                  %524 = vst [vmem:[%s446 + $0x130] sm:$0xff] %v523
                  %v525 = vld [vmem:[%s445 + $0x238] sm:$0xff]
                  %526 = vst [vmem:[%s446 + $0x138] sm:$0xff] %v525
                  %v527 = vld [vmem:[%s445 + $0x240] sm:$0xff]
                  %528 = vst [vmem:[%s446 + $0x140] sm:$0xff] %v527
                  %v529 = vld [vmem:[%s445 + $0x248] sm:$0xff]
                  %530 = vst [vmem:[%s446 + $0x148] sm:$0xff] %v529
                  %v531 = vld [vmem:[%s445 + $0x250] sm:$0xff]
                  %532 = vst [vmem:[%s446 + $0x150] sm:$0xff] %v531
                  %v533 = vld [vmem:[%s445 + $0x258] sm:$0xff]
                  %534 = vst [vmem:[%s446 + $0x158] sm:$0xff] %v533
                  %v535 = vld [vmem:[%s445 + $0x260] sm:$0xff]
                  %536 = vst [vmem:[%s446 + $0x160] sm:$0xff] %v535
                  %v537 = vld [vmem:[%s445 + $0x268] sm:$0xff]
                  %538 = vst [vmem:[%s446 + $0x168] sm:$0xff] %v537
                  %v539 = vld [vmem:[%s445 + $0x270] sm:$0xff]
                  %540 = vst [vmem:[%s446 + $0x170] sm:$0xff] %v539
                  %v541 = vld [vmem:[%s445 + $0x278] sm:$0xff]
                  %542 = vst [vmem:[%s446 + $0x178] sm:$0xff] %v541
                  %v543 = vld [vmem:[%s445 + $0x300] sm:$0xff]
                  %544 = vst [vmem:[%s446 + $0x180] sm:$0xff] %v543
                  %v545 = vld [vmem:[%s445 + $0x308] sm:$0xff]
                  %546 = vst [vmem:[%s446 + $0x188] sm:$0xff] %v545
                  %v547 = vld [vmem:[%s445 + $0x310] sm:$0xff]
                  %548 = vst [vmem:[%s446 + $0x190] sm:$0xff] %v547
                  %v549 = vld [vmem:[%s445 + $0x318] sm:$0xff]
                  %550 = vst [vmem:[%s446 + $0x198] sm:$0xff] %v549
                  %v551 = vld [vmem:[%s445 + $0x320] sm:$0xff]
                  %552 = vst [vmem:[%s446 + $0x1a0] sm:$0xff] %v551
                  %v553 = vld [vmem:[%s445 + $0x328] sm:$0xff]
                  %554 = vst [vmem:[%s446 + $0x1a8] sm:$0xff] %v553
                  %v555 = vld [vmem:[%s445 + $0x330] sm:$0xff]
                  %556 = vst [vmem:[%s446 + $0x1b0] sm:$0xff] %v555
                  %v557 = vld [vmem:[%s445 + $0x338] sm:$0xff]
                  %558 = vst [vmem:[%s446 + $0x1b8] sm:$0xff] %v557
                  %v559 = vld [vmem:[%s445 + $0x340] sm:$0xff]
                  %560 = vst [vmem:[%s446 + $0x1c0] sm:$0xff] %v559
                  %v561 = vld [vmem:[%s445 + $0x348] sm:$0xff]
                  %562 = vst [vmem:[%s446 + $0x1c8] sm:$0xff] %v561
                  %v563 = vld [vmem:[%s445 + $0x350] sm:$0xff]
                  %564 = vst [vmem:[%s446 + $0x1d0] sm:$0xff] %v563
                  %v565 = vld [vmem:[%s445 + $0x358] sm:$0xff]
                  %566 = vst [vmem:[%s446 + $0x1d8] sm:$0xff] %v565
                  %v567 = vld [vmem:[%s445 + $0x360] sm:$0xff]
                  %568 = vst [vmem:[%s446 + $0x1e0] sm:$0xff] %v567
                  %v569 = vld [vmem:[%s445 + $0x368] sm:$0xff]
                  %570 = vst [vmem:[%s446 + $0x1e8] sm:$0xff] %v569
                  %v571 = vld [vmem:[%s445 + $0x370] sm:$0xff]
                  %572 = vst [vmem:[%s446 + $0x1f0] sm:$0xff] %v571
                  %v573 = vld [vmem:[%s445 + $0x378] sm:$0xff]
                  %574 = vst [vmem:[%s446 + $0x1f8] sm:$0xff] %v573
                $region94: #{tpu_custom_call.1} parent=88 // loop_footer
                  %s444 = sadd.s32 1, %s440
                $region95: #{tpu_custom_call.1} parent=88 // loop_footer_branch
                  %439 = sbr.rel target = $region91
                $region96: #{tpu_custom_call.1} parent=88 // loop_exit
                  _
              $region89: #{tpu_custom_call.1} parent=73 // pred_fallthru
                _
              // Predicated region
              $region97: #{tpu_custom_call.1} parent=73 // pred_check
                _
              $region98: #{tpu_custom_call.1} parent=73 // pred_check_branch
                %576 = sbr.rel target = $region100
              $region99: #{tpu_custom_call.1} parent=73 // pred_region
                _
              $region100: #{tpu_custom_call.1} parent=73 // pred_fallthru
                _
            $region74: #{tpu_custom_call.1} parent=69 // pred_fallthru
              _
            // Predicated region
            $region75: #{tpu_custom_call.1} parent=69 // pred_check
              _
            $region76: #{tpu_custom_call.1} parent=69 // pred_check_branch
              %298 = sbr.rel target = $region78
            $region77: #{tpu_custom_call.1} parent=69 // pred_region
              %s300 = ssub.s32 256, 1
              loop: start=0, step=1, limit=1
              $region79: #{tpu_custom_call.1} parent=77 // loop_pre_header
                _
              $region80: #{tpu_custom_call.1} parent=77 // loop_header
                %s302 = sphi 0, %s306
                %p303 = scmp.ge.s32.totalorder %s302, 1
                %s307 = sphi %s292, %s292
                %s308 = sphi %s289, %s289
              $region81: #{tpu_custom_call.1} parent=77 // loop_header_branch
                %305 = sbr.rel (%p303) target = $region85
              $region82: #{tpu_custom_call.1} parent=77 // loop_body
                %v309 = vld [vmem:[%s307] sm:%s300]
                %310 = vst [vmem:[%s308] sm:%s300] %v309
                %v311 = vld [vmem:[%s307 + $0x8] sm:%s300]
                %312 = vst [vmem:[%s308 + $0x8] sm:%s300] %v311
                %v313 = vld [vmem:[%s307 + $0x10] sm:%s300]
                %314 = vst [vmem:[%s308 + $0x10] sm:%s300] %v313
                %v315 = vld [vmem:[%s307 + $0x18] sm:%s300]
                %316 = vst [vmem:[%s308 + $0x18] sm:%s300] %v315
                %v317 = vld [vmem:[%s307 + $0x20] sm:%s300]
                %318 = vst [vmem:[%s308 + $0x20] sm:%s300] %v317
                %v319 = vld [vmem:[%s307 + $0x28] sm:%s300]
                %320 = vst [vmem:[%s308 + $0x28] sm:%s300] %v319
                %v321 = vld [vmem:[%s307 + $0x30] sm:%s300]
                %322 = vst [vmem:[%s308 + $0x30] sm:%s300] %v321
                %v323 = vld [vmem:[%s307 + $0x38] sm:%s300]
                %324 = vst [vmem:[%s308 + $0x38] sm:%s300] %v323
                %v325 = vld [vmem:[%s307 + $0x40] sm:%s300]
                %326 = vst [vmem:[%s308 + $0x40] sm:%s300] %v325
                %v327 = vld [vmem:[%s307 + $0x48] sm:%s300]
                %328 = vst [vmem:[%s308 + $0x48] sm:%s300] %v327
                %v329 = vld [vmem:[%s307 + $0x50] sm:%s300]
                %330 = vst [vmem:[%s308 + $0x50] sm:%s300] %v329
                %v331 = vld [vmem:[%s307 + $0x58] sm:%s300]
                %332 = vst [vmem:[%s308 + $0x58] sm:%s300] %v331
                %v333 = vld [vmem:[%s307 + $0x60] sm:%s300]
                %334 = vst [vmem:[%s308 + $0x60] sm:%s300] %v333
                %v335 = vld [vmem:[%s307 + $0x68] sm:%s300]
                %336 = vst [vmem:[%s308 + $0x68] sm:%s300] %v335
                %v337 = vld [vmem:[%s307 + $0x70] sm:%s300]
                %338 = vst [vmem:[%s308 + $0x70] sm:%s300] %v337
                %v339 = vld [vmem:[%s307 + $0x78] sm:%s300]
                %340 = vst [vmem:[%s308 + $0x78] sm:%s300] %v339
                %v341 = vld [vmem:[%s307 + $0x100] sm:%s300]
                %342 = vst [vmem:[%s308 + $0x80] sm:%s300] %v341
                %v343 = vld [vmem:[%s307 + $0x108] sm:%s300]
                %344 = vst [vmem:[%s308 + $0x88] sm:%s300] %v343
                %v345 = vld [vmem:[%s307 + $0x110] sm:%s300]
                %346 = vst [vmem:[%s308 + $0x90] sm:%s300] %v345
                %v347 = vld [vmem:[%s307 + $0x118] sm:%s300]
                %348 = vst [vmem:[%s308 + $0x98] sm:%s300] %v347
                %v349 = vld [vmem:[%s307 + $0x120] sm:%s300]
                %350 = vst [vmem:[%s308 + $0xa0] sm:%s300] %v349
                %v351 = vld [vmem:[%s307 + $0x128] sm:%s300]
                %352 = vst [vmem:[%s308 + $0xa8] sm:%s300] %v351
                %v353 = vld [vmem:[%s307 + $0x130] sm:%s300]
                %354 = vst [vmem:[%s308 + $0xb0] sm:%s300] %v353
                %v355 = vld [vmem:[%s307 + $0x138] sm:%s300]
                %356 = vst [vmem:[%s308 + $0xb8] sm:%s300] %v355
                %v357 = vld [vmem:[%s307 + $0x140] sm:%s300]
                %358 = vst [vmem:[%s308 + $0xc0] sm:%s300] %v357
                %v359 = vld [vmem:[%s307 + $0x148] sm:%s300]
                %360 = vst [vmem:[%s308 + $0xc8] sm:%s300] %v359
                %v361 = vld [vmem:[%s307 + $0x150] sm:%s300]
                %362 = vst [vmem:[%s308 + $0xd0] sm:%s300] %v361
                %v363 = vld [vmem:[%s307 + $0x158] sm:%s300]
                %364 = vst [vmem:[%s308 + $0xd8] sm:%s300] %v363
                %v365 = vld [vmem:[%s307 + $0x160] sm:%s300]
                %366 = vst [vmem:[%s308 + $0xe0] sm:%s300] %v365
                %v367 = vld [vmem:[%s307 + $0x168] sm:%s300]
                %368 = vst [vmem:[%s308 + $0xe8] sm:%s300] %v367
                %v369 = vld [vmem:[%s307 + $0x170] sm:%s300]
                %370 = vst [vmem:[%s308 + $0xf0] sm:%s300] %v369
                %v371 = vld [vmem:[%s307 + $0x178] sm:%s300]
                %372 = vst [vmem:[%s308 + $0xf8] sm:%s300] %v371
                %v373 = vld [vmem:[%s307 + $0x200] sm:%s300]
                %374 = vst [vmem:[%s308 + $0x100] sm:%s300] %v373
                %v375 = vld [vmem:[%s307 + $0x208] sm:%s300]
                %376 = vst [vmem:[%s308 + $0x108] sm:%s300] %v375
                %v377 = vld [vmem:[%s307 + $0x210] sm:%s300]
                %378 = vst [vmem:[%s308 + $0x110] sm:%s300] %v377
                %v379 = vld [vmem:[%s307 + $0x218] sm:%s300]
                %380 = vst [vmem:[%s308 + $0x118] sm:%s300] %v379
                %v381 = vld [vmem:[%s307 + $0x220] sm:%s300]
                %382 = vst [vmem:[%s308 + $0x120] sm:%s300] %v381
                %v383 = vld [vmem:[%s307 + $0x228] sm:%s300]
                %384 = vst [vmem:[%s308 + $0x128] sm:%s300] %v383
                %v385 = vld [vmem:[%s307 + $0x230] sm:%s300]
                %386 = vst [vmem:[%s308 + $0x130] sm:%s300] %v385
                %v387 = vld [vmem:[%s307 + $0x238] sm:%s300]
                %388 = vst [vmem:[%s308 + $0x138] sm:%s300] %v387
                %v389 = vld [vmem:[%s307 + $0x240] sm:%s300]
                %390 = vst [vmem:[%s308 + $0x140] sm:%s300] %v389
                %v391 = vld [vmem:[%s307 + $0x248] sm:%s300]
                %392 = vst [vmem:[%s308 + $0x148] sm:%s300] %v391
                %v393 = vld [vmem:[%s307 + $0x250] sm:%s300]
                %394 = vst [vmem:[%s308 + $0x150] sm:%s300] %v393
                %v395 = vld [vmem:[%s307 + $0x258] sm:%s300]
                %396 = vst [vmem:[%s308 + $0x158] sm:%s300] %v395
                %v397 = vld [vmem:[%s307 + $0x260] sm:%s300]
                %398 = vst [vmem:[%s308 + $0x160] sm:%s300] %v397
                %v399 = vld [vmem:[%s307 + $0x268] sm:%s300]
                %400 = vst [vmem:[%s308 + $0x168] sm:%s300] %v399
                %v401 = vld [vmem:[%s307 + $0x270] sm:%s300]
                %402 = vst [vmem:[%s308 + $0x170] sm:%s300] %v401
                %v403 = vld [vmem:[%s307 + $0x278] sm:%s300]
                %404 = vst [vmem:[%s308 + $0x178] sm:%s300] %v403
                %v405 = vld [vmem:[%s307 + $0x300] sm:%s300]
                %406 = vst [vmem:[%s308 + $0x180] sm:%s300] %v405
                %v407 = vld [vmem:[%s307 + $0x308] sm:%s300]
                %408 = vst [vmem:[%s308 + $0x188] sm:%s300] %v407
                %v409 = vld [vmem:[%s307 + $0x310] sm:%s300]
                %410 = vst [vmem:[%s308 + $0x190] sm:%s300] %v409
                %v411 = vld [vmem:[%s307 + $0x318] sm:%s300]
                %412 = vst [vmem:[%s308 + $0x198] sm:%s300] %v411
                %v413 = vld [vmem:[%s307 + $0x320] sm:%s300]
                %414 = vst [vmem:[%s308 + $0x1a0] sm:%s300] %v413
                %v415 = vld [vmem:[%s307 + $0x328] sm:%s300]
                %416 = vst [vmem:[%s308 + $0x1a8] sm:%s300] %v415
                %v417 = vld [vmem:[%s307 + $0x330] sm:%s300]
                %418 = vst [vmem:[%s308 + $0x1b0] sm:%s300] %v417
                %v419 = vld [vmem:[%s307 + $0x338] sm:%s300]
                %420 = vst [vmem:[%s308 + $0x1b8] sm:%s300] %v419
                %v421 = vld [vmem:[%s307 + $0x340] sm:%s300]
                %422 = vst [vmem:[%s308 + $0x1c0] sm:%s300] %v421
                %v423 = vld [vmem:[%s307 + $0x348] sm:%s300]
                %424 = vst [vmem:[%s308 + $0x1c8] sm:%s300] %v423
                %v425 = vld [vmem:[%s307 + $0x350] sm:%s300]
                %426 = vst [vmem:[%s308 + $0x1d0] sm:%s300] %v425
                %v427 = vld [vmem:[%s307 + $0x358] sm:%s300]
                %428 = vst [vmem:[%s308 + $0x1d8] sm:%s300] %v427
                %v429 = vld [vmem:[%s307 + $0x360] sm:%s300]
                %430 = vst [vmem:[%s308 + $0x1e0] sm:%s300] %v429
                %v431 = vld [vmem:[%s307 + $0x368] sm:%s300]
                %432 = vst [vmem:[%s308 + $0x1e8] sm:%s300] %v431
                %v433 = vld [vmem:[%s307 + $0x370] sm:%s300]
                %434 = vst [vmem:[%s308 + $0x1f0] sm:%s300] %v433
                %v435 = vld [vmem:[%s307 + $0x378] sm:%s300]
                %436 = vst [vmem:[%s308 + $0x1f8] sm:%s300] %v435
              $region83: #{tpu_custom_call.1} parent=77 // loop_footer
                %s306 = sadd.s32 1, %s302
              $region84: #{tpu_custom_call.1} parent=77 // loop_footer_branch
                %301 = sbr.rel target = $region80
              $region85: #{tpu_custom_call.1} parent=77 // loop_exit
                _
            $region78: #{tpu_custom_call.1} parent=69 // pred_fallthru
              _
          $region70: #{tpu_custom_call.1} parent=65 // pred_fallthru
            _
          %577 = vnop
        $region66: #{tpu_custom_call.1} parent=23 // pred_fallthru
          _
        // Predicated region
        $region101: #{tpu_custom_call.1} parent=23 // pred_check
          %p578 = pneg %p101
        $region102: #{tpu_custom_call.1} parent=23 // pred_check_branch
          %580 = sbr.rel (%p578) target = $region104
        $region103: #{tpu_custom_call.1} parent=23 // pred_region
          %s581 = sand.u32 %s91, 1
          %s582 = sand.u32 %s91, 1
          %s583 = smul.addr %s582, 4
          %s584 = scalar_lea.vmem [#allocation6], %s583
          %s585 = scalar_lea.vmem %s2, %s22
          // Predicated region
          $region105: #{tpu_custom_call.1} parent=103 // pred_check
            _
          $region106: #{tpu_custom_call.1} parent=103 // pred_check_branch
            %587 = sbr.rel (0) target = $region108
          $region107: #{tpu_custom_call.1} parent=103 // pred_region
            // Predicated region
            $region109: #{tpu_custom_call.1} parent=107 // pred_check
              _
            $region110: #{tpu_custom_call.1} parent=107 // pred_check_branch
              %589 = sbr.rel target = $region112
            $region111: #{tpu_custom_call.1} parent=107 // pred_region
              // Predicated region
              $region124: #{tpu_custom_call.1} parent=111 // pred_check
                _
              $region125: #{tpu_custom_call.1} parent=111 // pred_check_branch
                %611 = sbr.rel (0) target = $region127
              $region126: #{tpu_custom_call.1} parent=111 // pred_region
                %s613 = ssub.s32 2, 1
                loop: start=0, step=1, limit=1
                $region128: #{tpu_custom_call.1} parent=126 // loop_pre_header
                  _
                $region129: #{tpu_custom_call.1} parent=126 // loop_header
                  %s615 = sphi 0, %s619
                  %p616 = scmp.ge.s32.totalorder %s615, 1
                  %s620 = sphi %s585, %s585
                  %s621 = sphi %s584, %s584
                $region130: #{tpu_custom_call.1} parent=126 // loop_header_branch
                  %618 = sbr.rel (%p616) target = $region134
                $region131: #{tpu_custom_call.1} parent=126 // loop_body
                  %v622 = vld [vmem:[%s620] sm:%s613]
                  %623 = vst [vmem:[%s621] sm:%s613] %v622
                  %v624 = vld [vmem:[%s620 + $0x2] sm:%s613]
                  %625 = vst [vmem:[%s621 + $0x1] sm:%s613] %v624
                  %v626 = vld [vmem:[%s620 + $0x4] sm:%s613]
                  %627 = vst [vmem:[%s621 + $0x2] sm:%s613] %v626
                  %v628 = vld [vmem:[%s620 + $0x6] sm:%s613]
                  %629 = vst [vmem:[%s621 + $0x3] sm:%s613] %v628
                $region132: #{tpu_custom_call.1} parent=126 // loop_footer
                  %s619 = sadd.s32 1, %s615
                $region133: #{tpu_custom_call.1} parent=126 // loop_footer_branch
                  %614 = sbr.rel target = $region129
                $region134: #{tpu_custom_call.1} parent=126 // loop_exit
                  _
              $region127: #{tpu_custom_call.1} parent=111 // pred_fallthru
                _
            $region112: #{tpu_custom_call.1} parent=107 // pred_fallthru
              _
            // Predicated region
            $region113: #{tpu_custom_call.1} parent=107 // pred_check
              _
            $region114: #{tpu_custom_call.1} parent=107 // pred_check_branch
              %591 = sbr.rel (0) target = $region116
            $region115: #{tpu_custom_call.1} parent=107 // pred_region
              %s593 = ssub.s32 2, 1
              loop: start=0, step=1, limit=1
              $region117: #{tpu_custom_call.1} parent=115 // loop_pre_header
                _
              $region118: #{tpu_custom_call.1} parent=115 // loop_header
                %s595 = sphi 0, %s599
                %p596 = scmp.ge.s32.totalorder %s595, 1
                %s600 = sphi %s585, %s585
                %s601 = sphi %s584, %s584
              $region119: #{tpu_custom_call.1} parent=115 // loop_header_branch
                %598 = sbr.rel (%p596) target = $region123
              $region120: #{tpu_custom_call.1} parent=115 // loop_body
                %v602 = vld [vmem:[%s600] sm:%s593]
                %603 = vst [vmem:[%s601] sm:%s593] %v602
                %v604 = vld [vmem:[%s600 + $0x2] sm:%s593]
                %605 = vst [vmem:[%s601 + $0x1] sm:%s593] %v604
                %v606 = vld [vmem:[%s600 + $0x4] sm:%s593]
                %607 = vst [vmem:[%s601 + $0x2] sm:%s593] %v606
                %v608 = vld [vmem:[%s600 + $0x6] sm:%s593]
                %609 = vst [vmem:[%s601 + $0x3] sm:%s593] %v608
              $region121: #{tpu_custom_call.1} parent=115 // loop_footer
                %s599 = sadd.s32 1, %s595
              $region122: #{tpu_custom_call.1} parent=115 // loop_footer_branch
                %594 = sbr.rel target = $region118
              $region123: #{tpu_custom_call.1} parent=115 // loop_exit
                _
            $region116: #{tpu_custom_call.1} parent=107 // pred_fallthru
              _
          $region108: #{tpu_custom_call.1} parent=103 // pred_fallthru
            _
          %630 = vnop
        $region104: #{tpu_custom_call.1} parent=23 // pred_fallthru
          _
        // Predicated region
        $region135: #{tpu_custom_call.1} parent=23 // pred_check
          %p631 = pneg %p127
        $region136: #{tpu_custom_call.1} parent=23 // pred_check_branch
          %633 = sbr.rel (%p631) target = $region138
        $region137: #{tpu_custom_call.1} parent=23 // pred_region
          %s634 = sand.u32 %s117, 1
          %s635 = sand.u32 %s117, 1
          %s636 = smul.addr %s635, 32
          %s637 = scalar_lea.vmem [#allocation7], %s636
          %s638 = smul.addr %s23, 4
          %s639 = scalar_lea.vmem %s3, %s638
          // Predicated region
          $region139: #{tpu_custom_call.1} parent=137 // pred_check
            _
          $region140: #{tpu_custom_call.1} parent=137 // pred_check_branch
            %641 = sbr.rel (0) target = $region142
          $region141: #{tpu_custom_call.1} parent=137 // pred_region
            // Predicated region
            $region143: #{tpu_custom_call.1} parent=141 // pred_check
              _
            $region144: #{tpu_custom_call.1} parent=141 // pred_check_branch
              %643 = sbr.rel target = $region146
            $region145: #{tpu_custom_call.1} parent=141 // pred_region
              // Predicated region
              $region158: #{tpu_custom_call.1} parent=145 // pred_check
                _
              $region159: #{tpu_custom_call.1} parent=145 // pred_check_branch
                %673 = sbr.rel (0) target = $region161
              $region160: #{tpu_custom_call.1} parent=145 // pred_region
                loop: start=0, step=1, limit=1
                $region162: #{tpu_custom_call.1} parent=160 // loop_pre_header
                  _
                $region163: #{tpu_custom_call.1} parent=160 // loop_header
                  %s675 = sphi 0, %s679
                  %p676 = scmp.ge.s32.totalorder %s675, 1
                  %s680 = sphi %s639, %s639
                  %s681 = sphi %s637, %s637
                $region164: #{tpu_custom_call.1} parent=160 // loop_header_branch
                  %678 = sbr.rel (%p676) target = $region168
                $region165: #{tpu_custom_call.1} parent=160 // loop_body
                  _
                $region166: #{tpu_custom_call.1} parent=160 // loop_footer
                  %s679 = sadd.s32 1, %s675
                $region167: #{tpu_custom_call.1} parent=160 // loop_footer_branch
                  %674 = sbr.rel target = $region163
                $region168: #{tpu_custom_call.1} parent=160 // loop_exit
                  _
                %s683 = ssub.s32 16, 1
                loop: start=0, step=1, limit=1
                $region169: #{tpu_custom_call.1} parent=160 // loop_pre_header
                  _
                $region170: #{tpu_custom_call.1} parent=160 // loop_header
                  %s685 = sphi 0, %s689
                  %p686 = scmp.ge.s32.totalorder %s685, 1
                  %s690 = sphi %s639, %s639
                  %s691 = sphi %s637, %s637
                $region171: #{tpu_custom_call.1} parent=160 // loop_header_branch
                  %688 = sbr.rel (%p686) target = $region175
                $region172: #{tpu_custom_call.1} parent=160 // loop_body
                  %v692 = vld [vmem:[%s690] sm:%s683]
                  %693 = vst [vmem:[%s691] sm:%s683] %v692
                  %v694 = vld [vmem:[%s690 + $0x8] sm:%s683]
                  %695 = vst [vmem:[%s691 + $0x4] sm:%s683] %v694
                  %v696 = vld [vmem:[%s690 + $0x10] sm:%s683]
                  %697 = vst [vmem:[%s691 + $0x8] sm:%s683] %v696
                  %v698 = vld [vmem:[%s690 + $0x18] sm:%s683]
                  %699 = vst [vmem:[%s691 + $0xc] sm:%s683] %v698
                  %v700 = vld [vmem:[%s690 + $0x20] sm:%s683]
                  %701 = vst [vmem:[%s691 + $0x10] sm:%s683] %v700
                  %v702 = vld [vmem:[%s690 + $0x28] sm:%s683]
                  %703 = vst [vmem:[%s691 + $0x14] sm:%s683] %v702
                  %v704 = vld [vmem:[%s690 + $0x30] sm:%s683]
                  %705 = vst [vmem:[%s691 + $0x18] sm:%s683] %v704
                  %v706 = vld [vmem:[%s690 + $0x38] sm:%s683]
                  %707 = vst [vmem:[%s691 + $0x1c] sm:%s683] %v706
                $region173: #{tpu_custom_call.1} parent=160 // loop_footer
                  %s689 = sadd.s32 1, %s685
                $region174: #{tpu_custom_call.1} parent=160 // loop_footer_branch
                  %684 = sbr.rel target = $region170
                $region175: #{tpu_custom_call.1} parent=160 // loop_exit
                  _
              $region161: #{tpu_custom_call.1} parent=145 // pred_fallthru
                _
            $region146: #{tpu_custom_call.1} parent=141 // pred_fallthru
              _
            // Predicated region
            $region147: #{tpu_custom_call.1} parent=141 // pred_check
              _
            $region148: #{tpu_custom_call.1} parent=141 // pred_check_branch
              %645 = sbr.rel (0) target = $region150
            $region149: #{tpu_custom_call.1} parent=141 // pred_region
              %s647 = ssub.s32 16, 1
              loop: start=0, step=1, limit=1
              $region151: #{tpu_custom_call.1} parent=149 // loop_pre_header
                _
              $region152: #{tpu_custom_call.1} parent=149 // loop_header
                %s649 = sphi 0, %s653
                %p650 = scmp.ge.s32.totalorder %s649, 1
                %s654 = sphi %s639, %s639
                %s655 = sphi %s637, %s637
              $region153: #{tpu_custom_call.1} parent=149 // loop_header_branch
                %652 = sbr.rel (%p650) target = $region157
              $region154: #{tpu_custom_call.1} parent=149 // loop_body
                %v656 = vld [vmem:[%s654] sm:%s647]
                %657 = vst [vmem:[%s655] sm:%s647] %v656
                %v658 = vld [vmem:[%s654 + $0x8] sm:%s647]
                %659 = vst [vmem:[%s655 + $0x4] sm:%s647] %v658
                %v660 = vld [vmem:[%s654 + $0x10] sm:%s647]
                %661 = vst [vmem:[%s655 + $0x8] sm:%s647] %v660
                %v662 = vld [vmem:[%s654 + $0x18] sm:%s647]
                %663 = vst [vmem:[%s655 + $0xc] sm:%s647] %v662
                %v664 = vld [vmem:[%s654 + $0x20] sm:%s647]
                %665 = vst [vmem:[%s655 + $0x10] sm:%s647] %v664
                %v666 = vld [vmem:[%s654 + $0x28] sm:%s647]
                %667 = vst [vmem:[%s655 + $0x14] sm:%s647] %v666
                %v668 = vld [vmem:[%s654 + $0x30] sm:%s647]
                %669 = vst [vmem:[%s655 + $0x18] sm:%s647] %v668
                %v670 = vld [vmem:[%s654 + $0x38] sm:%s647]
                %671 = vst [vmem:[%s655 + $0x1c] sm:%s647] %v670
              $region155: #{tpu_custom_call.1} parent=149 // loop_footer
                %s653 = sadd.s32 1, %s649
              $region156: #{tpu_custom_call.1} parent=149 // loop_footer_branch
                %648 = sbr.rel target = $region152
              $region157: #{tpu_custom_call.1} parent=149 // loop_exit
                _
            $region150: #{tpu_custom_call.1} parent=141 // pred_fallthru
              _
          $region142: #{tpu_custom_call.1} parent=137 // pred_fallthru
            _
          %708 = vnop
        $region138: #{tpu_custom_call.1} parent=23 // pred_fallthru
          _
      $region24: #{tpu_custom_call.1} parent=5 // pred_fallthru
        _
      %p709 = scmp.le.s32.totalorder 1, %s15
      %p710 = scmp.lt.s32.totalorder %s15, 5
      %p711 = pnand %p709, %p710
      %p712 = pneg %p711
      // Predicated region
      $region176: #{tpu_custom_call.1} parent=5 // pred_check
        _
      $region177: #{tpu_custom_call.1} parent=5 // pred_check_branch
        %714 = sbr.rel (%p711) target = $region179
      $region178: #{tpu_custom_call.1} parent=5 // pred_region
        %s715 = ssub.s32 %s15, 1
        %s716 = sand.u32 %s42, 1
        %s717 = sand.u32 %s42, 1
        %s718 = smul.addr %s717, 32
        %s719 = scalar_lea.vmem [#allocation4], %s718
        // Predicated region
        $region180: #{tpu_custom_call.1} parent=178 // pred_check
          %p720 = pneg %p55
        $region181: #{tpu_custom_call.1} parent=178 // pred_check_branch
          %722 = sbr.rel (%p720) target = $region183
        $region182: #{tpu_custom_call.1} parent=178 // pred_region
          _
        $region183: #{tpu_custom_call.1} parent=178 // pred_fallthru
          _
        %s723 = sand.u32 %s68, 1
        %s724 = sand.u32 %s68, 1
        %s725 = smul.addr %s724, 512
        %s726 = scalar_lea.vmem [#allocation5], %s725
        // Predicated region
        $region184: #{tpu_custom_call.1} parent=178 // pred_check
          %p727 = pneg %p81
        $region185: #{tpu_custom_call.1} parent=178 // pred_check_branch
          %729 = sbr.rel (%p727) target = $region187
        $region186: #{tpu_custom_call.1} parent=178 // pred_region
          _
        $region187: #{tpu_custom_call.1} parent=178 // pred_fallthru
          _
        %s730 = sand.u32 %s94, 1
        %s731 = sand.u32 %s94, 1
        %s732 = smul.addr %s731, 4
        %s733 = scalar_lea.vmem [#allocation6], %s732
        // Predicated region
        $region188: #{tpu_custom_call.1} parent=178 // pred_check
          %p734 = pneg %p107
        $region189: #{tpu_custom_call.1} parent=178 // pred_check_branch
          %736 = sbr.rel (%p734) target = $region191
        $region190: #{tpu_custom_call.1} parent=178 // pred_region
          _
        $region191: #{tpu_custom_call.1} parent=178 // pred_fallthru
          _
        %s737 = sand.u32 %s120, 1
        %s738 = sand.u32 %s120, 1
        %s739 = smul.addr %s738, 32
        %s740 = scalar_lea.vmem [#allocation7], %s739
        // Predicated region
        $region192: #{tpu_custom_call.1} parent=178 // pred_check
          %p741 = pneg %p133
        $region193: #{tpu_custom_call.1} parent=178 // pred_check_branch
          %743 = sbr.rel (%p741) target = $region195
        $region194: #{tpu_custom_call.1} parent=178 // pred_region
          _
        $region195: #{tpu_custom_call.1} parent=178 // pred_fallthru
          _
        %s744 = sand.u32 %s42, 1
        %s745 = sand.u32 %s42, 1
        %s746 = smul.addr %s745, 32
        %s747 = scalar_lea.vmem [#allocation4], %s746
        %p748 = pneg %p55
        %p749 = pneg %p52
        %s750 = sand.u32 %s68, 1
        %s751 = sand.u32 %s68, 1
        %s752 = smul.addr %s751, 512
        %s753 = scalar_lea.vmem [#allocation5], %s752
        %p754 = pneg %p81
        %p755 = pneg %p78
        %s756 = sand.u32 %s94, 1
        %s757 = sand.u32 %s94, 1
        %s758 = smul.addr %s757, 4
        %s759 = scalar_lea.vmem [#allocation6], %s758
        %p760 = pneg %p107
        %p761 = pneg %p104
        %s762 = sand.u32 %s120, 1
        %s763 = sand.u32 %s120, 1
        %s764 = smul.addr %s763, 32
        %s765 = scalar_lea.vmem [#allocation7], %s764
        %p766 = pneg %p133
        %p767 = pneg %p130
        %p768 = pneg %p154
        %p769 = pneg %p151
        %p770 = pneg %p175
        %p771 = pneg %p172
        %p772 = pneg %p201
        %p773 = pneg %p198
        %s774 = sand.u32 %s188, 1
        %s775 = scalar_lea.sflag [#allocation9], %s774
        %s776 = sand.u32 %s188, 1
        %s777 = smul.addr %s776, 32
        %s778 = scalar_lea.vmem [#allocation8], %s777
        %s779 = smul.u32 4, %s25
        %s780 = smul.u32 16, %s25
        %p782 = scmp.eq.s32.totalorder %s25, 0
        // Predicated region
        $region196: #{tpu_custom_call.1} parent=178 // pred_check
          %p783 = pneg %p782
        $region197: #{tpu_custom_call.1} parent=178 // pred_check_branch
          %785 = sbr.rel (%p783) target = $region199
        $region198: #{tpu_custom_call.1} parent=178 // pred_region
          %786 = vst [vmem:[#allocation2] sm:$0x1] -1e+30
          %787 = vst [vmem:[#allocation2 + $0x1] sm:$0x1] -1e+30
          %788 = vst [vmem:[#allocation2 + $0x2] sm:$0x1] -1e+30
          %789 = vst [vmem:[#allocation2 + $0x3] sm:$0x1] -1e+30
          %790 = vst [vmem:[#allocation3] sm:$0xff] 0.0
          %791 = vst [vmem:[#allocation3 + $0x8] sm:$0x1] 0.0
          %792 = vst [vmem:[#allocation3 + $0x10] sm:$0xff] 0.0
          %793 = vst [vmem:[#allocation3 + $0x18] sm:$0x1] 0.0
          %794 = vst [vmem:[#allocation3 + $0x20] sm:$0xff] 0.0
          %795 = vst [vmem:[#allocation3 + $0x28] sm:$0x1] 0.0
          %796 = vst [vmem:[#allocation3 + $0x30] sm:$0xff] 0.0
          %797 = vst [vmem:[#allocation3 + $0x38] sm:$0x1] 0.0
        $region199: #{tpu_custom_call.1} parent=178 // pred_fallthru
          _
        %v798 = vld [vmem:[%s719] sm:$0xff]
        %v799 = vld [vmem:[%s719 + $0x8] sm:$0xff]
        %v800 = vld [vmem:[%s719 + $0x10] sm:$0xff]
        %v801 = vld [vmem:[%s719 + $0x18] sm:$0xff]
        %v802 = vunpack.c.0.s8 %v798
        %v803 = vunpack.c.1.s8 %v798
        %v804 = vunpack.c.2.s8 %v798
        %v805 = vunpack.c.3.s8 %v798
        %v806 = vunpack.c.0.s8 %v799
        %v807 = vunpack.c.1.s8 %v799
        %v808 = vunpack.c.2.s8 %v799
        %v809 = vunpack.c.3.s8 %v799
        %v810 = vunpack.c.0.s8 %v800
        %v811 = vunpack.c.1.s8 %v800
        %v812 = vunpack.c.2.s8 %v800
        %v813 = vunpack.c.3.s8 %v800
        %v814 = vunpack.c.0.s8 %v801
        %v815 = vunpack.c.1.s8 %v801
        %v816 = vunpack.c.2.s8 %v801
        %v817 = vunpack.c.3.s8 %v801
        %v818 = vcvt.s32.f32 %v802
        %v819 = vcvt.s32.f32 %v803
        %v820 = vcvt.s32.f32 %v804
        %v821 = vcvt.s32.f32 %v805
        %v822 = vcvt.s32.f32 %v806
        %v823 = vcvt.s32.f32 %v807
        %v824 = vcvt.s32.f32 %v808
        %v825 = vcvt.s32.f32 %v809
        %v826 = vcvt.s32.f32 %v810
        %v827 = vcvt.s32.f32 %v811
        %v828 = vcvt.s32.f32 %v812
        %v829 = vcvt.s32.f32 %v813
        %v830 = vcvt.s32.f32 %v814
        %v831 = vcvt.s32.f32 %v815
        %v832 = vcvt.s32.f32 %v816
        %v833 = vcvt.s32.f32 %v817
        %vm834 = vcmp.gt.f32.partialorder %v818, 0.0
        %vm835 = vcmp.gt.f32.partialorder %v819, 0.0
        %vm836 = vcmp.gt.f32.partialorder %v820, 0.0
        %vm837 = vcmp.gt.f32.partialorder %v821, 0.0
        %vm838 = vcmp.gt.f32.partialorder %v822, 0.0
        %vm839 = vcmp.gt.f32.partialorder %v823, 0.0
        %vm840 = vcmp.gt.f32.partialorder %v824, 0.0
        %vm841 = vcmp.gt.f32.partialorder %v825, 0.0
        %vm842 = vcmp.gt.f32.partialorder %v826, 0.0
        %vm843 = vcmp.gt.f32.partialorder %v827, 0.0
        %vm844 = vcmp.gt.f32.partialorder %v828, 0.0
        %vm845 = vcmp.gt.f32.partialorder %v829, 0.0
        %vm846 = vcmp.gt.f32.partialorder %v830, 0.0
        %vm847 = vcmp.gt.f32.partialorder %v831, 0.0
        %vm848 = vcmp.gt.f32.partialorder %v832, 0.0
        %vm849 = vcmp.gt.f32.partialorder %v833, 0.0
        %v850 = vsel %vm834, 0.0, -1e+30
        %v851 = vsel %vm835, 0.0, -1e+30
        %v852 = vsel %vm836, 0.0, -1e+30
        %v853 = vsel %vm837, 0.0, -1e+30
        %v854 = vsel %vm838, 0.0, -1e+30
        %v855 = vsel %vm839, 0.0, -1e+30
        %v856 = vsel %vm840, 0.0, -1e+30
        %v857 = vsel %vm841, 0.0, -1e+30
        %v858 = vsel %vm842, 0.0, -1e+30
        %v859 = vsel %vm843, 0.0, -1e+30
        %v860 = vsel %vm844, 0.0, -1e+30
        %v861 = vsel %vm845, 0.0, -1e+30
        %v862 = vsel %vm846, 0.0, -1e+30
        %v863 = vsel %vm847, 0.0, -1e+30
        %v864 = vsel %vm848, 0.0, -1e+30
        %v865 = vsel %vm849, 0.0, -1e+30
        %v866 = vld [vmem:[%s726] sm:$0xff]
        %v867 = vld [vmem:[%s726 + $0x8] sm:$0xff]
        %v868 = vld [vmem:[%s726 + $0x10] sm:$0xff]
        %v869 = vld [vmem:[%s726 + $0x18] sm:$0xff]
        %v870 = vld [vmem:[%s726 + $0x20] sm:$0xff]
        %v871 = vld [vmem:[%s726 + $0x28] sm:$0xff]
        %v872 = vld [vmem:[%s726 + $0x30] sm:$0xff]
        %v873 = vld [vmem:[%s726 + $0x38] sm:$0xff]
        %v874 = vld [vmem:[%s726 + $0x40] sm:$0xff]
        %v875 = vld [vmem:[%s726 + $0x48] sm:$0xff]
        %v876 = vld [vmem:[%s726 + $0x50] sm:$0xff]
        %v877 = vld [vmem:[%s726 + $0x58] sm:$0xff]
        %v878 = vld [vmem:[%s726 + $0x60] sm:$0xff]
        %v879 = vld [vmem:[%s726 + $0x68] sm:$0xff]
        %v880 = vld [vmem:[%s726 + $0x70] sm:$0xff]
        %v881 = vld [vmem:[%s726 + $0x78] sm:$0xff]
        %v882 = vld [vmem:[%s733] sm:$0x1]
        %884 = vset.pattern.permute.xlu0 0
        %885 = vperm.xlu0 %884, %v866
        %v886 = vpop.permute.xlu0 %885
        %889 = vset.pattern.permute.xlu0 0
        %890 = vperm.xlu0 %889, %v867
        %v891 = vpop.permute.xlu0 %890
        %894 = vset.pattern.permute.xlu0 0
        %895 = vperm.xlu0 %894, %v868
        %v896 = vpop.permute.xlu0 %895
        %899 = vset.pattern.permute.xlu0 0
        %900 = vperm.xlu0 %899, %v869
        %v901 = vpop.permute.xlu0 %900
        %904 = vset.pattern.permute.xlu0 0
        %905 = vperm.xlu0 %904, %v870
        %v906 = vpop.permute.xlu0 %905
        %909 = vset.pattern.permute.xlu0 0
        %910 = vperm.xlu0 %909, %v871
        %v911 = vpop.permute.xlu0 %910
        %914 = vset.pattern.permute.xlu0 0
        %915 = vperm.xlu0 %914, %v872
        %v916 = vpop.permute.xlu0 %915
        %919 = vset.pattern.permute.xlu0 0
        %920 = vperm.xlu0 %919, %v873
        %v921 = vpop.permute.xlu0 %920
        %924 = vset.pattern.permute.xlu0 0
        %925 = vperm.xlu0 %924, %v874
        %v926 = vpop.permute.xlu0 %925
        %929 = vset.pattern.permute.xlu0 0
        %930 = vperm.xlu0 %929, %v875
        %v931 = vpop.permute.xlu0 %930
        %934 = vset.pattern.permute.xlu0 0
        %935 = vperm.xlu0 %934, %v876
        %v936 = vpop.permute.xlu0 %935
        %939 = vset.pattern.permute.xlu0 0
        %940 = vperm.xlu0 %939, %v877
        %v941 = vpop.permute.xlu0 %940
        %944 = vset.pattern.permute.xlu0 0
        %945 = vperm.xlu0 %944, %v878
        %v946 = vpop.permute.xlu0 %945
        %949 = vset.pattern.permute.xlu0 0
        %950 = vperm.xlu0 %949, %v879
        %v951 = vpop.permute.xlu0 %950
        %954 = vset.pattern.permute.xlu0 0
        %955 = vperm.xlu0 %954, %v880
        %v956 = vpop.permute.xlu0 %955
        %959 = vset.pattern.permute.xlu0 0
        %960 = vperm.xlu0 %959, %v881
        %v961 = vpop.permute.xlu0 %960
        %v964 = vlaneseq
        %v965 = vshrl.u32 %v964, 7
        %v966 = vsub.s32 0, %v965
        %v967 = vrot.slane %v882, %v966
        %v969 = vadd.f32 %v886, %v967
        %v970 = vadd.f32 %v891, %v967
        %v971 = vadd.f32 %v896, %v967
        %v972 = vadd.f32 %v901, %v967
        %v973 = vadd.f32 %v906, %v967
        %v974 = vadd.f32 %v911, %v967
        %v975 = vadd.f32 %v916, %v967
        %v976 = vadd.f32 %v921, %v967
        %v977 = vadd.f32 %v926, %v967
        %v978 = vadd.f32 %v931, %v967
        %v979 = vadd.f32 %v936, %v967
        %v980 = vadd.f32 %v941, %v967
        %v981 = vadd.f32 %v946, %v967
        %v982 = vadd.f32 %v951, %v967
        %v983 = vadd.f32 %v956, %v967
        %v984 = vadd.f32 %v961, %v967
        %v985 = vmul.f32 %v969, 0.2
        %v986 = vmul.f32 %v970, 0.2
        %v987 = vmul.f32 %v971, 0.2
        %v988 = vmul.f32 %v972, 0.2
        %v989 = vmul.f32 %v973, 0.2
        %v990 = vmul.f32 %v974, 0.2
        %v991 = vmul.f32 %v975, 0.2
        %v992 = vmul.f32 %v976, 0.2
        %v993 = vmul.f32 %v977, 0.2
        %v994 = vmul.f32 %v978, 0.2
        %v995 = vmul.f32 %v979, 0.2
        %v996 = vmul.f32 %v980, 0.2
        %v997 = vmul.f32 %v981, 0.2
        %v998 = vmul.f32 %v982, 0.2
        %v999 = vmul.f32 %v983, 0.2
        %v1000 = vmul.f32 %v984, 0.2
        %v1001 = vmax.f32 %v969, %v985
        %v1002 = vmax.f32 %v970, %v986
        %v1003 = vmax.f32 %v971, %v987
        %v1004 = vmax.f32 %v972, %v988
        %v1005 = vmax.f32 %v973, %v989
        %v1006 = vmax.f32 %v974, %v990
        %v1007 = vmax.f32 %v975, %v991
        %v1008 = vmax.f32 %v976, %v992
        %v1009 = vmax.f32 %v977, %v993
        %v1010 = vmax.f32 %v978, %v994
        %v1011 = vmax.f32 %v979, %v995
        %v1012 = vmax.f32 %v980, %v996
        %v1013 = vmax.f32 %v981, %v997
        %v1014 = vmax.f32 %v982, %v998
        %v1015 = vmax.f32 %v983, %v999
        %v1016 = vmax.f32 %v984, %v1000
        %v1017 = vadd.f32 %v1001, %v850
        %v1018 = vadd.f32 %v1002, %v851
        %v1019 = vadd.f32 %v1003, %v852
        %v1020 = vadd.f32 %v1004, %v853
        %v1021 = vadd.f32 %v1005, %v854
        %v1022 = vadd.f32 %v1006, %v855
        %v1023 = vadd.f32 %v1007, %v856
        %v1024 = vadd.f32 %v1008, %v857
        %v1025 = vadd.f32 %v1009, %v858
        %v1026 = vadd.f32 %v1010, %v859
        %v1027 = vadd.f32 %v1011, %v860
        %v1028 = vadd.f32 %v1012, %v861
        %v1029 = vadd.f32 %v1013, %v862
        %v1030 = vadd.f32 %v1014, %v863
        %v1031 = vadd.f32 %v1015, %v864
        %v1032 = vadd.f32 %v1016, %v865
        %v1033 = vld [vmem:[#allocation2] sm:$0x1]
        %v1034 = vmax.f32 %v1017, %v1021
        %v1035 = vmax.f32 %v1018, %v1022
        %v1036 = vmax.f32 %v1019, %v1023
        %v1037 = vmax.f32 %v1020, %v1024
        %v1038 = vmax.f32 %v1034, %v1025
        %v1039 = vmax.f32 %v1035, %v1026
        %v1040 = vmax.f32 %v1036, %v1027
        %v1041 = vmax.f32 %v1037, %v1028
        %v1042 = vmax.f32 %v1038, %v1029
        %v1043 = vmax.f32 %v1039, %v1030
        %v1044 = vmax.f32 %v1040, %v1031
        %v1045 = vmax.f32 %v1041, %v1032
        %v1046 = vmax.f32 %v1042, %v1043
        %v1047 = vmax.f32 %v1044, %v1045
        %v1048 = vmax.f32 %v1046, %v1047
        %v1049 = vrot.slane %v1048, 4
        %v1050 = vmax.f32 %v1048, %v1049
        %v1051 = vrot.slane %v1050, 2
        %v1052 = vmax.f32 %v1050, %v1051
        %v1053 = vrot.slane %v1052, 1
        %v1054 = vmax.f32 %v1052, %v1053
        %v1055 = vmax.f32 %v1033, %v1054
        %v1056 = vsub.f32 %v1033, %v1055
        %v1057 = vmul.f32 %v1056, 1.442695
        %v1058 = vpow.pop %v1057
        %v1060 = vlaneseq
        %v1061 = vshrl.u32 %v1060, 7
        %v1062 = vsub.s32 0, %v1061
        %v1063 = vrot.slane %v1055, %v1062
        %v1065 = vsub.f32 %v1017, %v1063
        %v1066 = vsub.f32 %v1018, %v1063
        %v1067 = vsub.f32 %v1019, %v1063
        %v1068 = vsub.f32 %v1020, %v1063
        %v1069 = vsub.f32 %v1021, %v1063
        %v1070 = vsub.f32 %v1022, %v1063
        %v1071 = vsub.f32 %v1023, %v1063
        %v1072 = vsub.f32 %v1024, %v1063
        %v1073 = vsub.f32 %v1025, %v1063
        %v1074 = vsub.f32 %v1026, %v1063
        %v1075 = vsub.f32 %v1027, %v1063
        %v1076 = vsub.f32 %v1028, %v1063
        %v1077 = vsub.f32 %v1029, %v1063
        %v1078 = vsub.f32 %v1030, %v1063
        %v1079 = vsub.f32 %v1031, %v1063
        %v1080 = vsub.f32 %v1032, %v1063
        %v1081 = vmul.f32 %v1065, 1.442695
        %v1082 = vpow.pop %v1081
        %v1083 = vmul.f32 %v1066, 1.442695
        %v1084 = vpow.pop %v1083
        %v1085 = vmul.f32 %v1067, 1.442695
        %v1086 = vpow.pop %v1085
        %v1087 = vmul.f32 %v1068, 1.442695
        %v1088 = vpow.pop %v1087
        %v1089 = vmul.f32 %v1069, 1.442695
        %v1090 = vpow.pop %v1089
        %v1091 = vmul.f32 %v1070, 1.442695
        %v1092 = vpow.pop %v1091
        %v1093 = vmul.f32 %v1071, 1.442695
        %v1094 = vpow.pop %v1093
        %v1095 = vmul.f32 %v1072, 1.442695
        %v1096 = vpow.pop %v1095
        %v1097 = vmul.f32 %v1073, 1.442695
        %v1098 = vpow.pop %v1097
        %v1099 = vmul.f32 %v1074, 1.442695
        %v1100 = vpow.pop %v1099
        %v1101 = vmul.f32 %v1075, 1.442695
        %v1102 = vpow.pop %v1101
        %v1103 = vmul.f32 %v1076, 1.442695
        %v1104 = vpow.pop %v1103
        %v1105 = vmul.f32 %v1077, 1.442695
        %v1106 = vpow.pop %v1105
        %v1107 = vmul.f32 %v1078, 1.442695
        %v1108 = vpow.pop %v1107
        %v1109 = vmul.f32 %v1079, 1.442695
        %v1110 = vpow.pop %v1109
        %v1111 = vmul.f32 %v1080, 1.442695
        %v1112 = vpow.pop %v1111
        %v1113 = vpack.c.bf16 %v1084, %v1082
        %v1114 = vpack.c.bf16 %v1088, %v1086
        %v1115 = vpack.c.bf16 %v1092, %v1090
        %v1116 = vpack.c.bf16 %v1096, %v1094
        %v1117 = vpack.c.bf16 %v1100, %v1098
        %v1118 = vpack.c.bf16 %v1104, %v1102
        %v1119 = vpack.c.bf16 %v1108, %v1106
        %v1120 = vpack.c.bf16 %v1112, %v1110
        %v1121 = vld [vmem:[#allocation3] sm:$0xff]
        %v1122 = vld [vmem:[#allocation3 + $0x8] sm:$0x1]
        %v1124 = vlaneseq
        %v1125 = vshrl.u32 %v1124, 7
        %v1126 = vsub.s32 0, %v1125
        %v1127 = vrot.slane %v1058, %v1126
        %v1129 = vmul.f32 %v1127, %v1121
        %v1130 = vmul.f32 %v1127, %v1122
        %v1131 = vld [vmem:[%s740] sm:$0xf]
        %v1132 = vld [vmem:[%s740 + $0x4] sm:$0x1]
        %v1135 = vunpack.c.l.b16 %v1131
        %v1136 = vunpack.c.l.b16 %v1132
        %v1137 = vpack.c.b16 %v1136, %v1135
        %1139 = vmatprep.subr.bf16.mxu0 0
        %1140 = vmatpush1.bf16.msra.mxu0 %v1120
        %1141 = vmatprep.subr.bf16.mxu0 0
        %1142 = vmatpush1.bf16.msra.mxu0 %v1119
        %1143 = vmatprep.subr.bf16.mxu0 0
        %1144 = vmatpush1.bf16.msra.mxu0 %v1118
        %1145 = vmatprep.subr.bf16.mxu0 0
        %1146 = vmatpush1.bf16.msra.mxu0 %v1117
        %1147 = vmatprep.subr.bf16.mxu0 0
        %1148 = vmatpush1.bf16.msra.mxu0 %v1116
        %1149 = vmatprep.subr.bf16.mxu0 0
        %1150 = vmatpush1.bf16.msra.mxu0 %v1115
        %1151 = vmatprep.subr.bf16.mxu0 0
        %1152 = vmatpush1.bf16.msra.mxu0 %v1114
        %1153 = vmatprep.subr.bf16.mxu0 0
        %1154 = vmatpush1.bf16.msra.mxu0 %v1113
        %1155 = vmatprep.subr.bf16.mxu0 0
        %1156 = vmatpush2.bf16.msra.mxu0 0
        %1157 = vmatprep.subr.bf16.mxu0 0
        %1158 = vmatpush2.bf16.msra.mxu0 0
        %1159 = vmatprep.subr.bf16.mxu0 0
        %1160 = vmatpush2.bf16.msra.mxu0 0
        %1161 = vmatprep.subr.bf16.mxu0 0
        %1162 = vmatpush2.bf16.msra.mxu0 0
        %1163 = vmatprep.subr.bf16.mxu0 0
        %1164 = vmatpush2.bf16.msra.mxu0 0
        %1165 = vmatprep.subr.bf16.mxu0 0
        %1166 = vmatpush2.bf16.msra.mxu0 0
        %1167 = vmatprep.subr.bf16.mxu0 0
        %1168 = vmatpush2.bf16.msra.mxu0 0
        %1169 = vmatprep.subr.bf16.mxu0 0
        %1170 = vmatpush2.bf16.msra.mxu0 0
        %1171 = vmatprep.mubr.bf16.mxu0 0
        %1172 = vmatmul.mubr.bf16.gmra.mxu0 %v1137
        %v1173 = vpop.f32.mrf.mxu0
        %v1174 = vadd.f32 0.0, %v1173
        %v1175 = vpop.f32.mrf.mxu0
        %v1176 = vpop.f32.mrf.mxu0
        %v1177 = vadd.f32 0.0, %v1176
        %v1178 = vpop.f32.mrf.mxu0
        %1179 = vdwg.mxu0
        %v1180 = vadd.f32 %v1129, %v1174
        %v1181 = vadd.f32 %v1130, %v1177
        %1182 = vst [vmem:[#allocation3] sm:$0xff] %v1180
        %1183 = vst [vmem:[#allocation3 + $0x8] sm:$0x1] %v1181
        %1184 = vst [vmem:[#allocation2] sm:$0x1] %v1055
        %s1185 = scalar_lea.vmem %s726, 128 [#allocation5]
        %v1186 = vld [vmem:[%s1185] sm:$0xff]
        %v1187 = vld [vmem:[%s1185 + $0x8] sm:$0xff]
        %v1188 = vld [vmem:[%s1185 + $0x10] sm:$0xff]
        %v1189 = vld [vmem:[%s1185 + $0x18] sm:$0xff]
        %v1190 = vld [vmem:[%s1185 + $0x20] sm:$0xff]
        %v1191 = vld [vmem:[%s1185 + $0x28] sm:$0xff]
        %v1192 = vld [vmem:[%s1185 + $0x30] sm:$0xff]
        %v1193 = vld [vmem:[%s1185 + $0x38] sm:$0xff]
        %v1194 = vld [vmem:[%s1185 + $0x40] sm:$0xff]
        %v1195 = vld [vmem:[%s1185 + $0x48] sm:$0xff]
        %v1196 = vld [vmem:[%s1185 + $0x50] sm:$0xff]
        %v1197 = vld [vmem:[%s1185 + $0x58] sm:$0xff]
        %v1198 = vld [vmem:[%s1185 + $0x60] sm:$0xff]
        %v1199 = vld [vmem:[%s1185 + $0x68] sm:$0xff]
        %v1200 = vld [vmem:[%s1185 + $0x70] sm:$0xff]
        %v1201 = vld [vmem:[%s1185 + $0x78] sm:$0xff]
        %s1202 = scalar_lea.vmem %s733, 1 [#allocation6]
        %v1203 = vld [vmem:[%s1202] sm:$0x1]
        %1205 = vset.pattern.permute.xlu0 0
        %1206 = vperm.xlu0 %1205, %v1186
        %v1207 = vpop.permute.xlu0 %1206
        %1210 = vset.pattern.permute.xlu0 0
        %1211 = vperm.xlu0 %1210, %v1187
        %v1212 = vpop.permute.xlu0 %1211
        %1215 = vset.pattern.permute.xlu0 0
        %1216 = vperm.xlu0 %1215, %v1188
        %v1217 = vpop.permute.xlu0 %1216
        %1220 = vset.pattern.permute.xlu0 0
        %1221 = vperm.xlu0 %1220, %v1189
        %v1222 = vpop.permute.xlu0 %1221
        %1225 = vset.pattern.permute.xlu0 0
        %1226 = vperm.xlu0 %1225, %v1190
        %v1227 = vpop.permute.xlu0 %1226
        %1230 = vset.pattern.permute.xlu0 0
        %1231 = vperm.xlu0 %1230, %v1191
        %v1232 = vpop.permute.xlu0 %1231
        %1235 = vset.pattern.permute.xlu0 0
        %1236 = vperm.xlu0 %1235, %v1192
        %v1237 = vpop.permute.xlu0 %1236
        %1240 = vset.pattern.permute.xlu0 0
        %1241 = vperm.xlu0 %1240, %v1193
        %v1242 = vpop.permute.xlu0 %1241
        %1245 = vset.pattern.permute.xlu0 0
        %1246 = vperm.xlu0 %1245, %v1194
        %v1247 = vpop.permute.xlu0 %1246
        %1250 = vset.pattern.permute.xlu0 0
        %1251 = vperm.xlu0 %1250, %v1195
        %v1252 = vpop.permute.xlu0 %1251
        %1255 = vset.pattern.permute.xlu0 0
        %1256 = vperm.xlu0 %1255, %v1196
        %v1257 = vpop.permute.xlu0 %1256
        %1260 = vset.pattern.permute.xlu0 0
        %1261 = vperm.xlu0 %1260, %v1197
        %v1262 = vpop.permute.xlu0 %1261
        %1265 = vset.pattern.permute.xlu0 0
        %1266 = vperm.xlu0 %1265, %v1198
        %v1267 = vpop.permute.xlu0 %1266
        %1270 = vset.pattern.permute.xlu0 0
        %1271 = vperm.xlu0 %1270, %v1199
        %v1272 = vpop.permute.xlu0 %1271
        %1275 = vset.pattern.permute.xlu0 0
        %1276 = vperm.xlu0 %1275, %v1200
        %v1277 = vpop.permute.xlu0 %1276
        %1280 = vset.pattern.permute.xlu0 0
        %1281 = vperm.xlu0 %1280, %v1201
        %v1282 = vpop.permute.xlu0 %1281
        %v1285 = vlaneseq
        %v1286 = vshrl.u32 %v1285, 7
        %v1287 = vsub.s32 0, %v1286
        %v1288 = vrot.slane %v1203, %v1287
        %v1290 = vadd.f32 %v1207, %v1288
        %v1291 = vadd.f32 %v1212, %v1288
        %v1292 = vadd.f32 %v1217, %v1288
        %v1293 = vadd.f32 %v1222, %v1288
        %v1294 = vadd.f32 %v1227, %v1288
        %v1295 = vadd.f32 %v1232, %v1288
        %v1296 = vadd.f32 %v1237, %v1288
        %v1297 = vadd.f32 %v1242, %v1288
        %v1298 = vadd.f32 %v1247, %v1288
        %v1299 = vadd.f32 %v1252, %v1288
        %v1300 = vadd.f32 %v1257, %v1288
        %v1301 = vadd.f32 %v1262, %v1288
        %v1302 = vadd.f32 %v1267, %v1288
        %v1303 = vadd.f32 %v1272, %v1288
        %v1304 = vadd.f32 %v1277, %v1288
        %v1305 = vadd.f32 %v1282, %v1288
        %v1306 = vmul.f32 %v1290, 0.2
        %v1307 = vmul.f32 %v1291, 0.2
        %v1308 = vmul.f32 %v1292, 0.2
        %v1309 = vmul.f32 %v1293, 0.2
        %v1310 = vmul.f32 %v1294, 0.2
        %v1311 = vmul.f32 %v1295, 0.2
        %v1312 = vmul.f32 %v1296, 0.2
        %v1313 = vmul.f32 %v1297, 0.2
        %v1314 = vmul.f32 %v1298, 0.2
        %v1315 = vmul.f32 %v1299, 0.2
        %v1316 = vmul.f32 %v1300, 0.2
        %v1317 = vmul.f32 %v1301, 0.2
        %v1318 = vmul.f32 %v1302, 0.2
        %v1319 = vmul.f32 %v1303, 0.2
        %v1320 = vmul.f32 %v1304, 0.2
        %v1321 = vmul.f32 %v1305, 0.2
        %v1322 = vmax.f32 %v1290, %v1306
        %v1323 = vmax.f32 %v1291, %v1307
        %v1324 = vmax.f32 %v1292, %v1308
        %v1325 = vmax.f32 %v1293, %v1309
        %v1326 = vmax.f32 %v1294, %v1310
        %v1327 = vmax.f32 %v1295, %v1311
        %v1328 = vmax.f32 %v1296, %v1312
        %v1329 = vmax.f32 %v1297, %v1313
        %v1330 = vmax.f32 %v1298, %v1314
        %v1331 = vmax.f32 %v1299, %v1315
        %v1332 = vmax.f32 %v1300, %v1316
        %v1333 = vmax.f32 %v1301, %v1317
        %v1334 = vmax.f32 %v1302, %v1318
        %v1335 = vmax.f32 %v1303, %v1319
        %v1336 = vmax.f32 %v1304, %v1320
        %v1337 = vmax.f32 %v1305, %v1321
        %v1338 = vadd.f32 %v1322, %v850
        %v1339 = vadd.f32 %v1323, %v851
        %v1340 = vadd.f32 %v1324, %v852
        %v1341 = vadd.f32 %v1325, %v853
        %v1342 = vadd.f32 %v1326, %v854
        %v1343 = vadd.f32 %v1327, %v855
        %v1344 = vadd.f32 %v1328, %v856
        %v1345 = vadd.f32 %v1329, %v857
        %v1346 = vadd.f32 %v1330, %v858
        %v1347 = vadd.f32 %v1331, %v859
        %v1348 = vadd.f32 %v1332, %v860
        %v1349 = vadd.f32 %v1333, %v861
        %v1350 = vadd.f32 %v1334, %v862
        %v1351 = vadd.f32 %v1335, %v863
        %v1352 = vadd.f32 %v1336, %v864
        %v1353 = vadd.f32 %v1337, %v865
        %s1354 = scalar_lea.vmem [#allocation2], 1
        %v1355 = vld [vmem:[%s1354] sm:$0x1]
        %v1356 = vmax.f32 %v1338, %v1342
        %v1357 = vmax.f32 %v1339, %v1343
        %v1358 = vmax.f32 %v1340, %v1344
        %v1359 = vmax.f32 %v1341, %v1345
        %v1360 = vmax.f32 %v1356, %v1346
        %v1361 = vmax.f32 %v1357, %v1347
        %v1362 = vmax.f32 %v1358, %v1348
        %v1363 = vmax.f32 %v1359, %v1349
        %v1364 = vmax.f32 %v1360, %v1350
        %v1365 = vmax.f32 %v1361, %v1351
        %v1366 = vmax.f32 %v1362, %v1352
        %v1367 = vmax.f32 %v1363, %v1353
        %v1368 = vmax.f32 %v1364, %v1365
        %v1369 = vmax.f32 %v1366, %v1367
        %v1370 = vmax.f32 %v1368, %v1369
        %v1371 = vrot.slane %v1370, 4
        %v1372 = vmax.f32 %v1370, %v1371
        %v1373 = vrot.slane %v1372, 2
        %v1374 = vmax.f32 %v1372, %v1373
        %v1375 = vrot.slane %v1374, 1
        %v1376 = vmax.f32 %v1374, %v1375
        %v1377 = vmax.f32 %v1355, %v1376
        %v1378 = vsub.f32 %v1355, %v1377
        %v1379 = vmul.f32 %v1378, 1.442695
        %v1380 = vpow.pop %v1379
        %v1382 = vlaneseq
        %v1383 = vshrl.u32 %v1382, 7
        %v1384 = vsub.s32 0, %v1383
        %v1385 = vrot.slane %v1377, %v1384
        %v1387 = vsub.f32 %v1338, %v1385
        %v1388 = vsub.f32 %v1339, %v1385
        %v1389 = vsub.f32 %v1340, %v1385
        %v1390 = vsub.f32 %v1341, %v1385
        %v1391 = vsub.f32 %v1342, %v1385
        %v1392 = vsub.f32 %v1343, %v1385
        %v1393 = vsub.f32 %v1344, %v1385
        %v1394 = vsub.f32 %v1345, %v1385
        %v1395 = vsub.f32 %v1346, %v1385
        %v1396 = vsub.f32 %v1347, %v1385
        %v1397 = vsub.f32 %v1348, %v1385
        %v1398 = vsub.f32 %v1349, %v1385
        %v1399 = vsub.f32 %v1350, %v1385
        %v1400 = vsub.f32 %v1351, %v1385
        %v1401 = vsub.f32 %v1352, %v1385
        %v1402 = vsub.f32 %v1353, %v1385
        %v1403 = vmul.f32 %v1387, 1.442695
        %v1404 = vpow.pop %v1403
        %v1405 = vmul.f32 %v1388, 1.442695
        %v1406 = vpow.pop %v1405
        %v1407 = vmul.f32 %v1389, 1.442695
        %v1408 = vpow.pop %v1407
        %v1409 = vmul.f32 %v1390, 1.442695
        %v1410 = vpow.pop %v1409
        %v1411 = vmul.f32 %v1391, 1.442695
        %v1412 = vpow.pop %v1411
        %v1413 = vmul.f32 %v1392, 1.442695
        %v1414 = vpow.pop %v1413
        %v1415 = vmul.f32 %v1393, 1.442695
        %v1416 = vpow.pop %v1415
        %v1417 = vmul.f32 %v1394, 1.442695
        %v1418 = vpow.pop %v1417
        %v1419 = vmul.f32 %v1395, 1.442695
        %v1420 = vpow.pop %v1419
        %v1421 = vmul.f32 %v1396, 1.442695
        %v1422 = vpow.pop %v1421
        %v1423 = vmul.f32 %v1397, 1.442695
        %v1424 = vpow.pop %v1423
        %v1425 = vmul.f32 %v1398, 1.442695
        %v1426 = vpow.pop %v1425
        %v1427 = vmul.f32 %v1399, 1.442695
        %v1428 = vpow.pop %v1427
        %v1429 = vmul.f32 %v1400, 1.442695
        %v1430 = vpow.pop %v1429
        %v1431 = vmul.f32 %v1401, 1.442695
        %v1432 = vpow.pop %v1431
        %v1433 = vmul.f32 %v1402, 1.442695
        %v1434 = vpow.pop %v1433
        %v1435 = vpack.c.bf16 %v1406, %v1404
        %v1436 = vpack.c.bf16 %v1410, %v1408
        %v1437 = vpack.c.bf16 %v1414, %v1412
        %v1438 = vpack.c.bf16 %v1418, %v1416
        %v1439 = vpack.c.bf16 %v1422, %v1420
        %v1440 = vpack.c.bf16 %v1426, %v1424
        %v1441 = vpack.c.bf16 %v1430, %v1428
        %v1442 = vpack.c.bf16 %v1434, %v1432
        %s1443 = scalar_lea.vmem [#allocation3], 16
        %v1444 = vld [vmem:[%s1443] sm:$0xff]
        %v1445 = vld [vmem:[%s1443 + $0x8] sm:$0x1]
        %v1447 = vlaneseq
        %v1448 = vshrl.u32 %v1447, 7
        %v1449 = vsub.s32 0, %v1448
        %v1450 = vrot.slane %v1380, %v1449
        %v1452 = vmul.f32 %v1450, %v1444
        %v1453 = vmul.f32 %v1450, %v1445
        %s1454 = scalar_lea.vmem %s740, 8 [#allocation7]
        %v1455 = vld [vmem:[%s1454] sm:$0xf]
        %v1456 = vld [vmem:[%s1454 + $0x4] sm:$0x1]
        %v1459 = vunpack.c.l.b16 %v1455
        %v1460 = vunpack.c.l.b16 %v1456
        %v1461 = vpack.c.b16 %v1460, %v1459
        %1463 = vmatprep.subr.bf16.mxu0 0
        %1464 = vmatpush1.bf16.msra.mxu0 %v1442
        %1465 = vmatprep.subr.bf16.mxu0 0
        %1466 = vmatpush1.bf16.msra.mxu0 %v1441
        %1467 = vmatprep.subr.bf16.mxu0 0
        %1468 = vmatpush1.bf16.msra.mxu0 %v1440
        %1469 = vmatprep.subr.bf16.mxu0 0
        %1470 = vmatpush1.bf16.msra.mxu0 %v1439
        %1471 = vmatprep.subr.bf16.mxu0 0
        %1472 = vmatpush1.bf16.msra.mxu0 %v1438
        %1473 = vmatprep.subr.bf16.mxu0 0
        %1474 = vmatpush1.bf16.msra.mxu0 %v1437
        %1475 = vmatprep.subr.bf16.mxu0 0
        %1476 = vmatpush1.bf16.msra.mxu0 %v1436
        %1477 = vmatprep.subr.bf16.mxu0 0
        %1478 = vmatpush1.bf16.msra.mxu0 %v1435
        %1479 = vmatprep.subr.bf16.mxu0 0
        %1480 = vmatpush2.bf16.msra.mxu0 0
        %1481 = vmatprep.subr.bf16.mxu0 0
        %1482 = vmatpush2.bf16.msra.mxu0 0
        %1483 = vmatprep.subr.bf16.mxu0 0
        %1484 = vmatpush2.bf16.msra.mxu0 0
        %1485 = vmatprep.subr.bf16.mxu0 0
        %1486 = vmatpush2.bf16.msra.mxu0 0
        %1487 = vmatprep.subr.bf16.mxu0 0
        %1488 = vmatpush2.bf16.msra.mxu0 0
        %1489 = vmatprep.subr.bf16.mxu0 0
        %1490 = vmatpush2.bf16.msra.mxu0 0
        %1491 = vmatprep.subr.bf16.mxu0 0
        %1492 = vmatpush2.bf16.msra.mxu0 0
        %1493 = vmatprep.subr.bf16.mxu0 0
        %1494 = vmatpush2.bf16.msra.mxu0 0
        %1495 = vmatprep.mubr.bf16.mxu0 0
        %1496 = vmatmul.mubr.bf16.gmra.mxu0 %v1461
        %v1497 = vpop.f32.mrf.mxu0
        %v1498 = vadd.f32 0.0, %v1497
        %v1499 = vpop.f32.mrf.mxu0
        %v1500 = vpop.f32.mrf.mxu0
        %v1501 = vadd.f32 0.0, %v1500
        %v1502 = vpop.f32.mrf.mxu0
        %1503 = vdwg.mxu0
        %v1504 = vadd.f32 %v1452, %v1498
        %v1505 = vadd.f32 %v1453, %v1501
        %1506 = vst [vmem:[%s1443] sm:$0xff] %v1504
        %1507 = vst [vmem:[%s1443 + $0x8] sm:$0x1] %v1505
        %1508 = vst [vmem:[%s1354] sm:$0x1] %v1377
        %s1509 = scalar_lea.vmem %s726, 256 [#allocation5]
        %v1510 = vld [vmem:[%s1509] sm:$0xff]
        %v1511 = vld [vmem:[%s1509 + $0x8] sm:$0xff]
        %v1512 = vld [vmem:[%s1509 + $0x10] sm:$0xff]
        %v1513 = vld [vmem:[%s1509 + $0x18] sm:$0xff]
        %v1514 = vld [vmem:[%s1509 + $0x20] sm:$0xff]
        %v1515 = vld [vmem:[%s1509 + $0x28] sm:$0xff]
        %v1516 = vld [vmem:[%s1509 + $0x30] sm:$0xff]
        %v1517 = vld [vmem:[%s1509 + $0x38] sm:$0xff]
        %v1518 = vld [vmem:[%s1509 + $0x40] sm:$0xff]
        %v1519 = vld [vmem:[%s1509 + $0x48] sm:$0xff]
        %v1520 = vld [vmem:[%s1509 + $0x50] sm:$0xff]
        %v1521 = vld [vmem:[%s1509 + $0x58] sm:$0xff]
        %v1522 = vld [vmem:[%s1509 + $0x60] sm:$0xff]
        %v1523 = vld [vmem:[%s1509 + $0x68] sm:$0xff]
        %v1524 = vld [vmem:[%s1509 + $0x70] sm:$0xff]
        %v1525 = vld [vmem:[%s1509 + $0x78] sm:$0xff]
        %s1526 = scalar_lea.vmem %s733, 2 [#allocation6]
        %v1527 = vld [vmem:[%s1526] sm:$0x1]
        %1529 = vset.pattern.permute.xlu0 0
        %1530 = vperm.xlu0 %1529, %v1510
        %v1531 = vpop.permute.xlu0 %1530
        %1534 = vset.pattern.permute.xlu0 0
        %1535 = vperm.xlu0 %1534, %v1511
        %v1536 = vpop.permute.xlu0 %1535
        %1539 = vset.pattern.permute.xlu0 0
        %1540 = vperm.xlu0 %1539, %v1512
        %v1541 = vpop.permute.xlu0 %1540
        %1544 = vset.pattern.permute.xlu0 0
        %1545 = vperm.xlu0 %1544, %v1513
        %v1546 = vpop.permute.xlu0 %1545
        %1549 = vset.pattern.permute.xlu0 0
        %1550 = vperm.xlu0 %1549, %v1514
        %v1551 = vpop.permute.xlu0 %1550
        %1554 = vset.pattern.permute.xlu0 0
        %1555 = vperm.xlu0 %1554, %v1515
        %v1556 = vpop.permute.xlu0 %1555
        %1559 = vset.pattern.permute.xlu0 0
        %1560 = vperm.xlu0 %1559, %v1516
        %v1561 = vpop.permute.xlu0 %1560
        %1564 = vset.pattern.permute.xlu0 0
        %1565 = vperm.xlu0 %1564, %v1517
        %v1566 = vpop.permute.xlu0 %1565
        %1569 = vset.pattern.permute.xlu0 0
        %1570 = vperm.xlu0 %1569, %v1518
        %v1571 = vpop.permute.xlu0 %1570
        %1574 = vset.pattern.permute.xlu0 0
        %1575 = vperm.xlu0 %1574, %v1519
        %v1576 = vpop.permute.xlu0 %1575
        %1579 = vset.pattern.permute.xlu0 0
        %1580 = vperm.xlu0 %1579, %v1520
        %v1581 = vpop.permute.xlu0 %1580
        %1584 = vset.pattern.permute.xlu0 0
        %1585 = vperm.xlu0 %1584, %v1521
        %v1586 = vpop.permute.xlu0 %1585
        %1589 = vset.pattern.permute.xlu0 0
        %1590 = vperm.xlu0 %1589, %v1522
        %v1591 = vpop.permute.xlu0 %1590
        %1594 = vset.pattern.permute.xlu0 0
        %1595 = vperm.xlu0 %1594, %v1523
        %v1596 = vpop.permute.xlu0 %1595
        %1599 = vset.pattern.permute.xlu0 0
        %1600 = vperm.xlu0 %1599, %v1524
        %v1601 = vpop.permute.xlu0 %1600
        %1604 = vset.pattern.permute.xlu0 0
        %1605 = vperm.xlu0 %1604, %v1525
        %v1606 = vpop.permute.xlu0 %1605
        %v1609 = vlaneseq
        %v1610 = vshrl.u32 %v1609, 7
        %v1611 = vsub.s32 0, %v1610
        %v1612 = vrot.slane %v1527, %v1611
        %v1614 = vadd.f32 %v1531, %v1612
        %v1615 = vadd.f32 %v1536, %v1612
        %v1616 = vadd.f32 %v1541, %v1612
        %v1617 = vadd.f32 %v1546, %v1612
        %v1618 = vadd.f32 %v1551, %v1612
        %v1619 = vadd.f32 %v1556, %v1612
        %v1620 = vadd.f32 %v1561, %v1612
        %v1621 = vadd.f32 %v1566, %v1612
        %v1622 = vadd.f32 %v1571, %v1612
        %v1623 = vadd.f32 %v1576, %v1612
        %v1624 = vadd.f32 %v1581, %v1612
        %v1625 = vadd.f32 %v1586, %v1612
        %v1626 = vadd.f32 %v1591, %v1612
        %v1627 = vadd.f32 %v1596, %v1612
        %v1628 = vadd.f32 %v1601, %v1612
        %v1629 = vadd.f32 %v1606, %v1612
        %v1630 = vmul.f32 %v1614, 0.2
        %v1631 = vmul.f32 %v1615, 0.2
        %v1632 = vmul.f32 %v1616, 0.2
        %v1633 = vmul.f32 %v1617, 0.2
        %v1634 = vmul.f32 %v1618, 0.2
        %v1635 = vmul.f32 %v1619, 0.2
        %v1636 = vmul.f32 %v1620, 0.2
        %v1637 = vmul.f32 %v1621, 0.2
        %v1638 = vmul.f32 %v1622, 0.2
        %v1639 = vmul.f32 %v1623, 0.2
        %v1640 = vmul.f32 %v1624, 0.2
        %v1641 = vmul.f32 %v1625, 0.2
        %v1642 = vmul.f32 %v1626, 0.2
        %v1643 = vmul.f32 %v1627, 0.2
        %v1644 = vmul.f32 %v1628, 0.2
        %v1645 = vmul.f32 %v1629, 0.2
        %v1646 = vmax.f32 %v1614, %v1630
        %v1647 = vmax.f32 %v1615, %v1631
        %v1648 = vmax.f32 %v1616, %v1632
        %v1649 = vmax.f32 %v1617, %v1633
        %v1650 = vmax.f32 %v1618, %v1634
        %v1651 = vmax.f32 %v1619, %v1635
        %v1652 = vmax.f32 %v1620, %v1636
        %v1653 = vmax.f32 %v1621, %v1637
        %v1654 = vmax.f32 %v1622, %v1638
        %v1655 = vmax.f32 %v1623, %v1639
        %v1656 = vmax.f32 %v1624, %v1640
        %v1657 = vmax.f32 %v1625, %v1641
        %v1658 = vmax.f32 %v1626, %v1642
        %v1659 = vmax.f32 %v1627, %v1643
        %v1660 = vmax.f32 %v1628, %v1644
        %v1661 = vmax.f32 %v1629, %v1645
        %v1662 = vadd.f32 %v1646, %v850
        %v1663 = vadd.f32 %v1647, %v851
        %v1664 = vadd.f32 %v1648, %v852
        %v1665 = vadd.f32 %v1649, %v853
        %v1666 = vadd.f32 %v1650, %v854
        %v1667 = vadd.f32 %v1651, %v855
        %v1668 = vadd.f32 %v1652, %v856
        %v1669 = vadd.f32 %v1653, %v857
        %v1670 = vadd.f32 %v1654, %v858
        %v1671 = vadd.f32 %v1655, %v859
        %v1672 = vadd.f32 %v1656, %v860
        %v1673 = vadd.f32 %v1657, %v861
        %v1674 = vadd.f32 %v1658, %v862
        %v1675 = vadd.f32 %v1659, %v863
        %v1676 = vadd.f32 %v1660, %v864
        %v1677 = vadd.f32 %v1661, %v865
        %s1678 = scalar_lea.vmem [#allocation2], 2
        %v1679 = vld [vmem:[%s1678] sm:$0x1]
        %v1680 = vmax.f32 %v1662, %v1666
        %v1681 = vmax.f32 %v1663, %v1667
        %v1682 = vmax.f32 %v1664, %v1668
        %v1683 = vmax.f32 %v1665, %v1669
        %v1684 = vmax.f32 %v1680, %v1670
        %v1685 = vmax.f32 %v1681, %v1671
        %v1686 = vmax.f32 %v1682, %v1672
        %v1687 = vmax.f32 %v1683, %v1673
        %v1688 = vmax.f32 %v1684, %v1674
        %v1689 = vmax.f32 %v1685, %v1675
        %v1690 = vmax.f32 %v1686, %v1676
        %v1691 = vmax.f32 %v1687, %v1677
        %v1692 = vmax.f32 %v1688, %v1689
        %v1693 = vmax.f32 %v1690, %v1691
        %v1694 = vmax.f32 %v1692, %v1693
        %v1695 = vrot.slane %v1694, 4
        %v1696 = vmax.f32 %v1694, %v1695
        %v1697 = vrot.slane %v1696, 2
        %v1698 = vmax.f32 %v1696, %v1697
        %v1699 = vrot.slane %v1698, 1
        %v1700 = vmax.f32 %v1698, %v1699
        %v1701 = vmax.f32 %v1679, %v1700
        %v1702 = vsub.f32 %v1679, %v1701
        %v1703 = vmul.f32 %v1702, 1.442695
        %v1704 = vpow.pop %v1703
        %v1706 = vlaneseq
        %v1707 = vshrl.u32 %v1706, 7
        %v1708 = vsub.s32 0, %v1707
        %v1709 = vrot.slane %v1701, %v1708
        %v1711 = vsub.f32 %v1662, %v1709
        %v1712 = vsub.f32 %v1663, %v1709
        %v1713 = vsub.f32 %v1664, %v1709
        %v1714 = vsub.f32 %v1665, %v1709
        %v1715 = vsub.f32 %v1666, %v1709
        %v1716 = vsub.f32 %v1667, %v1709
        %v1717 = vsub.f32 %v1668, %v1709
        %v1718 = vsub.f32 %v1669, %v1709
        %v1719 = vsub.f32 %v1670, %v1709
        %v1720 = vsub.f32 %v1671, %v1709
        %v1721 = vsub.f32 %v1672, %v1709
        %v1722 = vsub.f32 %v1673, %v1709
        %v1723 = vsub.f32 %v1674, %v1709
        %v1724 = vsub.f32 %v1675, %v1709
        %v1725 = vsub.f32 %v1676, %v1709
        %v1726 = vsub.f32 %v1677, %v1709
        %v1727 = vmul.f32 %v1711, 1.442695
        %v1728 = vpow.pop %v1727
        %v1729 = vmul.f32 %v1712, 1.442695
        %v1730 = vpow.pop %v1729
        %v1731 = vmul.f32 %v1713, 1.442695
        %v1732 = vpow.pop %v1731
        %v1733 = vmul.f32 %v1714, 1.442695
        %v1734 = vpow.pop %v1733
        %v1735 = vmul.f32 %v1715, 1.442695
        %v1736 = vpow.pop %v1735
        %v1737 = vmul.f32 %v1716, 1.442695
        %v1738 = vpow.pop %v1737
        %v1739 = vmul.f32 %v1717, 1.442695
        %v1740 = vpow.pop %v1739
        %v1741 = vmul.f32 %v1718, 1.442695
        %v1742 = vpow.pop %v1741
        %v1743 = vmul.f32 %v1719, 1.442695
        %v1744 = vpow.pop %v1743
        %v1745 = vmul.f32 %v1720, 1.442695
        %v1746 = vpow.pop %v1745
        %v1747 = vmul.f32 %v1721, 1.442695
        %v1748 = vpow.pop %v1747
        %v1749 = vmul.f32 %v1722, 1.442695
        %v1750 = vpow.pop %v1749
        %v1751 = vmul.f32 %v1723, 1.442695
        %v1752 = vpow.pop %v1751
        %v1753 = vmul.f32 %v1724, 1.442695
        %v1754 = vpow.pop %v1753
        %v1755 = vmul.f32 %v1725, 1.442695
        %v1756 = vpow.pop %v1755
        %v1757 = vmul.f32 %v1726, 1.442695
        %v1758 = vpow.pop %v1757
        %v1759 = vpack.c.bf16 %v1730, %v1728
        %v1760 = vpack.c.bf16 %v1734, %v1732
        %v1761 = vpack.c.bf16 %v1738, %v1736
        %v1762 = vpack.c.bf16 %v1742, %v1740
        %v1763 = vpack.c.bf16 %v1746, %v1744
        %v1764 = vpack.c.bf16 %v1750, %v1748
        %v1765 = vpack.c.bf16 %v1754, %v1752
        %v1766 = vpack.c.bf16 %v1758, %v1756
        %s1767 = scalar_lea.vmem [#allocation3], 32
        %v1768 = vld [vmem:[%s1767] sm:$0xff]
        %v1769 = vld [vmem:[%s1767 + $0x8] sm:$0x1]
        %v1771 = vlaneseq
        %v1772 = vshrl.u32 %v1771, 7
        %v1773 = vsub.s32 0, %v1772
        %v1774 = vrot.slane %v1704, %v1773
        %v1776 = vmul.f32 %v1774, %v1768
        %v1777 = vmul.f32 %v1774, %v1769
        %s1778 = scalar_lea.vmem %s740, 16 [#allocation7]
        %v1779 = vld [vmem:[%s1778] sm:$0xf]
        %v1780 = vld [vmem:[%s1778 + $0x4] sm:$0x1]
        %v1783 = vunpack.c.l.b16 %v1779
        %v1784 = vunpack.c.l.b16 %v1780
        %v1785 = vpack.c.b16 %v1784, %v1783
        %1787 = vmatprep.subr.bf16.mxu0 0
        %1788 = vmatpush1.bf16.msra.mxu0 %v1766
        %1789 = vmatprep.subr.bf16.mxu0 0
        %1790 = vmatpush1.bf16.msra.mxu0 %v1765
        %1791 = vmatprep.subr.bf16.mxu0 0
        %1792 = vmatpush1.bf16.msra.mxu0 %v1764
        %1793 = vmatprep.subr.bf16.mxu0 0
        %1794 = vmatpush1.bf16.msra.mxu0 %v1763
        %1795 = vmatprep.subr.bf16.mxu0 0
        %1796 = vmatpush1.bf16.msra.mxu0 %v1762
        %1797 = vmatprep.subr.bf16.mxu0 0
        %1798 = vmatpush1.bf16.msra.mxu0 %v1761
        %1799 = vmatprep.subr.bf16.mxu0 0
        %1800 = vmatpush1.bf16.msra.mxu0 %v1760
        %1801 = vmatprep.subr.bf16.mxu0 0
        %1802 = vmatpush1.bf16.msra.mxu0 %v1759
        %1803 = vmatprep.subr.bf16.mxu0 0
        %1804 = vmatpush2.bf16.msra.mxu0 0
        %1805 = vmatprep.subr.bf16.mxu0 0
        %1806 = vmatpush2.bf16.msra.mxu0 0
        %1807 = vmatprep.subr.bf16.mxu0 0
        %1808 = vmatpush2.bf16.msra.mxu0 0
        %1809 = vmatprep.subr.bf16.mxu0 0
        %1810 = vmatpush2.bf16.msra.mxu0 0
        %1811 = vmatprep.subr.bf16.mxu0 0
        %1812 = vmatpush2.bf16.msra.mxu0 0
        %1813 = vmatprep.subr.bf16.mxu0 0
        %1814 = vmatpush2.bf16.msra.mxu0 0
        %1815 = vmatprep.subr.bf16.mxu0 0
        %1816 = vmatpush2.bf16.msra.mxu0 0
        %1817 = vmatprep.subr.bf16.mxu0 0
        %1818 = vmatpush2.bf16.msra.mxu0 0
        %1819 = vmatprep.mubr.bf16.mxu0 0
        %1820 = vmatmul.mubr.bf16.gmra.mxu0 %v1785
        %v1821 = vpop.f32.mrf.mxu0
        %v1822 = vadd.f32 0.0, %v1821
        %v1823 = vpop.f32.mrf.mxu0
        %v1824 = vpop.f32.mrf.mxu0
        %v1825 = vadd.f32 0.0, %v1824
        %v1826 = vpop.f32.mrf.mxu0
        %1827 = vdwg.mxu0
        %v1828 = vadd.f32 %v1776, %v1822
        %v1829 = vadd.f32 %v1777, %v1825
        %1830 = vst [vmem:[%s1767] sm:$0xff] %v1828
        %1831 = vst [vmem:[%s1767 + $0x8] sm:$0x1] %v1829
        %1832 = vst [vmem:[%s1678] sm:$0x1] %v1701
        %s1833 = scalar_lea.vmem %s726, 384 [#allocation5]
        %v1834 = vld [vmem:[%s1833] sm:$0xff]
        %v1835 = vld [vmem:[%s1833 + $0x8] sm:$0xff]
        %v1836 = vld [vmem:[%s1833 + $0x10] sm:$0xff]
        %v1837 = vld [vmem:[%s1833 + $0x18] sm:$0xff]
        %v1838 = vld [vmem:[%s1833 + $0x20] sm:$0xff]
        %v1839 = vld [vmem:[%s1833 + $0x28] sm:$0xff]
        %v1840 = vld [vmem:[%s1833 + $0x30] sm:$0xff]
        %v1841 = vld [vmem:[%s1833 + $0x38] sm:$0xff]
        %v1842 = vld [vmem:[%s1833 + $0x40] sm:$0xff]
        %v1843 = vld [vmem:[%s1833 + $0x48] sm:$0xff]
        %v1844 = vld [vmem:[%s1833 + $0x50] sm:$0xff]
        %v1845 = vld [vmem:[%s1833 + $0x58] sm:$0xff]
        %v1846 = vld [vmem:[%s1833 + $0x60] sm:$0xff]
        %v1847 = vld [vmem:[%s1833 + $0x68] sm:$0xff]
        %v1848 = vld [vmem:[%s1833 + $0x70] sm:$0xff]
        %v1849 = vld [vmem:[%s1833 + $0x78] sm:$0xff]
        %s1850 = scalar_lea.vmem %s733, 3 [#allocation6]
        %v1851 = vld [vmem:[%s1850] sm:$0x1]
        %1853 = vset.pattern.permute.xlu0 0
        %1854 = vperm.xlu0 %1853, %v1834
        %v1855 = vpop.permute.xlu0 %1854
        %1858 = vset.pattern.permute.xlu0 0
        %1859 = vperm.xlu0 %1858, %v1835
        %v1860 = vpop.permute.xlu0 %1859
        %1863 = vset.pattern.permute.xlu0 0
        %1864 = vperm.xlu0 %1863, %v1836
        %v1865 = vpop.permute.xlu0 %1864
        %1868 = vset.pattern.permute.xlu0 0
        %1869 = vperm.xlu0 %1868, %v1837
        %v1870 = vpop.permute.xlu0 %1869
        %1873 = vset.pattern.permute.xlu0 0
        %1874 = vperm.xlu0 %1873, %v1838
        %v1875 = vpop.permute.xlu0 %1874
        %1878 = vset.pattern.permute.xlu0 0
        %1879 = vperm.xlu0 %1878, %v1839
        %v1880 = vpop.permute.xlu0 %1879
        %1883 = vset.pattern.permute.xlu0 0
        %1884 = vperm.xlu0 %1883, %v1840
        %v1885 = vpop.permute.xlu0 %1884
        %1888 = vset.pattern.permute.xlu0 0
        %1889 = vperm.xlu0 %1888, %v1841
        %v1890 = vpop.permute.xlu0 %1889
        %1893 = vset.pattern.permute.xlu0 0
        %1894 = vperm.xlu0 %1893, %v1842
        %v1895 = vpop.permute.xlu0 %1894
        %1898 = vset.pattern.permute.xlu0 0
        %1899 = vperm.xlu0 %1898, %v1843
        %v1900 = vpop.permute.xlu0 %1899
        %1903 = vset.pattern.permute.xlu0 0
        %1904 = vperm.xlu0 %1903, %v1844
        %v1905 = vpop.permute.xlu0 %1904
        %1908 = vset.pattern.permute.xlu0 0
        %1909 = vperm.xlu0 %1908, %v1845
        %v1910 = vpop.permute.xlu0 %1909
        %1913 = vset.pattern.permute.xlu0 0
        %1914 = vperm.xlu0 %1913, %v1846
        %v1915 = vpop.permute.xlu0 %1914
        %1918 = vset.pattern.permute.xlu0 0
        %1919 = vperm.xlu0 %1918, %v1847
        %v1920 = vpop.permute.xlu0 %1919
        %1923 = vset.pattern.permute.xlu0 0
        %1924 = vperm.xlu0 %1923, %v1848
        %v1925 = vpop.permute.xlu0 %1924
        %1928 = vset.pattern.permute.xlu0 0
        %1929 = vperm.xlu0 %1928, %v1849
        %v1930 = vpop.permute.xlu0 %1929
        %v1933 = vlaneseq
        %v1934 = vshrl.u32 %v1933, 7
        %v1935 = vsub.s32 0, %v1934
        %v1936 = vrot.slane %v1851, %v1935
        %v1938 = vadd.f32 %v1855, %v1936
        %v1939 = vadd.f32 %v1860, %v1936
        %v1940 = vadd.f32 %v1865, %v1936
        %v1941 = vadd.f32 %v1870, %v1936
        %v1942 = vadd.f32 %v1875, %v1936
        %v1943 = vadd.f32 %v1880, %v1936
        %v1944 = vadd.f32 %v1885, %v1936
        %v1945 = vadd.f32 %v1890, %v1936
        %v1946 = vadd.f32 %v1895, %v1936
        %v1947 = vadd.f32 %v1900, %v1936
        %v1948 = vadd.f32 %v1905, %v1936
        %v1949 = vadd.f32 %v1910, %v1936
        %v1950 = vadd.f32 %v1915, %v1936
        %v1951 = vadd.f32 %v1920, %v1936
        %v1952 = vadd.f32 %v1925, %v1936
        %v1953 = vadd.f32 %v1930, %v1936
        %v1954 = vmul.f32 %v1938, 0.2
        %v1955 = vmul.f32 %v1939, 0.2
        %v1956 = vmul.f32 %v1940, 0.2
        %v1957 = vmul.f32 %v1941, 0.2
        %v1958 = vmul.f32 %v1942, 0.2
        %v1959 = vmul.f32 %v1943, 0.2
        %v1960 = vmul.f32 %v1944, 0.2
        %v1961 = vmul.f32 %v1945, 0.2
        %v1962 = vmul.f32 %v1946, 0.2
        %v1963 = vmul.f32 %v1947, 0.2
        %v1964 = vmul.f32 %v1948, 0.2
        %v1965 = vmul.f32 %v1949, 0.2
        %v1966 = vmul.f32 %v1950, 0.2
        %v1967 = vmul.f32 %v1951, 0.2
        %v1968 = vmul.f32 %v1952, 0.2
        %v1969 = vmul.f32 %v1953, 0.2
        %v1970 = vmax.f32 %v1938, %v1954
        %v1971 = vmax.f32 %v1939, %v1955
        %v1972 = vmax.f32 %v1940, %v1956
        %v1973 = vmax.f32 %v1941, %v1957
        %v1974 = vmax.f32 %v1942, %v1958
        %v1975 = vmax.f32 %v1943, %v1959
        %v1976 = vmax.f32 %v1944, %v1960
        %v1977 = vmax.f32 %v1945, %v1961
        %v1978 = vmax.f32 %v1946, %v1962
        %v1979 = vmax.f32 %v1947, %v1963
        %v1980 = vmax.f32 %v1948, %v1964
        %v1981 = vmax.f32 %v1949, %v1965
        %v1982 = vmax.f32 %v1950, %v1966
        %v1983 = vmax.f32 %v1951, %v1967
        %v1984 = vmax.f32 %v1952, %v1968
        %v1985 = vmax.f32 %v1953, %v1969
        %v1986 = vadd.f32 %v1970, %v850
        %v1987 = vadd.f32 %v1971, %v851
        %v1988 = vadd.f32 %v1972, %v852
        %v1989 = vadd.f32 %v1973, %v853
        %v1990 = vadd.f32 %v1974, %v854
        %v1991 = vadd.f32 %v1975, %v855
        %v1992 = vadd.f32 %v1976, %v856
        %v1993 = vadd.f32 %v1977, %v857
        %v1994 = vadd.f32 %v1978, %v858
        %v1995 = vadd.f32 %v1979, %v859
        %v1996 = vadd.f32 %v1980, %v860
        %v1997 = vadd.f32 %v1981, %v861
        %v1998 = vadd.f32 %v1982, %v862
        %v1999 = vadd.f32 %v1983, %v863
        %v2000 = vadd.f32 %v1984, %v864
        %v2001 = vadd.f32 %v1985, %v865
        %s2002 = scalar_lea.vmem [#allocation2], 3
        %v2003 = vld [vmem:[%s2002] sm:$0x1]
        %v2004 = vmax.f32 %v1986, %v1990
        %v2005 = vmax.f32 %v1987, %v1991
        %v2006 = vmax.f32 %v1988, %v1992
        %v2007 = vmax.f32 %v1989, %v1993
        %v2008 = vmax.f32 %v2004, %v1994
        %v2009 = vmax.f32 %v2005, %v1995
        %v2010 = vmax.f32 %v2006, %v1996
        %v2011 = vmax.f32 %v2007, %v1997
        %v2012 = vmax.f32 %v2008, %v1998
        %v2013 = vmax.f32 %v2009, %v1999
        %v2014 = vmax.f32 %v2010, %v2000
        %v2015 = vmax.f32 %v2011, %v2001
        %v2016 = vmax.f32 %v2012, %v2013
        %v2017 = vmax.f32 %v2014, %v2015
        %v2018 = vmax.f32 %v2016, %v2017
        %v2019 = vrot.slane %v2018, 4
        %v2020 = vmax.f32 %v2018, %v2019
        %v2021 = vrot.slane %v2020, 2
        %v2022 = vmax.f32 %v2020, %v2021
        %v2023 = vrot.slane %v2022, 1
        %v2024 = vmax.f32 %v2022, %v2023
        %v2025 = vmax.f32 %v2003, %v2024
        %v2026 = vsub.f32 %v2003, %v2025
        %v2027 = vmul.f32 %v2026, 1.442695
        %v2028 = vpow.pop %v2027
        %v2030 = vlaneseq
        %v2031 = vshrl.u32 %v2030, 7
        %v2032 = vsub.s32 0, %v2031
        %v2033 = vrot.slane %v2025, %v2032
        %v2035 = vsub.f32 %v1986, %v2033
        %v2036 = vsub.f32 %v1987, %v2033
        %v2037 = vsub.f32 %v1988, %v2033
        %v2038 = vsub.f32 %v1989, %v2033
        %v2039 = vsub.f32 %v1990, %v2033
        %v2040 = vsub.f32 %v1991, %v2033
        %v2041 = vsub.f32 %v1992, %v2033
        %v2042 = vsub.f32 %v1993, %v2033
        %v2043 = vsub.f32 %v1994, %v2033
        %v2044 = vsub.f32 %v1995, %v2033
        %v2045 = vsub.f32 %v1996, %v2033
        %v2046 = vsub.f32 %v1997, %v2033
        %v2047 = vsub.f32 %v1998, %v2033
        %v2048 = vsub.f32 %v1999, %v2033
        %v2049 = vsub.f32 %v2000, %v2033
        %v2050 = vsub.f32 %v2001, %v2033
        %v2051 = vmul.f32 %v2035, 1.442695
        %v2052 = vpow.pop %v2051
        %v2053 = vmul.f32 %v2036, 1.442695
        %v2054 = vpow.pop %v2053
        %v2055 = vmul.f32 %v2037, 1.442695
        %v2056 = vpow.pop %v2055
        %v2057 = vmul.f32 %v2038, 1.442695
        %v2058 = vpow.pop %v2057
        %v2059 = vmul.f32 %v2039, 1.442695
        %v2060 = vpow.pop %v2059
        %v2061 = vmul.f32 %v2040, 1.442695
        %v2062 = vpow.pop %v2061
        %v2063 = vmul.f32 %v2041, 1.442695
        %v2064 = vpow.pop %v2063
        %v2065 = vmul.f32 %v2042, 1.442695
        %v2066 = vpow.pop %v2065
        %v2067 = vmul.f32 %v2043, 1.442695
        %v2068 = vpow.pop %v2067
        %v2069 = vmul.f32 %v2044, 1.442695
        %v2070 = vpow.pop %v2069
        %v2071 = vmul.f32 %v2045, 1.442695
        %v2072 = vpow.pop %v2071
        %v2073 = vmul.f32 %v2046, 1.442695
        %v2074 = vpow.pop %v2073
        %v2075 = vmul.f32 %v2047, 1.442695
        %v2076 = vpow.pop %v2075
        %v2077 = vmul.f32 %v2048, 1.442695
        %v2078 = vpow.pop %v2077
        %v2079 = vmul.f32 %v2049, 1.442695
        %v2080 = vpow.pop %v2079
        %v2081 = vmul.f32 %v2050, 1.442695
        %v2082 = vpow.pop %v2081
        %v2083 = vpack.c.bf16 %v2054, %v2052
        %v2084 = vpack.c.bf16 %v2058, %v2056
        %v2085 = vpack.c.bf16 %v2062, %v2060
        %v2086 = vpack.c.bf16 %v2066, %v2064
        %v2087 = vpack.c.bf16 %v2070, %v2068
        %v2088 = vpack.c.bf16 %v2074, %v2072
        %v2089 = vpack.c.bf16 %v2078, %v2076
        %v2090 = vpack.c.bf16 %v2082, %v2080
        %s2091 = scalar_lea.vmem [#allocation3], 48
        %v2092 = vld [vmem:[%s2091] sm:$0xff]
        %v2093 = vld [vmem:[%s2091 + $0x8] sm:$0x1]
        %v2095 = vlaneseq
        %v2096 = vshrl.u32 %v2095, 7
        %v2097 = vsub.s32 0, %v2096
        %v2098 = vrot.slane %v2028, %v2097
        %v2100 = vmul.f32 %v2098, %v2092
        %v2101 = vmul.f32 %v2098, %v2093
        %s2102 = scalar_lea.vmem %s740, 24 [#allocation7]
        %v2103 = vld [vmem:[%s2102] sm:$0xf]
        %v2104 = vld [vmem:[%s2102 + $0x4] sm:$0x1]
        %v2107 = vunpack.c.l.b16 %v2103
        %v2108 = vunpack.c.l.b16 %v2104
        %v2109 = vpack.c.b16 %v2108, %v2107
        %2111 = vmatprep.subr.bf16.mxu0 0
        %2112 = vmatpush1.bf16.msra.mxu0 %v2090
        %2113 = vmatprep.subr.bf16.mxu0 0
        %2114 = vmatpush1.bf16.msra.mxu0 %v2089
        %2115 = vmatprep.subr.bf16.mxu0 0
        %2116 = vmatpush1.bf16.msra.mxu0 %v2088
        %2117 = vmatprep.subr.bf16.mxu0 0
        %2118 = vmatpush1.bf16.msra.mxu0 %v2087
        %2119 = vmatprep.subr.bf16.mxu0 0
        %2120 = vmatpush1.bf16.msra.mxu0 %v2086
        %2121 = vmatprep.subr.bf16.mxu0 0
        %2122 = vmatpush1.bf16.msra.mxu0 %v2085
        %2123 = vmatprep.subr.bf16.mxu0 0
        %2124 = vmatpush1.bf16.msra.mxu0 %v2084
        %2125 = vmatprep.subr.bf16.mxu0 0
        %2126 = vmatpush1.bf16.msra.mxu0 %v2083
        %2127 = vmatprep.subr.bf16.mxu0 0
        %2128 = vmatpush2.bf16.msra.mxu0 0
        %2129 = vmatprep.subr.bf16.mxu0 0
        %2130 = vmatpush2.bf16.msra.mxu0 0
        %2131 = vmatprep.subr.bf16.mxu0 0
        %2132 = vmatpush2.bf16.msra.mxu0 0
        %2133 = vmatprep.subr.bf16.mxu0 0
        %2134 = vmatpush2.bf16.msra.mxu0 0
        %2135 = vmatprep.subr.bf16.mxu0 0
        %2136 = vmatpush2.bf16.msra.mxu0 0
        %2137 = vmatprep.subr.bf16.mxu0 0
        %2138 = vmatpush2.bf16.msra.mxu0 0
        %2139 = vmatprep.subr.bf16.mxu0 0
        %2140 = vmatpush2.bf16.msra.mxu0 0
        %2141 = vmatprep.subr.bf16.mxu0 0
        %2142 = vmatpush2.bf16.msra.mxu0 0
        %2143 = vmatprep.mubr.bf16.mxu0 0
        %2144 = vmatmul.mubr.bf16.gmra.mxu0 %v2109
        %v2145 = vpop.f32.mrf.mxu0
        %v2146 = vadd.f32 0.0, %v2145
        %v2147 = vpop.f32.mrf.mxu0
        %v2148 = vpop.f32.mrf.mxu0
        %v2149 = vadd.f32 0.0, %v2148
        %v2150 = vpop.f32.mrf.mxu0
        %2151 = vdwg.mxu0
        %v2152 = vadd.f32 %v2100, %v2146
        %v2153 = vadd.f32 %v2101, %v2149
        %2154 = vst [vmem:[%s2091] sm:$0xff] %v2152
        %2155 = vst [vmem:[%s2091 + $0x8] sm:$0x1] %v2153
        %2156 = vst [vmem:[%s2002] sm:$0x1] %v2025
        %p2157 = scmp.eq.s32.totalorder %s25, 1
        // Predicated region
        $region200: #{tpu_custom_call.1} parent=178 // pred_check
          %p2158 = pneg %p2157
        $region201: #{tpu_custom_call.1} parent=178 // pred_check_branch
          %2160 = sbr.rel (%p2158) target = $region203
        $region202: #{tpu_custom_call.1} parent=178 // pred_region
          %v2161 = vld [vmem:[#allocation3] sm:$0xff]
          %v2162 = vld [vmem:[#allocation3 + $0x8] sm:$0x1]
          %v2163 = vmax.f32 %v2162, 1e-20
          %v2164 = vrcp.pop %v2163
          %v2165 = vlaneseq
          %v2166 = vshrl.u32 %v2165, 7
          %v2167 = vsub.s32 0, %v2166
          %v2168 = vrot.slane %v2164, %v2167
          %v2169 = vmul.f32 %v2161, %v2168
          %v2170 = vld [vmem:[%s4] sm:$0xff]
          %2172 = vset.pattern.permute.xlu0 0
          %2173 = vperm.xlu0 %2172, %v2170
          %v2174 = vpop.permute.xlu0 %2173
          %v2176 = vmul.f32 %v2169, %v2174
          %v2177 = vld [vmem:[%s5] sm:$0xff]
          %2179 = vset.pattern.permute.xlu0 0
          %2180 = vperm.xlu0 %2179, %v2177
          %v2181 = vpop.permute.xlu0 %2180
          %v2183 = vadd.f32 %v2176, %v2181
          %vm2184 = vcmp.gt.f32.partialorder %v2183, 0.0
          %v2185 = vmin.f32 %v2183, 0.0
          %v2186 = vmul.f32 %v2185, 1.442695
          %v2187 = vpow.pop %v2186
          %v2188 = vsub.f32 %v2187, 1.0
          %v2189 = vsel %vm2184, %v2183, %v2188
          %2190 = vst [vmem:[%s778] sm:$0xff] %v2189
          %v2191 = vld [vmem:[%s1443] sm:$0xff]
          %v2192 = vld [vmem:[%s1443 + $0x8] sm:$0x1]
          %v2193 = vmax.f32 %v2192, 1e-20
          %v2194 = vrcp.pop %v2193
          %v2195 = vlaneseq
          %v2196 = vshrl.u32 %v2195, 7
          %v2197 = vsub.s32 0, %v2196
          %v2198 = vrot.slane %v2194, %v2197
          %v2199 = vmul.f32 %v2191, %v2198
          %s2200 = scalar_lea.vmem %s4, 8
          %v2201 = vld [vmem:[%s2200] sm:$0xff]
          %2203 = vset.pattern.permute.xlu0 0
          %2204 = vperm.xlu0 %2203, %v2201
          %v2205 = vpop.permute.xlu0 %2204
          %v2207 = vmul.f32 %v2199, %v2205
          %s2208 = scalar_lea.vmem %s5, 8
          %v2209 = vld [vmem:[%s2208] sm:$0xff]
          %2211 = vset.pattern.permute.xlu0 0
          %2212 = vperm.xlu0 %2211, %v2209
          %v2213 = vpop.permute.xlu0 %2212
          %v2215 = vadd.f32 %v2207, %v2213
          %vm2216 = vcmp.gt.f32.partialorder %v2215, 0.0
          %v2217 = vmin.f32 %v2215, 0.0
          %v2218 = vmul.f32 %v2217, 1.442695
          %v2219 = vpow.pop %v2218
          %v2220 = vsub.f32 %v2219, 1.0
          %v2221 = vsel %vm2216, %v2215, %v2220
          %s2222 = scalar_lea.vmem %s778, 8 [#allocation8]
          %2223 = vst [vmem:[%s2222] sm:$0xff] %v2221
          %v2224 = vld [vmem:[%s1767] sm:$0xff]
          %v2225 = vld [vmem:[%s1767 + $0x8] sm:$0x1]
          %v2226 = vmax.f32 %v2225, 1e-20
          %v2227 = vrcp.pop %v2226
          %v2228 = vlaneseq
          %v2229 = vshrl.u32 %v2228, 7
          %v2230 = vsub.s32 0, %v2229
          %v2231 = vrot.slane %v2227, %v2230
          %v2232 = vmul.f32 %v2224, %v2231
          %s2233 = scalar_lea.vmem %s4, 16
          %v2234 = vld [vmem:[%s2233] sm:$0xff]
          %2236 = vset.pattern.permute.xlu0 0
          %2237 = vperm.xlu0 %2236, %v2234
          %v2238 = vpop.permute.xlu0 %2237
          %v2240 = vmul.f32 %v2232, %v2238
          %s2241 = scalar_lea.vmem %s5, 16
          %v2242 = vld [vmem:[%s2241] sm:$0xff]
          %2244 = vset.pattern.permute.xlu0 0
          %2245 = vperm.xlu0 %2244, %v2242
          %v2246 = vpop.permute.xlu0 %2245
          %v2248 = vadd.f32 %v2240, %v2246
          %vm2249 = vcmp.gt.f32.partialorder %v2248, 0.0
          %v2250 = vmin.f32 %v2248, 0.0
          %v2251 = vmul.f32 %v2250, 1.442695
          %v2252 = vpow.pop %v2251
          %v2253 = vsub.f32 %v2252, 1.0
          %v2254 = vsel %vm2249, %v2248, %v2253
          %s2255 = scalar_lea.vmem %s778, 16 [#allocation8]
          %2256 = vst [vmem:[%s2255] sm:$0xff] %v2254
          %v2257 = vld [vmem:[%s2091] sm:$0xff]
          %v2258 = vld [vmem:[%s2091 + $0x8] sm:$0x1]
          %v2259 = vmax.f32 %v2258, 1e-20
          %v2260 = vrcp.pop %v2259
          %v2261 = vlaneseq
          %v2262 = vshrl.u32 %v2261, 7
          %v2263 = vsub.s32 0, %v2262
          %v2264 = vrot.slane %v2260, %v2263
          %v2265 = vmul.f32 %v2257, %v2264
          %s2266 = scalar_lea.vmem %s4, 24
          %v2267 = vld [vmem:[%s2266] sm:$0xff]
          %2269 = vset.pattern.permute.xlu0 0
          %2270 = vperm.xlu0 %2269, %v2267
          %v2271 = vpop.permute.xlu0 %2270
          %v2273 = vmul.f32 %v2265, %v2271
          %s2274 = scalar_lea.vmem %s5, 24
          %v2275 = vld [vmem:[%s2274] sm:$0xff]
          %2277 = vset.pattern.permute.xlu0 0
          %2278 = vperm.xlu0 %2277, %v2275
          %v2279 = vpop.permute.xlu0 %2278
          %v2281 = vadd.f32 %v2273, %v2279
          %vm2282 = vcmp.gt.f32.partialorder %v2281, 0.0
          %v2283 = vmin.f32 %v2281, 0.0
          %v2284 = vmul.f32 %v2283, 1.442695
          %v2285 = vpow.pop %v2284
          %v2286 = vsub.f32 %v2285, 1.0
          %v2287 = vsel %vm2282, %v2281, %v2286
          %s2288 = scalar_lea.vmem %s778, 24 [#allocation8]
          %2289 = vst [vmem:[%s2288] sm:$0xff] %v2287
        $region203: #{tpu_custom_call.1} parent=178 // pred_fallthru
          _
        %s2290 = sand.u32 %s188, 1
        %s2291 = scalar_lea.sflag [#allocation9], %s2290
        %s2292 = sand.u32 %s188, 1
        %s2293 = smul.addr %s2292, 32
        %s2294 = scalar_lea.vmem [#allocation8], %s2293
        // Predicated region
        $region204: #{tpu_custom_call.1} parent=178 // pred_check
          %p2295 = pneg %p198
        $region205: #{tpu_custom_call.1} parent=178 // pred_check_branch
          %2297 = sbr.rel (%p2295) target = $region207
        $region206: #{tpu_custom_call.1} parent=178 // pred_region
          %s2299 = ssub.s32 512, 512
          %2300 = vsyncadd %s2291, %s2299
          %s2301 = smul.addr %s24, 128
          %s2302 = scalar_lea.hbm %s6, %s2301
          %s2303 = sshll.u32 %s2294, 4
          %s2304 = int_to_ptr.vmem [resolvable:$true] %s2303
          %2309 = dma.vmem_to_hbm [thread:$0]  %s2304, 512, %s2302, %s2291, 128, 256, 8
        $region207: #{tpu_custom_call.1} parent=178 // pred_fallthru
          _
      $region179: #{tpu_custom_call.1} parent=5 // pred_fallthru
        _
      %p2310 = scmp.le.s32.totalorder 2, %s15
      // Predicated region
      $region208: #{tpu_custom_call.1} parent=5 // pred_check
        %p2311 = pneg %p2310
      $region209: #{tpu_custom_call.1} parent=5 // pred_check_branch
        %2313 = sbr.rel (%p2311) target = $region211
      $region210: #{tpu_custom_call.1} parent=5 // pred_region
        %s2314 = ssub.s32 %s15, 2
        // Predicated region
        $region212: #{tpu_custom_call.1} parent=210 // pred_check
          %p2315 = pneg %p204
        $region213: #{tpu_custom_call.1} parent=210 // pred_check_branch
          %2317 = sbr.rel (%p2315) target = $region215
        $region214: #{tpu_custom_call.1} parent=210 // pred_region
          %s2318 = sand.u32 %s189, 1
          %s2319 = scalar_lea.sflag [#allocation9], %s2318
          %s2320 = sand.u32 %s189, 1
          %s2321 = smul.addr %s2320, 32
          %s2322 = scalar_lea.vmem [#allocation8], %s2321
          %2323 = dma.done %s2319, 512
        $region215: #{tpu_custom_call.1} parent=210 // pred_fallthru
          _
      $region211: #{tpu_custom_call.1} parent=5 // pred_fallthru
        _
    $region6: #{tpu_custom_call.1} parent=1 // loop_footer
      %s19 = sadd.s32 1, %s15
    $region7: #{tpu_custom_call.1} parent=1 // loop_footer_branch
      %14 = sbr.rel target = $region3
    $region8: #{tpu_custom_call.1} parent=1 // loop_exit
      _
    %2324 = vsyncpa [#allocation9], 1
    %s2325 = scalar_lea.sflag [#allocation9], 1
    %2326 = vsyncpa %s2325, 1

</llo_original>
